<compile_context>
chip_gen: v6e
topology: v6e:2x2x1
jax: 0.10.0
libtpu: 0.0.40
codegen_flags: <defaults>
</compile_context>

<pallas_src>
import functools
import math

import jax
import jax.numpy as jnp
from jax.experimental import pallas as pl
from jax.experimental.pallas import tpu as pltpu

LANE = 128


def _round_up(a, m):
    return (a + m - 1) // m * m


def _vmem_capacity_bytes():
    # 128 MiB on v5e/v6e, 64 MiB per TC on v7x; fall back if the query fails.
    try:
        return int(pltpu.get_tpu_info().vmem_capacity_bytes)
    except Exception:
        return 128 * 1024 * 1024


def mha_kernel(x_ref, w_ref, b_ref, o_ref, *, n_heads, dh_pad):
    """Fused QKV projection + per-head softmax attention for one batch block.

    x_ref : (Bt, N, Din)   input block (Din padded to a multiple of 128)
    w_ref : (Din, 3*Dp)    fused [Wq*scale | Wk | Wv], per-head cols padded to dh_pad
    b_ref : (1, 3*Dp)      fused biases (same padding)
    o_ref : (Bt, N, Dp)    head h occupies lanes [h*dh_pad, (h+1)*dh_pad)
    """
    Bt, N, Din = x_ref.shape
    Dp = o_ref.shape[-1]
    mm_dtype = x_ref.dtype   # MXU operand dtype (bf16 in realistic configs); f32 accum

    # ---- One wide QKV projection on the MXU (single matmul, 3x-wide N dim). ----
    x2 = x_ref[...].reshape(Bt * N, Din)
    qkv = jnp.dot(x2, w_ref[...], preferred_element_type=jnp.float32)
    qkv = (qkv + b_ref[...]).reshape(Bt, N, 3 * Dp)

    q = qkv[:, :, 0 * Dp:1 * Dp].astype(mm_dtype)   # 1/sqrt(dh) already folded into Wq
    k = qkv[:, :, 1 * Dp:2 * Dp].astype(mm_dtype)
    v = qkv[:, :, 2 * Dp:3 * Dp].astype(mm_dtype)

    # ---- Per-head attention. dh_pad is lane aligned, so every slice/store below
    #      is a full unmasked vreg access. Heads are computed and stored one at a
    #      time (no list of live outputs, no concat).
    # TODO(synk): for sequence lengths beyond ~1K, add a KV grid axis with online
    # softmax (flash pattern, running m/l/acc scratch) instead of materializing
    # the full (Bt, N, N) score tensor.
    for h in range(n_heads):                        # static unroll; n_heads is small
        lo = h * dh_pad
        qh = q[:, :, lo:lo + dh_pad]
        kh = k[:, :, lo:lo + dh_pad]
        vh = v[:, :, lo:lo + dh_pad]

        s = jnp.einsum('bqd,bkd->bqk', qh, kh,
                       preferred_element_type=jnp.float32)
        s = s - jnp.max(s, axis=-1, keepdims=True)            # stable softmax
        p = jnp.exp(s)
        # Deferred normalization: scale the (N, dh) result, not the (N, N) probs.
        inv = pl.reciprocal(jnp.sum(p, axis=-1, keepdims=True), approx=True)
        pv = jnp.einsum('bqk,bkd->bqd', p.astype(mm_dtype), vh,
                        preferred_element_type=jnp.float32)
        o_ref[:, :, lo:lo + dh_pad] = (pv * inv).astype(o_ref.dtype)


def _build_call(kernel, B, N, Din, Dp, block_b, out_dtype, vmem_limit,
                single_buffer_weights):
    if single_buffer_weights:
        # Weights/bias are grid-invariant (index_map always (0, 0)): single-buffer
        # them to save VMEM (matters on v5e's small scoped limit and v7x's 64 MiB).
        w_spec = pl.BlockSpec((Din, 3 * Dp), lambda b: (0, 0),
                              pipeline_mode=pl.Buffered(1))
        b_spec = pl.BlockSpec((1, 3 * Dp), lambda b: (0, 0),
                              pipeline_mode=pl.Buffered(1))
    else:
        w_spec = pl.BlockSpec((Din, 3 * Dp), lambda b: (0, 0))
        b_spec = pl.BlockSpec((1, 3 * Dp), lambda b: (0, 0))

    return pl.pallas_call(
        kernel,
        out_shape=jax.ShapeDtypeStruct((B, N, Dp), out_dtype),
        grid_spec=pltpu.PrefetchScalarGridSpec(
            num_scalar_prefetch=0,
            grid=(pl.cdiv(B, block_b),),
            in_specs=[
                pl.BlockSpec((block_b, N, Din), lambda b: (b, 0, 0)),   # x block
                w_spec,                                                 # fused W_qkv
                b_spec,                                                 # fused bias
            ],
            out_specs=pl.BlockSpec((block_b, N, Dp), lambda b: (b, 0, 0)),
        ),
        compiler_params=pltpu.CompilerParams(
            dimension_semantics=("parallel",),      # batch blocks are independent
            vmem_limit_bytes=int(vmem_limit),
        ),
    )


def mha_forward(x, wq, wk, wv, bq, bk, bv, *, n_heads, block_b=None):
    """softmax((xWq)(xWk)^T / sqrt(dh)) @ (xWv), heads concatenated -> (B, N, D)."""
    B, N, D = x.shape
    assert D % n_heads == 0
    dh = D // n_heads
    scale = float(dh) ** -0.5
    dtype = x.dtype
    itemsize = dtype.itemsize

    dh_pad = _round_up(dh, LANE)        # per-head width, lane aligned
    Dp = n_heads * dh_pad               # padded feature width of q / k / v / out
    Din = _round_up(D, LANE)            # padded contraction dim of the projection

    # ---- Fuse + pad the three projections into one (Din, 3*Dp) weight. ----
    def pad_heads(w, b):
        w3 = jnp.pad(w.reshape(D, n_heads, dh),
                     ((0, Din - D), (0, 0), (0, dh_pad - dh)))
        b2 = jnp.pad(b.reshape(n_heads, dh), ((0, 0), (0, dh_pad - dh)))
        return w3.reshape(Din, Dp).astype(dtype), b2.reshape(1, Dp).astype(dtype)

    wq_p, bq_p = pad_heads(wq * scale, bq * scale)   # fold 1/sqrt(dh) into the Q proj
    wk_p, bk_p = pad_heads(wk, bk)
    wv_p, bv_p = pad_heads(wv, bv)
    w_qkv = jnp.concatenate([wq_p, wk_p, wv_p], axis=1)     # (Din, 3*Dp)
    b_qkv = jnp.concatenate([bq_p, bk_p, bv_p], axis=1)     # (1, 3*Dp)
    x_p = x if Din == D else jnp.pad(x, ((0, 0), (0, 0), (0, Din - D)))

    # ---- VMEM-budgeted batch-block size (full working set, not just x). ----
    vmem_cap = _vmem_capacity_bytes()
    vmem_limit = min(vmem_cap // 2, 96 * 1024 * 1024)        # scoped limit we request
    budget = vmem_limit // 2                                 # headroom for the compiler

    weight_bytes = (Din * 3 * Dp + 3 * Dp) * itemsize * 2    # conservatively double-buffered
    per_row = (2 * N * Din * itemsize                        # x block (double-buffered)
               + 2 * N * Dp * itemsize                       # out block (double-buffered)
               + 3 * N * Dp * 4                              # qkv f32 accumulator
               + 3 * N * Dp * itemsize                       # q/k/v casts
               + 2 * N * N * 4                               # scores + probs (one head live)
               + N * dh_pad * 4)                             # per-head p@v result

    if block_b is None:
        block_b = max(1, (budget - weight_bytes) // per_row)
        block_b = int(min(block_b, B))
        if B > 1:                                 # >= 2 grid steps so v7x can use both TCs
            block_b = min(block_b, -(-B // 2))
        m_step = 256 // math.gcd(N, 256)          # keep block_b*N a multiple of 256 (v6e/v7x MXU)
        if block_b > m_step:
            block_b -= block_b % m_step
    block_b = int(block_b)

    kernel = functools.partial(mha_kernel, n_heads=n_heads, dh_pad=dh_pad)
    args = (x_p, w_qkv, b_qkv)
    try:
        out_p = _build_call(kernel, B, N, Din, Dp, block_b, dtype, vmem_limit,
                            single_buffer_weights=True)(*args)
    except Exception:
        # Fallback if single-buffer pipeline_mode is unsupported in this jax build.
        out_p = _build_call(kernel, B, N, Din, Dp, block_b, dtype, vmem_limit,
                            single_buffer_weights=False)(*args)

    if dh_pad == dh:
        return out_p
    # Drop the per-head lane padding: (B, N, H*dh_pad) -> (B, N, H*dh).
    return out_p.reshape(B, N, n_heads, dh_pad)[:, :, :, :dh].reshape(B, N, D)


def reference_forward(x, wq, wk, wv, bq, bk, bv, n_heads):
    B, N, D = x.shape
    dh = D // n_heads
    q = x @ wq + bq
    k = x @ wk + bk
    v = x @ wv + bv

    def split(t):  # 'b n (h d) -> b h n d'
        return t.reshape(B, N, n_heads, dh).transpose(0, 2, 1, 3)

    q, k, v = split(q), split(k), split(v)
    s = jnp.einsum('bhqd,bhkd->bhqk', q, k) * dh ** -0.5
    p = jax.nn.softmax(s, axis=-1)
    o = jnp.einsum('bhqk,bhkd->bhqd', p, v)
    return o.transpose(0, 2, 1, 3).reshape(B, N, D)   # 'b h n d -> b n (h d)'


if __name__ == "__main__":
    # Small shapes consistent with the module: batch=2, seq=8, dim=32, heads=4.
    B, N, D, H = 2, 8, 32, 4
    key = jax.random.PRNGKey(0)
    kx, kq, kk, kv, kbq, kbk, kbv = jax.random.split(key, 7)

    x = jax.random.normal(kx, (B, N, D), dtype=jnp.float32)
    wq = jax.random.normal(kq, (D, D), dtype=jnp.float32) * (D ** -0.5)
    wk = jax.random.normal(kk, (D, D), dtype=jnp.float32) * (D ** -0.5)
    wv = jax.random.normal(kv, (D, D), dtype=jnp.float32) * (D ** -0.5)
    bq = jax.random.normal(kbq, (D,), dtype=jnp.float32) * 0.1
    bk = jax.random.normal(kbk, (D,), dtype=jnp.float32) * 0.1
    bv = jax.random.normal(kbv, (D,), dtype=jnp.float32) * 0.1

    out = mha_forward(x, wq, wk, wv, bq, bk, bv, n_heads=H)
    jax.block_until_ready(out)

    ref = reference_forward(x, wq, wk, wv, bq, bk, bv, H)
    assert out.shape == (B, N, D)
    # Tolerance loosened slightly vs the pure-f32 reference because of the
    # approximate (EUP) reciprocal used for the deferred softmax normalization.
    err = float(jnp.max(jnp.abs(out - ref)))
    assert jnp.allclose(out, ref, atol=2e-3, rtol=2e-3), err

    print("KERNEL_OK")
</pallas_src>

<mosaic_0001>
module attributes {stable_mosaic.version = 11 : i64} {
  func.func @mha_kernel(%arg0: i32, %arg1: memref<1x8x128xf32, #tpu.memory_space<vmem>>, %arg2: memref<128x1536xf32, #tpu.memory_space<vmem>>, %arg3: memref<1x1536xf32, #tpu.memory_space<vmem>>, %arg4: memref<1x8x512xf32, #tpu.memory_space<vmem>>) attributes {dimension_semantics = [#tpu.dimension_semantics<parallel>], iteration_bounds = array<i64: 2>, scalar_prefetch = 0 : i64, scratch_operands = 0 : i64, tpu.core_type = #tpu.core_type<tc>, window_params = [{transform_indices = @transform_0, window_bounds = array<i64: 1, 8, 128>}, {pipeline_mode = #tpu.pipeline_mode<synchronous>, transform_indices = @transform_1, window_bounds = array<i64: 128, 1536>}, {pipeline_mode = #tpu.pipeline_mode<synchronous>, transform_indices = @transform_2, window_bounds = array<i64: 1, 1536>}, {transform_indices = @transform_3, window_bounds = array<i64: 1, 8, 512>}]} {
    %c0 = arith.constant 0 : index
    %c0_0 = arith.constant 0 : index
    %c0_1 = arith.constant 0 : index
    %0 = vector.load %arg1[%c0, %c0_0, %c0_1] : memref<1x8x128xf32, #tpu.memory_space<vmem>>, vector<1x8x128xf32>
    %1 = vector.shape_cast %0 : vector<1x8x128xf32> to vector<8x128xf32>
    %c0_2 = arith.constant 0 : index
    %c0_3 = arith.constant 0 : index
    %2 = vector.load %arg2[%c0_2, %c0_3] : memref<128x1536xf32, #tpu.memory_space<vmem>>, vector<128x1536xf32>
    %cst = arith.constant dense<0.000000e+00> : vector<8x1536xf32>
    %3 = tpu.matmul %1, %2, %cst {dimension_numbers = #tpu.dot_dimension_numbers<[1], [0], [0], [1], [0, 0, 1, 1], [], []>} : vector<8x128xf32>, vector<128x1536xf32>, vector<8x1536xf32> -> vector<8x1536xf32>
    %c0_4 = arith.constant 0 : index
    %c0_5 = arith.constant 0 : index
    %4 = vector.load %arg3[%c0_4, %c0_5] : memref<1x1536xf32, #tpu.memory_space<vmem>>, vector<1x1536xf32>
    %5 = vector.broadcast %4 : vector<1x1536xf32> to vector<8x1536xf32>
    %6 = arith.addf %3, %5 : vector<8x1536xf32>
    %7 = vector.shape_cast %6 : vector<8x1536xf32> to vector<1x8x1536xf32>
    %8 = vector.extract_strided_slice %7 {offsets = [0, 0, 0], sizes = [1, 8, 512], strides = [1, 1, 1]} : vector<1x8x1536xf32> to vector<1x8x512xf32>
    %9 = vector.extract_strided_slice %7 {offsets = [0, 0, 512], sizes = [1, 8, 512], strides = [1, 1, 1]} : vector<1x8x1536xf32> to vector<1x8x512xf32>
    %10 = vector.extract_strided_slice %7 {offsets = [0, 0, 1024], sizes = [1, 8, 512], strides = [1, 1, 1]} : vector<1x8x1536xf32> to vector<1x8x512xf32>
    %11 = vector.extract_strided_slice %8 {offsets = [0, 0, 0], sizes = [1, 8, 128], strides = [1, 1, 1]} : vector<1x8x512xf32> to vector<1x8x128xf32>
    %12 = vector.extract_strided_slice %9 {offsets = [0, 0, 0], sizes = [1, 8, 128], strides = [1, 1, 1]} : vector<1x8x512xf32> to vector<1x8x128xf32>
    %13 = vector.extract_strided_slice %10 {offsets = [0, 0, 0], sizes = [1, 8, 128], strides = [1, 1, 1]} : vector<1x8x512xf32> to vector<1x8x128xf32>
    "tpu.trace_start"() <{level = 10 : i32, message = "bqd,bkd->bqk"}> : () -> ()
    %cst_6 = arith.constant dense<0.000000e+00> : vector<1x8x8xf32>
    %14 = tpu.matmul %11, %12, %cst_6 {dimension_numbers = #tpu.dot_dimension_numbers<[2], [2], [1], [1], [0, 0, 0, 1, 1, 1], [0], [0]>} : vector<1x8x128xf32>, vector<1x8x128xf32>, vector<1x8x8xf32> -> vector<1x8x8xf32>
    "tpu.trace_stop"() : () -> ()
    %cst_7 = arith.constant dense<0xFF800000> : vector<1x8xf32>
    %15 = vector.multi_reduction <maximumf>, %14, %cst_7 [2] : vector<1x8x8xf32> to vector<1x8xf32>
    %16 = vector.shape_cast %15 : vector<1x8xf32> to vector<1x8x1xf32>
    %17 = vector.broadcast %16 : vector<1x8x1xf32> to vector<1x8x8xf32>
    %18 = arith.subf %14, %17 : vector<1x8x8xf32>
    %19 = math.exp %18 : vector<1x8x8xf32>
    %cst_8 = arith.constant dense<0.000000e+00> : vector<1x8xf32>
    %20 = vector.multi_reduction <add>, %19, %cst_8 [2] : vector<1x8x8xf32> to vector<1x8xf32>
    %21 = vector.shape_cast %20 : vector<1x8xf32> to vector<1x8x1xf32>
    %22 = tpu.reciprocal %21 {approx = true} : vector<1x8x1xf32> -> vector<1x8x1xf32>
    "tpu.trace_start"() <{level = 10 : i32, message = "bqk,bkd->bqd"}> : () -> ()
    %cst_9 = arith.constant dense<0.000000e+00> : vector<1x8x128xf32>
    %23 = tpu.matmul %19, %13, %cst_9 {dimension_numbers = #tpu.dot_dimension_numbers<[2], [1], [1], [2], [0, 0, 0, 1, 1, 2], [0], [0]>} : vector<1x8x8xf32>, vector<1x8x128xf32>, vector<1x8x128xf32> -> vector<1x8x128xf32>
    "tpu.trace_stop"() : () -> ()
    %24 = vector.broadcast %22 : vector<1x8x1xf32> to vector<1x8x128xf32>
    %25 = arith.mulf %23, %24 : vector<1x8x128xf32>
    %c0_10 = arith.constant 0 : index
    %c0_11 = arith.constant 0 : index
    %c0_12 = arith.constant 0 : index
    %26 = vector.load %arg4[%c0_10, %c0_11, %c0_12] : memref<1x8x512xf32, #tpu.memory_space<vmem>>, vector<1x8x128xf32>
    tpu.vector_store %arg4[%c0_10, %c0_11, %c0_12], %25 {strides = array<i32>} : memref<1x8x512xf32, #tpu.memory_space<vmem>>, vector<1x8x128xf32>,
    %27 = vector.extract_strided_slice %8 {offsets = [0, 0, 128], sizes = [1, 8, 128], strides = [1, 1, 1]} : vector<1x8x512xf32> to vector<1x8x128xf32>
    %28 = vector.extract_strided_slice %9 {offsets = [0, 0, 128], sizes = [1, 8, 128], strides = [1, 1, 1]} : vector<1x8x512xf32> to vector<1x8x128xf32>
    %29 = vector.extract_strided_slice %10 {offsets = [0, 0, 128], sizes = [1, 8, 128], strides = [1, 1, 1]} : vector<1x8x512xf32> to vector<1x8x128xf32>
    "tpu.trace_start"() <{level = 10 : i32, message = "bqd,bkd->bqk"}> : () -> ()
    %cst_13 = arith.constant dense<0.000000e+00> : vector<1x8x8xf32>
    %30 = tpu.matmul %27, %28, %cst_13 {dimension_numbers = #tpu.dot_dimension_numbers<[2], [2], [1], [1], [0, 0, 0, 1, 1, 1], [0], [0]>} : vector<1x8x128xf32>, vector<1x8x128xf32>, vector<1x8x8xf32> -> vector<1x8x8xf32>
    "tpu.trace_stop"() : () -> ()
    %cst_14 = arith.constant dense<0xFF800000> : vector<1x8xf32>
    %31 = vector.multi_reduction <maximumf>, %30, %cst_14 [2] : vector<1x8x8xf32> to vector<1x8xf32>
    %32 = vector.shape_cast %31 : vector<1x8xf32> to vector<1x8x1xf32>
    %33 = vector.broadcast %32 : vector<1x8x1xf32> to vector<1x8x8xf32>
    %34 = arith.subf %30, %33 : vector<1x8x8xf32>
    %35 = math.exp %34 : vector<1x8x8xf32>
    %cst_15 = arith.constant dense<0.000000e+00> : vector<1x8xf32>
    %36 = vector.multi_reduction <add>, %35, %cst_15 [2] : vector<1x8x8xf32> to vector<1x8xf32>
    %37 = vector.shape_cast %36 : vector<1x8xf32> to vector<1x8x1xf32>
    %38 = tpu.reciprocal %37 {approx = true} : vector<1x8x1xf32> -> vector<1x8x1xf32>
    "tpu.trace_start"() <{level = 10 : i32, message = "bqk,bkd->bqd"}> : () -> ()
    %cst_16 = arith.constant dense<0.000000e+00> : vector<1x8x128xf32>
    %39 = tpu.matmul %35, %29, %cst_16 {dimension_numbers = #tpu.dot_dimension_numbers<[2], [1], [1], [2], [0, 0, 0, 1, 1, 2], [0], [0]>} : vector<1x8x8xf32>, vector<1x8x128xf32>, vector<1x8x128xf32> -> vector<1x8x128xf32>
    "tpu.trace_stop"() : () -> ()
    %40 = vector.broadcast %38 : vector<1x8x1xf32> to vector<1x8x128xf32>
    %41 = arith.mulf %39, %40 : vector<1x8x128xf32>
    %c0_17 = arith.constant 0 : index
    %c0_18 = arith.constant 0 : index
    %c128 = arith.constant 128 : index
    %42 = vector.load %arg4[%c0_17, %c0_18, %c128] : memref<1x8x512xf32, #tpu.memory_space<vmem>>, vector<1x8x128xf32>
    tpu.vector_store %arg4[%c0_17, %c0_18, %c128], %41 {strides = array<i32>} : memref<1x8x512xf32, #tpu.memory_space<vmem>>, vector<1x8x128xf32>,
    %43 = vector.extract_strided_slice %8 {offsets = [0, 0, 256], sizes = [1, 8, 128], strides = [1, 1, 1]} : vector<1x8x512xf32> to vector<1x8x128xf32>
    %44 = vector.extract_strided_slice %9 {offsets = [0, 0, 256], sizes = [1, 8, 128], strides = [1, 1, 1]} : vector<1x8x512xf32> to vector<1x8x128xf32>
    %45 = vector.extract_strided_slice %10 {offsets = [0, 0, 256], sizes = [1, 8, 128], strides = [1, 1, 1]} : vector<1x8x512xf32> to vector<1x8x128xf32>
    "tpu.trace_start"() <{level = 10 : i32, message = "bqd,bkd->bqk"}> : () -> ()
    %cst_19 = arith.constant dense<0.000000e+00> : vector<1x8x8xf32>
    %46 = tpu.matmul %43, %44, %cst_19 {dimension_numbers = #tpu.dot_dimension_numbers<[2], [2], [1], [1], [0, 0, 0, 1, 1, 1], [0], [0]>} : vector<1x8x128xf32>, vector<1x8x128xf32>, vector<1x8x8xf32> -> vector<1x8x8xf32>
    "tpu.trace_stop"() : () -> ()
    %cst_20 = arith.constant dense<0xFF800000> : vector<1x8xf32>
    %47 = vector.multi_reduction <maximumf>, %46, %cst_20 [2] : vector<1x8x8xf32> to vector<1x8xf32>
    %48 = vector.shape_cast %47 : vector<1x8xf32> to vector<1x8x1xf32>
    %49 = vector.broadcast %48 : vector<1x8x1xf32> to vector<1x8x8xf32>
    %50 = arith.subf %46, %49 : vector<1x8x8xf32>
    %51 = math.exp %50 : vector<1x8x8xf32>
    %cst_21 = arith.constant dense<0.000000e+00> : vector<1x8xf32>
    %52 = vector.multi_reduction <add>, %51, %cst_21 [2] : vector<1x8x8xf32> to vector<1x8xf32>
    %53 = vector.shape_cast %52 : vector<1x8xf32> to vector<1x8x1xf32>
    %54 = tpu.reciprocal %53 {approx = true} : vector<1x8x1xf32> -> vector<1x8x1xf32>
    "tpu.trace_start"() <{level = 10 : i32, message = "bqk,bkd->bqd"}> : () -> ()
    %cst_22 = arith.constant dense<0.000000e+00> : vector<1x8x128xf32>
    %55 = tpu.matmul %51, %45, %cst_22 {dimension_numbers = #tpu.dot_dimension_numbers<[2], [1], [1], [2], [0, 0, 0, 1, 1, 2], [0], [0]>} : vector<1x8x8xf32>, vector<1x8x128xf32>, vector<1x8x128xf32> -> vector<1x8x128xf32>
    "tpu.trace_stop"() : () -> ()
    %56 = vector.broadcast %54 : vector<1x8x1xf32> to vector<1x8x128xf32>
    %57 = arith.mulf %55, %56 : vector<1x8x128xf32>
    %c0_23 = arith.constant 0 : index
    %c0_24 = arith.constant 0 : index
    %c256 = arith.constant 256 : index
    %58 = vector.load %arg4[%c0_23, %c0_24, %c256] : memref<1x8x512xf32, #tpu.memory_space<vmem>>, vector<1x8x128xf32>
    tpu.vector_store %arg4[%c0_23, %c0_24, %c256], %57 {strides = array<i32>} : memref<1x8x512xf32, #tpu.memory_space<vmem>>, vector<1x8x128xf32>,
    %59 = vector.extract_strided_slice %8 {offsets = [0, 0, 384], sizes = [1, 8, 128], strides = [1, 1, 1]} : vector<1x8x512xf32> to vector<1x8x128xf32>
    %60 = vector.extract_strided_slice %9 {offsets = [0, 0, 384], sizes = [1, 8, 128], strides = [1, 1, 1]} : vector<1x8x512xf32> to vector<1x8x128xf32>
    %61 = vector.extract_strided_slice %10 {offsets = [0, 0, 384], sizes = [1, 8, 128], strides = [1, 1, 1]} : vector<1x8x512xf32> to vector<1x8x128xf32>
    "tpu.trace_start"() <{level = 10 : i32, message = "bqd,bkd->bqk"}> : () -> ()
    %cst_25 = arith.constant dense<0.000000e+00> : vector<1x8x8xf32>
    %62 = tpu.matmul %59, %60, %cst_25 {dimension_numbers = #tpu.dot_dimension_numbers<[2], [2], [1], [1], [0, 0, 0, 1, 1, 1], [0], [0]>} : vector<1x8x128xf32>, vector<1x8x128xf32>, vector<1x8x8xf32> -> vector<1x8x8xf32>
    "tpu.trace_stop"() : () -> ()
    %cst_26 = arith.constant dense<0xFF800000> : vector<1x8xf32>
    %63 = vector.multi_reduction <maximumf>, %62, %cst_26 [2] : vector<1x8x8xf32> to vector<1x8xf32>
    %64 = vector.shape_cast %63 : vector<1x8xf32> to vector<1x8x1xf32>
    %65 = vector.broadcast %64 : vector<1x8x1xf32> to vector<1x8x8xf32>
    %66 = arith.subf %62, %65 : vector<1x8x8xf32>
    %67 = math.exp %66 : vector<1x8x8xf32>
    %cst_27 = arith.constant dense<0.000000e+00> : vector<1x8xf32>
    %68 = vector.multi_reduction <add>, %67, %cst_27 [2] : vector<1x8x8xf32> to vector<1x8xf32>
    %69 = vector.shape_cast %68 : vector<1x8xf32> to vector<1x8x1xf32>
    %70 = tpu.reciprocal %69 {approx = true} : vector<1x8x1xf32> -> vector<1x8x1xf32>
    "tpu.trace_start"() <{level = 10 : i32, message = "bqk,bkd->bqd"}> : () -> ()
    %cst_28 = arith.constant dense<0.000000e+00> : vector<1x8x128xf32>
    %71 = tpu.matmul %67, %61, %cst_28 {dimension_numbers = #tpu.dot_dimension_numbers<[2], [1], [1], [2], [0, 0, 0, 1, 1, 2], [0], [0]>} : vector<1x8x8xf32>, vector<1x8x128xf32>, vector<1x8x128xf32> -> vector<1x8x128xf32>
    "tpu.trace_stop"() : () -> ()
    %72 = vector.broadcast %70 : vector<1x8x1xf32> to vector<1x8x128xf32>
    %73 = arith.mulf %71, %72 : vector<1x8x128xf32>
    %c0_29 = arith.constant 0 : index
    %c0_30 = arith.constant 0 : index
    %c384 = arith.constant 384 : index
    %74 = vector.load %arg4[%c0_29, %c0_30, %c384] : memref<1x8x512xf32, #tpu.memory_space<vmem>>, vector<1x8x128xf32>
    tpu.vector_store %arg4[%c0_29, %c0_30, %c384], %73 {strides = array<i32>} : memref<1x8x512xf32, #tpu.memory_space<vmem>>, vector<1x8x128xf32>,
    return
  }
  func.func @transform_0(%arg0: i32) -> (i32, i32, i32) {
    %c0_i32 = arith.constant 0 : i32
    %c0_i32_0 = arith.constant 0 : i32
    %c0_i32_1 = arith.constant 0 : i32
    return %arg0, %c0_i32, %c0_i32_0 : i32, i32, i32
  }
  func.func @transform_1(%arg0: i32) -> (i32, i32) {
    %c0_i32 = arith.constant 0 : i32
    %c0_i32_0 = arith.constant 0 : i32
    %c0_i32_1 = arith.constant 0 : i32
    return %c0_i32, %c0_i32_0 : i32, i32
  }
  func.func @transform_2(%arg0: i32) -> (i32, i32) {
    %c0_i32 = arith.constant 0 : i32
    %c0_i32_0 = arith.constant 0 : i32
    %c0_i32_1 = arith.constant 0 : i32
    return %c0_i32, %c0_i32_0 : i32, i32
  }
  func.func @transform_3(%arg0: i32) -> (i32, i32, i32) {
    %c0_i32 = arith.constant 0 : i32
    %c0_i32_0 = arith.constant 0 : i32
    %c0_i32_1 = arith.constant 0 : i32
    return %arg0, %c0_i32, %c0_i32_0 : i32, i32, i32
  }
}

module attributes {stable_mosaic.version = 11 : i64} {
  func.func @mha_kernel(%arg0: i32, %arg1: memref<1x8x128xf32, #tpu.memory_space<vmem>>, %arg2: memref<128x1536xf32, #tpu.memory_space<vmem>>, %arg3: memref<1x1536xf32, #tpu.memory_space<vmem>>, %arg4: memref<1x8x512xf32, #tpu.memory_space<vmem>>) attributes {dimension_semantics = [#tpu.dimension_semantics<parallel>], iteration_bounds = array<i64: 2>, scalar_prefetch = 0 : i64, scratch_operands = 0 : i64, tpu.core_type = #tpu.core_type<tc>, window_params = [{transform_indices = @transform_0, window_bounds = array<i64: 1, 8, 128>}, {pipeline_mode = #tpu.pipeline_mode<synchronous>, transform_indices = @transform_1, window_bounds = array<i64: 128, 1536>}, {pipeline_mode = #tpu.pipeline_mode<synchronous>, transform_indices = @transform_2, window_bounds = array<i64: 1, 1536>}, {transform_indices = @transform_3, window_bounds = array<i64: 1, 8, 512>}]} {
    %c0 = arith.constant 0 : index
    %c0_0 = arith.constant 0 : index
    %c0_1 = arith.constant 0 : index
    %0 = vector.load %arg1[%c0, %c0_0, %c0_1] : memref<1x8x128xf32, #tpu.memory_space<vmem>>, vector<1x8x128xf32>
    %1 = vector.shape_cast %0 : vector<1x8x128xf32> to vector<8x128xf32>
    %c0_2 = arith.constant 0 : index
    %c0_3 = arith.constant 0 : index
    %2 = vector.load %arg2[%c0_2, %c0_3] : memref<128x1536xf32, #tpu.memory_space<vmem>>, vector<128x1536xf32>
    %cst = arith.constant dense<0.000000e+00> : vector<8x1536xf32>
    %3 = tpu.matmul %1, %2, %cst {dimension_numbers = #tpu.dot_dimension_numbers<[1], [0], [0], [1], [0, 0, 1, 1], [], []>} : vector<8x128xf32>, vector<128x1536xf32>, vector<8x1536xf32> -> vector<8x1536xf32>
    %c0_4 = arith.constant 0 : index
    %c0_5 = arith.constant 0 : index
    %4 = vector.load %arg3[%c0_4, %c0_5] : memref<1x1536xf32, #tpu.memory_space<vmem>>, vector<1x1536xf32>
    %5 = vector.broadcast %4 : vector<1x1536xf32> to vector<8x1536xf32>
    %6 = arith.addf %3, %5 : vector<8x1536xf32>
    %7 = vector.shape_cast %6 : vector<8x1536xf32> to vector<1x8x1536xf32>
    %8 = vector.extract_strided_slice %7 {offsets = [0, 0, 0], sizes = [1, 8, 512], strides = [1, 1, 1]} : vector<1x8x1536xf32> to vector<1x8x512xf32>
    %9 = vector.extract_strided_slice %7 {offsets = [0, 0, 512], sizes = [1, 8, 512], strides = [1, 1, 1]} : vector<1x8x1536xf32> to vector<1x8x512xf32>
    %10 = vector.extract_strided_slice %7 {offsets = [0, 0, 1024], sizes = [1, 8, 512], strides = [1, 1, 1]} : vector<1x8x1536xf32> to vector<1x8x512xf32>
    %11 = vector.extract_strided_slice %8 {offsets = [0, 0, 0], sizes = [1, 8, 128], strides = [1, 1, 1]} : vector<1x8x512xf32> to vector<1x8x128xf32>
    %12 = vector.extract_strided_slice %9 {offsets = [0, 0, 0], sizes = [1, 8, 128], strides = [1, 1, 1]} : vector<1x8x512xf32> to vector<1x8x128xf32>
    %13 = vector.extract_strided_slice %10 {offsets = [0, 0, 0], sizes = [1, 8, 128], strides = [1, 1, 1]} : vector<1x8x512xf32> to vector<1x8x128xf32>
    "tpu.trace_start"() <{level = 10 : i32, message = "bqd,bkd->bqk"}> : () -> ()
    %cst_6 = arith.constant dense<0.000000e+00> : vector<1x8x8xf32>
    %14 = tpu.matmul %11, %12, %cst_6 {dimension_numbers = #tpu.dot_dimension_numbers<[2], [2], [1], [1], [0, 0, 0, 1, 1, 1], [0], [0]>} : vector<1x8x128xf32>, vector<1x8x128xf32>, vector<1x8x8xf32> -> vector<1x8x8xf32>
    "tpu.trace_stop"() : () -> ()
    %cst_7 = arith.constant dense<0xFF800000> : vector<1x8xf32>
    %15 = vector.multi_reduction <maximumf>, %14, %cst_7 [2] : vector<1x8x8xf32> to vector<1x8xf32>
    %16 = vector.shape_cast %15 : vector<1x8xf32> to vector<1x8x1xf32>
    %17 = vector.broadcast %16 : vector<1x8x1xf32> to vector<1x8x8xf32>
    %18 = arith.subf %14, %17 : vector<1x8x8xf32>
    %19 = math.exp %18 : vector<1x8x8xf32>
    %cst_8 = arith.constant dense<0.000000e+00> : vector<1x8xf32>
    %20 = vector.multi_reduction <add>, %19, %cst_8 [2] : vector<1x8x8xf32> to vector<1x8xf32>
    %21 = vector.shape_cast %20 : vector<1x8xf32> to vector<1x8x1xf32>
    %22 = tpu.reciprocal %21 {approx = true} : vector<1x8x1xf32> -> vector<1x8x1xf32>
    "tpu.trace_start"() <{level = 10 : i32, message = "bqk,bkd->bqd"}> : () -> ()
    %cst_9 = arith.constant dense<0.000000e+00> : vector<1x8x128xf32>
    %23 = tpu.matmul %19, %13, %cst_9 {dimension_numbers = #tpu.dot_dimension_numbers<[2], [1], [1], [2], [0, 0, 0, 1, 1, 2], [0], [0]>} : vector<1x8x8xf32>, vector<1x8x128xf32>, vector<1x8x128xf32> -> vector<1x8x128xf32>
    "tpu.trace_stop"() : () -> ()
    %24 = vector.broadcast %22 : vector<1x8x1xf32> to vector<1x8x128xf32>
    %25 = arith.mulf %23, %24 : vector<1x8x128xf32>
    %c0_10 = arith.constant 0 : index
    %c0_11 = arith.constant 0 : index
    %c0_12 = arith.constant 0 : index
    %26 = vector.load %arg4[%c0_10, %c0_11, %c0_12] : memref<1x8x512xf32, #tpu.memory_space<vmem>>, vector<1x8x128xf32>
    tpu.vector_store %arg4[%c0_10, %c0_11, %c0_12], %25 {strides = array<i32>} : memref<1x8x512xf32, #tpu.memory_space<vmem>>, vector<1x8x128xf32>,
    %27 = vector.extract_strided_slice %8 {offsets = [0, 0, 128], sizes = [1, 8, 128], strides = [1, 1, 1]} : vector<1x8x512xf32> to vector<1x8x128xf32>
    %28 = vector.extract_strided_slice %9 {offsets = [0, 0, 128], sizes = [1, 8, 128], strides = [1, 1, 1]} : vector<1x8x512xf32> to vector<1x8x128xf32>
    %29 = vector.extract_strided_slice %10 {offsets = [0, 0, 128], sizes = [1, 8, 128], strides = [1, 1, 1]} : vector<1x8x512xf32> to vector<1x8x128xf32>
    "tpu.trace_start"() <{level = 10 : i32, message = "bqd,bkd->bqk"}> : () -> ()
    %cst_13 = arith.constant dense<0.000000e+00> : vector<1x8x8xf32>
    %30 = tpu.matmul %27, %28, %cst_13 {dimension_numbers = #tpu.dot_dimension_numbers<[2], [2], [1], [1], [0, 0, 0, 1, 1, 1], [0], [0]>} : vector<1x8x128xf32>, vector<1x8x128xf32>, vector<1x8x8xf32> -> vector<1x8x8xf32>
    "tpu.trace_stop"() : () -> ()
    %cst_14 = arith.constant dense<0xFF800000> : vector<1x8xf32>
    %31 = vector.multi_reduction <maximumf>, %30, %cst_14 [2] : vector<1x8x8xf32> to vector<1x8xf32>
    %32 = vector.shape_cast %31 : vector<1x8xf32> to vector<1x8x1xf32>
    %33 = vector.broadcast %32 : vector<1x8x1xf32> to vector<1x8x8xf32>
    %34 = arith.subf %30, %33 : vector<1x8x8xf32>
    %35 = math.exp %34 : vector<1x8x8xf32>
    %cst_15 = arith.constant dense<0.000000e+00> : vector<1x8xf32>
    %36 = vector.multi_reduction <add>, %35, %cst_15 [2] : vector<1x8x8xf32> to vector<1x8xf32>
    %37 = vector.shape_cast %36 : vector<1x8xf32> to vector<1x8x1xf32>
    %38 = tpu.reciprocal %37 {approx = true} : vector<1x8x1xf32> -> vector<1x8x1xf32>
    "tpu.trace_start"() <{level = 10 : i32, message = "bqk,bkd->bqd"}> : () -> ()
    %cst_16 = arith.constant dense<0.000000e+00> : vector<1x8x128xf32>
    %39 = tpu.matmul %35, %29, %cst_16 {dimension_numbers = #tpu.dot_dimension_numbers<[2], [1], [1], [2], [0, 0, 0, 1, 1, 2], [0], [0]>} : vector<1x8x8xf32>, vector<1x8x128xf32>, vector<1x8x128xf32> -> vector<1x8x128xf32>
    "tpu.trace_stop"() : () -> ()
    %40 = vector.broadcast %38 : vector<1x8x1xf32> to vector<1x8x128xf32>
    %41 = arith.mulf %39, %40 : vector<1x8x128xf32>
    %c0_17 = arith.constant 0 : index
    %c0_18 = arith.constant 0 : index
    %c128 = arith.constant 128 : index
    %42 = vector.load %arg4[%c0_17, %c0_18, %c128] : memref<1x8x512xf32, #tpu.memory_space<vmem>>, vector<1x8x128xf32>
    tpu.vector_store %arg4[%c0_17, %c0_18, %c128], %41 {strides = array<i32>} : memref<1x8x512xf32, #tpu.memory_space<vmem>>, vector<1x8x128xf32>,
    %43 = vector.extract_strided_slice %8 {offsets = [0, 0, 256], sizes = [1, 8, 128], strides = [1, 1, 1]} : vector<1x8x512xf32> to vector<1x8x128xf32>
    %44 = vector.extract_strided_slice %9 {offsets = [0, 0, 256], sizes = [1, 8, 128], strides = [1, 1, 1]} : vector<1x8x512xf32> to vector<1x8x128xf32>
    %45 = vector.extract_strided_slice %10 {offsets = [0, 0, 256], sizes = [1, 8, 128], strides = [1, 1, 1]} : vector<1x8x512xf32> to vector<1x8x128xf32>
    "tpu.trace_start"() <{level = 10 : i32, message = "bqd,bkd->bqk"}> : () -> ()
    %cst_19 = arith.constant dense<0.000000e+00> : vector<1x8x8xf32>
    %46 = tpu.matmul %43, %44, %cst_19 {dimension_numbers = #tpu.dot_dimension_numbers<[2], [2], [1], [1], [0, 0, 0, 1, 1, 1], [0], [0]>} : vector<1x8x128xf32>, vector<1x8x128xf32>, vector<1x8x8xf32> -> vector<1x8x8xf32>
    "tpu.trace_stop"() : () -> ()
    %cst_20 = arith.constant dense<0xFF800000> : vector<1x8xf32>
    %47 = vector.multi_reduction <maximumf>, %46, %cst_20 [2] : vector<1x8x8xf32> to vector<1x8xf32>
    %48 = vector.shape_cast %47 : vector<1x8xf32> to vector<1x8x1xf32>
    %49 = vector.broadcast %48 : vector<1x8x1xf32> to vector<1x8x8xf32>
    %50 = arith.subf %46, %49 : vector<1x8x8xf32>
    %51 = math.exp %50 : vector<1x8x8xf32>
    %cst_21 = arith.constant dense<0.000000e+00> : vector<1x8xf32>
    %52 = vector.multi_reduction <add>, %51, %cst_21 [2] : vector<1x8x8xf32> to vector<1x8xf32>
    %53 = vector.shape_cast %52 : vector<1x8xf32> to vector<1x8x1xf32>
    %54 = tpu.reciprocal %53 {approx = true} : vector<1x8x1xf32> -> vector<1x8x1xf32>
    "tpu.trace_start"() <{level = 10 : i32, message = "bqk,bkd->bqd"}> : () -> ()
    %cst_22 = arith.constant dense<0.000000e+00> : vector<1x8x128xf32>
    %55 = tpu.matmul %51, %45, %cst_22 {dimension_numbers = #tpu.dot_dimension_numbers<[2], [1], [1], [2], [0, 0, 0, 1, 1, 2], [0], [0]>} : vector<1x8x8xf32>, vector<1x8x128xf32>, vector<1x8x128xf32> -> vector<1x8x128xf32>
    "tpu.trace_stop"() : () -> ()
    %56 = vector.broadcast %54 : vector<1x8x1xf32> to vector<1x8x128xf32>
    %57 = arith.mulf %55, %56 : vector<1x8x128xf32>
    %c0_23 = arith.constant 0 : index
    %c0_24 = arith.constant 0 : index
    %c256 = arith.constant 256 : index
    %58 = vector.load %arg4[%c0_23, %c0_24, %c256] : memref<1x8x512xf32, #tpu.memory_space<vmem>>, vector<1x8x128xf32>
    tpu.vector_store %arg4[%c0_23, %c0_24, %c256], %57 {strides = array<i32>} : memref<1x8x512xf32, #tpu.memory_space<vmem>>, vector<1x8x128xf32>,
    %59 = vector.extract_strided_slice %8 {offsets = [0, 0, 384], sizes = [1, 8, 128], strides = [1, 1, 1]} : vector<1x8x512xf32> to vector<1x8x128xf32>
    %60 = vector.extract_strided_slice %9 {offsets = [0, 0, 384], sizes = [1, 8, 128], strides = [1, 1, 1]} : vector<1x8x512xf32> to vector<1x8x128xf32>
    %61 = vector.extract_strided_slice %10 {offsets = [0, 0, 384], sizes = [1, 8, 128], strides = [1, 1, 1]} : vector<1x8x512xf32> to vector<1x8x128xf32>
    "tpu.trace_start"() <{level = 10 : i32, message = "bqd,bkd->bqk"}> : () -> ()
    %cst_25 = arith.constant dense<0.000000e+00> : vector<1x8x8xf32>
    %62 = tpu.matmul %59, %60, %cst_25 {dimension_numbers = #tpu.dot_dimension_numbers<[2], [2], [1], [1], [0, 0, 0, 1, 1, 1], [0], [0]>} : vector<1x8x128xf32>, vector<1x8x128xf32>, vector<1x8x8xf32> -> vector<1x8x8xf32>
    "tpu.trace_stop"() : () -> ()
    %cst_26 = arith.constant dense<0xFF800000> : vector<1x8xf32>
    %63 = vector.multi_reduction <maximumf>, %62, %cst_26 [2] : vector<1x8x8xf32> to vector<1x8xf32>
    %64 = vector.shape_cast %63 : vector<1x8xf32> to vector<1x8x1xf32>
    %65 = vector.broadcast %64 : vector<1x8x1xf32> to vector<1x8x8xf32>
    %66 = arith.subf %62, %65 : vector<1x8x8xf32>
    %67 = math.exp %66 : vector<1x8x8xf32>
    %cst_27 = arith.constant dense<0.000000e+00> : vector<1x8xf32>
    %68 = vector.multi_reduction <add>, %67, %cst_27 [2] : vector<1x8x8xf32> to vector<1x8xf32>
    %69 = vector.shape_cast %68 : vector<1x8xf32> to vector<1x8x1xf32>
    %70 = tpu.reciprocal %69 {approx = true} : vector<1x8x1xf32> -> vector<1x8x1xf32>
    "tpu.trace_start"() <{level = 10 : i32, message = "bqk,bkd->bqd"}> : () -> ()
    %cst_28 = arith.constant dense<0.000000e+00> : vector<1x8x128xf32>
    %71 = tpu.matmul %67, %61, %cst_28 {dimension_numbers = #tpu.dot_dimension_numbers<[2], [1], [1], [2], [0, 0, 0, 1, 1, 2], [0], [0]>} : vector<1x8x8xf32>, vector<1x8x128xf32>, vector<1x8x128xf32> -> vector<1x8x128xf32>
    "tpu.trace_stop"() : () -> ()
    %72 = vector.broadcast %70 : vector<1x8x1xf32> to vector<1x8x128xf32>
    %73 = arith.mulf %71, %72 : vector<1x8x128xf32>
    %c0_29 = arith.constant 0 : index
    %c0_30 = arith.constant 0 : index
    %c384 = arith.constant 384 : index
    %74 = vector.load %arg4[%c0_29, %c0_30, %c384] : memref<1x8x512xf32, #tpu.memory_space<vmem>>, vector<1x8x128xf32>
    tpu.vector_store %arg4[%c0_29, %c0_30, %c384], %73 {strides = array<i32>} : memref<1x8x512xf32, #tpu.memory_space<vmem>>, vector<1x8x128xf32>,
    return
  }
  func.func @transform_0(%arg0: i32) -> (i32, i32, i32) {
    %c0_i32 = arith.constant 0 : i32
    %c0_i32_0 = arith.constant 0 : i32
    %c0_i32_1 = arith.constant 0 : i32
    return %arg0, %c0_i32, %c0_i32_0 : i32, i32, i32
  }
  func.func @transform_1(%arg0: i32) -> (i32, i32) {
    %c0_i32 = arith.constant 0 : i32
    %c0_i32_0 = arith.constant 0 : i32
    %c0_i32_1 = arith.constant 0 : i32
    return %c0_i32, %c0_i32_0 : i32, i32
  }
  func.func @transform_2(%arg0: i32) -> (i32, i32) {
    %c0_i32 = arith.constant 0 : i32
    %c0_i32_0 = arith.constant 0 : i32
    %c0_i32_1 = arith.constant 0 : i32
    return %c0_i32, %c0_i32_0 : i32, i32
  }
  func.func @transform_3(%arg0: i32) -> (i32, i32, i32) {
    %c0_i32 = arith.constant 0 : i32
    %c0_i32_0 = arith.constant 0 : i32
    %c0_i32_1 = arith.constant 0 : i32
    return %arg0, %c0_i32, %c0_i32_0 : i32, i32, i32
  }
}

</mosaic_0001>

<llo_original>
// kernel: tpu_custom_call.1
$region0: #{tpu_custom_call.1}
  #allocation0 [shape = 'u32[]', space=smem, size = 0x4, offset = 0x4, fixed_abs, tag = 'smem constant byte address 0x4 - core index']
  #allocation1 [shape = 'u32[144,128]{1,0:T(1,128)}', space=vmem, size = 0x12000, scoped, tag = 'internal scratch']
  %s0 = inlined_call_operand.hbm [shape: f32[2,8,128], index: 0, kind: input, shape index: {}]
  %s1 = inlined_call_operand.hbm [shape: f32[128,1536], index: 1, kind: input, shape index: {}]
  %s2 = inlined_call_operand.hbm [shape: f32[1,1536], index: 2, kind: input, shape index: {}]
  %s3 = inlined_call_operand.hbm [shape: f32[2,8,512], index: 3, kind: output, shape index: {}]
  %s4 = sld [smem:[#allocation0]]
  $region57: #{tpu_custom_call.1} parent=0
    _
  %s6 = ssub.s32 1, %s4
  %s7 = scalar_select 0, %s6, %s4
  $region1: #{tpu_custom_call.1} parent=0
    #allocation2 [shape = 'u8[8192]{0}', space=vmem, size = 0x2000, scoped, tag = 'input window, operand 0']
    #allocation3 [shape = 's32[2]{0}', space=sflag, size = 0x8, scoped, tag = 'scoped memory for tpu_custom_call.1']
    #allocation4 [shape = 's32[2]{0}', space=sflag, size = 0x8, scoped, tag = 'scoped memory for tpu_custom_call.1']
    #allocation5 [shape = 'u8[786432]{0}', space=vmem, size = 0xc0000, scoped, tag = 'input window, operand 1, single buffered']
    #allocation6 [shape = 's32[1]{0}', space=sflag, size = 0x4, scoped, tag = 'scoped memory for tpu_custom_call.1']
    #allocation7 [shape = 'u8[6144]{0}', space=vmem, size = 0x1800, scoped, tag = 'input window, operand 2, single buffered']
    #allocation8 [shape = 'u8[32768]{0}', space=vmem, size = 0x8000, scoped, tag = 'output window, operand 0']
    %8 = vsyncpa [#allocation3], 0
    %s9 = scalar_lea.sflag [#allocation3], 1
    %10 = vsyncpa %s9, 0
    %11 = vsyncpa [#allocation6], 0
    %12 = vsyncpa [#allocation4], 0
    %s13 = scalar_lea.sflag [#allocation4], 1
    %14 = vsyncpa %s13, 0
    loop: start=0, step=1, limit=4
    $region2: #{tpu_custom_call.1} parent=1 // loop_pre_header
      _
    $region3: #{tpu_custom_call.1} parent=1 // loop_header
      %s16 = sphi 0, %s20
      %p17 = scmp.ge.s32.totalorder %s16, 4
      %s26 = sphi 0, %s28
      %s29 = sphi 0, %s26
      %s30 = sphi 0, %s29
      %s46 = sphi 0, %s30
      %s50 = sphi 0, %s50
      %s52 = sphi 0, %s50
      %s53 = sphi 0, %s52
      %s67 = sphi 0, %s53
      %s71 = sphi 0, %s71
      %s73 = sphi 0, %s71
      %s74 = sphi 0, %s73
      %s88 = sphi 0, %s74
      %s94 = sphi 0, %s96
      %s97 = sphi 0, %s94
      %s98 = sphi 0, %s97
      %s114 = sphi 0, %s98
    $region4: #{tpu_custom_call.1} parent=1 // loop_header_branch
      %19 = sbr.rel (%p17) target = $region8
    $region5: #{tpu_custom_call.1} parent=1 // loop_body
      %s21 = ssub.s32 %s16, 1
      %s22 = ssub.s32 %s16, 2
      %s23 = sadd.s32 %s16, 1
      %s24 = ssub.s32 %s16, %s23
      %p25 = scmp.eq.s32.totalorder %s24, 0
      %s27 = sadd.s32 %s26, 1
      %s28 = scalar_select %p25, %s26, %s27
      %p31 = pneg %p25
      %p32 = scmp.eq.s32.totalorder %s16, 1
      %p33 = por %p31, %p32
      %p34 = scmp.ne.s32.totalorder %s26, %s29
      %p35 = scmp.eq.s32.totalorder %s16, 0
      %p36 = por %p34, %p35
      %p37 = scmp.ne.s32.totalorder %s26, %s29
      %p38 = scmp.eq.s32.totalorder %s21, 1
      %p39 = por %p37, %p38
      %p40 = scmp.ne.s32.totalorder %s29, %s30
      %p41 = scmp.eq.s32.totalorder %s21, 0
      %p42 = por %p40, %p41
      %p43 = scmp.ne.s32.totalorder %s29, %s30
      %p44 = scmp.eq.s32.totalorder %s22, 1
      %p45 = por %p43, %p44
      %p47 = scmp.ne.s32.totalorder %s30, %s46
      %p48 = scmp.eq.s32.totalorder %s22, 0
      %p49 = por %p47, %p48
      %s51 = sadd.s32 %s50, 1
      %p54 = scmp.eq.s32.totalorder %s16, 1
      %p55 = scmp.ne.s32.totalorder %s50, %s52
      %p56 = scmp.eq.s32.totalorder %s16, 0
      %p57 = por %p55, %p56
      %p58 = scmp.ne.s32.totalorder %s50, %s52
      %p59 = scmp.eq.s32.totalorder %s21, 1
      %p60 = por %p58, %p59
      %p61 = scmp.ne.s32.totalorder %s52, %s53
      %p62 = scmp.eq.s32.totalorder %s21, 0
      %p63 = por %p61, %p62
      %p64 = scmp.ne.s32.totalorder %s52, %s53
      %p65 = scmp.eq.s32.totalorder %s22, 1
      %p66 = por %p64, %p65
      %p68 = scmp.ne.s32.totalorder %s53, %s67
      %p69 = scmp.eq.s32.totalorder %s22, 0
      %p70 = por %p68, %p69
      %s72 = sadd.s32 %s71, 1
      %p75 = scmp.eq.s32.totalorder %s16, 1
      %p76 = scmp.ne.s32.totalorder %s71, %s73
      %p77 = scmp.eq.s32.totalorder %s16, 0
      %p78 = por %p76, %p77
      %p79 = scmp.ne.s32.totalorder %s71, %s73
      %p80 = scmp.eq.s32.totalorder %s21, 1
      %p81 = por %p79, %p80
      %p82 = scmp.ne.s32.totalorder %s73, %s74
      %p83 = scmp.eq.s32.totalorder %s21, 0
      %p84 = por %p82, %p83
      %p85 = scmp.ne.s32.totalorder %s73, %s74
      %p86 = scmp.eq.s32.totalorder %s22, 1
      %p87 = por %p85, %p86
      %p89 = scmp.ne.s32.totalorder %s74, %s88
      %p90 = scmp.eq.s32.totalorder %s22, 0
      %p91 = por %p89, %p90
      %s92 = ssub.s32 %s16, %s23
      %p93 = scmp.eq.s32.totalorder %s92, 0
      %s95 = sadd.s32 %s94, 1
      %s96 = scalar_select %p93, %s94, %s95
      %p99 = pneg %p93
      %p100 = scmp.eq.s32.totalorder %s16, 1
      %p101 = por %p99, %p100
      %p102 = scmp.ne.s32.totalorder %s94, %s97
      %p103 = scmp.eq.s32.totalorder %s16, 0
      %p104 = por %p102, %p103
      %p105 = scmp.ne.s32.totalorder %s94, %s97
      %p106 = scmp.eq.s32.totalorder %s21, 1
      %p107 = por %p105, %p106
      %p108 = scmp.ne.s32.totalorder %s97, %s98
      %p109 = scmp.eq.s32.totalorder %s21, 0
      %p110 = por %p108, %p109
      %p111 = scmp.ne.s32.totalorder %s97, %s98
      %p112 = scmp.eq.s32.totalorder %s22, 1
      %p113 = por %p111, %p112
      %p115 = scmp.ne.s32.totalorder %s98, %s114
      %p116 = scmp.eq.s32.totalorder %s22, 0
      %p117 = por %p115, %p116
      %p118 = scmp.le.s32.totalorder 1, %s16
      %p119 = scmp.lt.s32.totalorder %s16, 3
      %p120 = pnand %p118, %p119
      %p121 = pneg %p120
      // Predicated region
      $region9: #{tpu_custom_call.1} parent=5 // pred_check
        _
      $region10: #{tpu_custom_call.1} parent=5 // pred_check_branch
        %123 = sbr.rel (%p120) target = $region12
      $region11: #{tpu_custom_call.1} parent=5 // pred_region
        %s124 = ssub.s32 %s16, 1
        // Predicated region
        $region13: #{tpu_custom_call.1} parent=11 // pred_check
          %p125 = pneg %p63
        $region14: #{tpu_custom_call.1} parent=11 // pred_check_branch
          %127 = sbr.rel (%p125) target = $region16
        $region15: #{tpu_custom_call.1} parent=11 // pred_region
          %s129 = ssub.s32 24576, 24576
          %130 = vsyncadd [#allocation6], %s129
          %s131 = sshll.u32 [#allocation5], 4
          %s132 = int_to_ptr.vmem [resolvable:$true] %s131
          %137 = dma.hbm_to_vmem [thread:$0]  %s1, 24576, %s132, [#allocation6], 1536, 1536, 96
        $region16: #{tpu_custom_call.1} parent=11 // pred_fallthru
          _
        // Predicated region
        $region17: #{tpu_custom_call.1} parent=11 // pred_check
          %p138 = pneg %p84
        $region18: #{tpu_custom_call.1} parent=11 // pred_check_branch
          %140 = sbr.rel (%p138) target = $region20
        $region19: #{tpu_custom_call.1} parent=11 // pred_region
          %s142 = ssub.s32 192, 192
          %143 = vsyncadd [#allocation6], %s142
          %s145 = sshll.u32 [#allocation7], 4
          %s146 = int_to_ptr.vmem [resolvable:$true] %s145
          %148 = dma.hbm_to_vmem [thread:$0]  %s2, 192, %s146, [#allocation6]
        $region20: #{tpu_custom_call.1} parent=11 // pred_fallthru
          _
      $region12: #{tpu_custom_call.1} parent=5 // pred_fallthru
        _
      %p149 = scmp.lt.s32.totalorder %s16, 2
      // Predicated region
      $region21: #{tpu_custom_call.1} parent=5 // pred_check
        %p150 = pneg %p149
      $region22: #{tpu_custom_call.1} parent=5 // pred_check_branch
        %152 = sbr.rel (%p150) target = $region24
      $region23: #{tpu_custom_call.1} parent=5 // pred_region
        // Predicated region
        $region25: #{tpu_custom_call.1} parent=23 // pred_check
          %p153 = pneg %p36
        $region26: #{tpu_custom_call.1} parent=23 // pred_check_branch
          %155 = sbr.rel (%p153) target = $region28
        $region27: #{tpu_custom_call.1} parent=23 // pred_region
          %s156 = sand.u32 %s26, 1
          %s157 = scalar_lea.sflag [#allocation3], %s156
          %s158 = sand.u32 %s26, 1
          %s159 = smul.addr %s158, 8
          %s160 = scalar_lea.vmem [#allocation2], %s159
          %s162 = ssub.s32 128, 128
          %163 = vsyncadd %s157, %s162
          %s164 = smul.addr %s16, 128
          %s165 = scalar_lea.hbm %s0, %s164
          %s167 = sshll.u32 %s160, 4
          %s168 = int_to_ptr.vmem [resolvable:$true] %s167
          %170 = dma.hbm_to_vmem [thread:$0]  %s165, 128, %s168, %s157
        $region28: #{tpu_custom_call.1} parent=23 // pred_fallthru
          _
      $region24: #{tpu_custom_call.1} parent=5 // pred_fallthru
        _
      %p171 = scmp.le.s32.totalorder 1, %s16
      %p172 = scmp.lt.s32.totalorder %s16, 3
      %p173 = pnand %p171, %p172
      %p174 = pneg %p173
      // Predicated region
      $region29: #{tpu_custom_call.1} parent=5 // pred_check
        _
      $region30: #{tpu_custom_call.1} parent=5 // pred_check_branch
        %176 = sbr.rel (%p173) target = $region32
      $region31: #{tpu_custom_call.1} parent=5 // pred_region
        %s177 = ssub.s32 %s16, 1
        %s178 = sand.u32 %s29, 1
        %s179 = scalar_lea.sflag [#allocation3], %s178
        %s180 = sand.u32 %s29, 1
        %s181 = smul.addr %s180, 8
        %s182 = scalar_lea.vmem [#allocation2], %s181
        // Predicated region
        $region33: #{tpu_custom_call.1} parent=31 // pred_check
          %p183 = pneg %p42
        $region34: #{tpu_custom_call.1} parent=31 // pred_check_branch
          %185 = sbr.rel (%p183) target = $region36
        $region35: #{tpu_custom_call.1} parent=31 // pred_region
          %186 = dma.done %s179, 128
        $region36: #{tpu_custom_call.1} parent=31 // pred_fallthru
          _
        // Predicated region
        $region37: #{tpu_custom_call.1} parent=31 // pred_check
          %p187 = pneg %p63
        $region38: #{tpu_custom_call.1} parent=31 // pred_check_branch
          %189 = sbr.rel (%p187) target = $region40
        $region39: #{tpu_custom_call.1} parent=31 // pred_region
          %190 = dma.done [#allocation6], 24576
        $region40: #{tpu_custom_call.1} parent=31 // pred_fallthru
          _
        // Predicated region
        $region41: #{tpu_custom_call.1} parent=31 // pred_check
          %p191 = pneg %p84
        $region42: #{tpu_custom_call.1} parent=31 // pred_check_branch
          %193 = sbr.rel (%p191) target = $region44
        $region43: #{tpu_custom_call.1} parent=31 // pred_region
          %194 = dma.done [#allocation6], 192
        $region44: #{tpu_custom_call.1} parent=31 // pred_fallthru
          _
        %s195 = sand.u32 %s29, 1
        %s196 = scalar_lea.sflag [#allocation3], %s195
        %s197 = sand.u32 %s29, 1
        %s198 = smul.addr %s197, 8
        %s199 = scalar_lea.vmem [#allocation2], %s198
        %p200 = pneg %p42
        %p201 = pneg %p39
        %p202 = pneg %p63
        %p203 = pneg %p60
        %p204 = pneg %p84
        %p205 = pneg %p81
        %p206 = pneg %p110
        %p207 = pneg %p107
        %s208 = sand.u32 %s97, 1
        %s209 = scalar_lea.sflag [#allocation4], %s208
        %s210 = sand.u32 %s97, 1
        %s211 = smul.addr %s210, 32
        %s212 = scalar_lea.vmem [#allocation8], %s211
        %v213 = vld [vmem:[%s182] sm:$0xff]
        %v214 = vld [vmem:[#allocation5] sm:$0xff]
        %v215 = vld [vmem:[#allocation5 + $0x8] sm:$0xff]
        %v216 = vld [vmem:[#allocation5 + $0x10] sm:$0xff]
        %v217 = vld [vmem:[#allocation5 + $0x18] sm:$0xff]
        %v218 = vld [vmem:[#allocation5 + $0x20] sm:$0xff]
        %v219 = vld [vmem:[#allocation5 + $0x28] sm:$0xff]
        %v220 = vld [vmem:[#allocation5 + $0x30] sm:$0xff]
        %v221 = vld [vmem:[#allocation5 + $0x38] sm:$0xff]
        %v222 = vld [vmem:[#allocation5 + $0x40] sm:$0xff]
        %v223 = vld [vmem:[#allocation5 + $0x48] sm:$0xff]
        %v224 = vld [vmem:[#allocation5 + $0x50] sm:$0xff]
        %v225 = vld [vmem:[#allocation5 + $0x58] sm:$0xff]
        %v226 = vld [vmem:[#allocation5 + $0x60] sm:$0xff]
        %v227 = vld [vmem:[#allocation5 + $0x68] sm:$0xff]
        %v228 = vld [vmem:[#allocation5 + $0x70] sm:$0xff]
        %v229 = vld [vmem:[#allocation5 + $0x78] sm:$0xff]
        %v230 = vld [vmem:[#allocation5 + $0x80] sm:$0xff]
        %v231 = vld [vmem:[#allocation5 + $0x88] sm:$0xff]
        %v232 = vld [vmem:[#allocation5 + $0x90] sm:$0xff]
        %v233 = vld [vmem:[#allocation5 + $0x98] sm:$0xff]
        %v234 = vld [vmem:[#allocation5 + $0xa0] sm:$0xff]
        %v235 = vld [vmem:[#allocation5 + $0xa8] sm:$0xff]
        %v236 = vld [vmem:[#allocation5 + $0xb0] sm:$0xff]
        %v237 = vld [vmem:[#allocation5 + $0xb8] sm:$0xff]
        %v238 = vld [vmem:[#allocation5 + $0xc0] sm:$0xff]
        %v239 = vld [vmem:[#allocation5 + $0xc8] sm:$0xff]
        %v240 = vld [vmem:[#allocation5 + $0xd0] sm:$0xff]
        %v241 = vld [vmem:[#allocation5 + $0xd8] sm:$0xff]
        %v242 = vld [vmem:[#allocation5 + $0xe0] sm:$0xff]
        %v243 = vld [vmem:[#allocation5 + $0xe8] sm:$0xff]
        %v244 = vld [vmem:[#allocation5 + $0xf0] sm:$0xff]
        %v245 = vld [vmem:[#allocation5 + $0xf8] sm:$0xff]
        %v246 = vld [vmem:[#allocation5 + $0x100] sm:$0xff]
        %v247 = vld [vmem:[#allocation5 + $0x108] sm:$0xff]
        %v248 = vld [vmem:[#allocation5 + $0x110] sm:$0xff]
        %v249 = vld [vmem:[#allocation5 + $0x118] sm:$0xff]
        %v250 = vld [vmem:[#allocation5 + $0x120] sm:$0xff]
        %v251 = vld [vmem:[#allocation5 + $0x128] sm:$0xff]
        %v252 = vld [vmem:[#allocation5 + $0x130] sm:$0xff]
        %v253 = vld [vmem:[#allocation5 + $0x138] sm:$0xff]
        %v254 = vld [vmem:[#allocation5 + $0x140] sm:$0xff]
        %v255 = vld [vmem:[#allocation5 + $0x148] sm:$0xff]
        %v256 = vld [vmem:[#allocation5 + $0x150] sm:$0xff]
        %v257 = vld [vmem:[#allocation5 + $0x158] sm:$0xff]
        %v258 = vld [vmem:[#allocation5 + $0x160] sm:$0xff]
        %v259 = vld [vmem:[#allocation5 + $0x168] sm:$0xff]
        %v260 = vld [vmem:[#allocation5 + $0x170] sm:$0xff]
        %v261 = vld [vmem:[#allocation5 + $0x178] sm:$0xff]
        %v262 = vld [vmem:[#allocation5 + $0x180] sm:$0xff]
        %v263 = vld [vmem:[#allocation5 + $0x188] sm:$0xff]
        %v264 = vld [vmem:[#allocation5 + $0x190] sm:$0xff]
        %v265 = vld [vmem:[#allocation5 + $0x198] sm:$0xff]
        %v266 = vld [vmem:[#allocation5 + $0x1a0] sm:$0xff]
        %v267 = vld [vmem:[#allocation5 + $0x1a8] sm:$0xff]
        %v268 = vld [vmem:[#allocation5 + $0x1b0] sm:$0xff]
        %v269 = vld [vmem:[#allocation5 + $0x1b8] sm:$0xff]
        %v270 = vld [vmem:[#allocation5 + $0x1c0] sm:$0xff]
        %v271 = vld [vmem:[#allocation5 + $0x1c8] sm:$0xff]
        %v272 = vld [vmem:[#allocation5 + $0x1d0] sm:$0xff]
        %v273 = vld [vmem:[#allocation5 + $0x1d8] sm:$0xff]
        %v274 = vld [vmem:[#allocation5 + $0x1e0] sm:$0xff]
        %v275 = vld [vmem:[#allocation5 + $0x1e8] sm:$0xff]
        %v276 = vld [vmem:[#allocation5 + $0x1f0] sm:$0xff]
        %v277 = vld [vmem:[#allocation5 + $0x1f8] sm:$0xff]
        %v278 = vld [vmem:[#allocation5 + $0x200] sm:$0xff]
        %v279 = vld [vmem:[#allocation5 + $0x208] sm:$0xff]
        %v280 = vld [vmem:[#allocation5 + $0x210] sm:$0xff]
        %v281 = vld [vmem:[#allocation5 + $0x218] sm:$0xff]
        %v282 = vld [vmem:[#allocation5 + $0x220] sm:$0xff]
        %v283 = vld [vmem:[#allocation5 + $0x228] sm:$0xff]
        %v284 = vld [vmem:[#allocation5 + $0x230] sm:$0xff]
        %v285 = vld [vmem:[#allocation5 + $0x238] sm:$0xff]
        %v286 = vld [vmem:[#allocation5 + $0x240] sm:$0xff]
        %v287 = vld [vmem:[#allocation5 + $0x248] sm:$0xff]
        %v288 = vld [vmem:[#allocation5 + $0x250] sm:$0xff]
        %v289 = vld [vmem:[#allocation5 + $0x258] sm:$0xff]
        %v290 = vld [vmem:[#allocation5 + $0x260] sm:$0xff]
        %v291 = vld [vmem:[#allocation5 + $0x268] sm:$0xff]
        %v292 = vld [vmem:[#allocation5 + $0x270] sm:$0xff]
        %v293 = vld [vmem:[#allocation5 + $0x278] sm:$0xff]
        %v294 = vld [vmem:[#allocation5 + $0x280] sm:$0xff]
        %v295 = vld [vmem:[#allocation5 + $0x288] sm:$0xff]
        %v296 = vld [vmem:[#allocation5 + $0x290] sm:$0xff]
        %v297 = vld [vmem:[#allocation5 + $0x298] sm:$0xff]
        %v298 = vld [vmem:[#allocation5 + $0x2a0] sm:$0xff]
        %v299 = vld [vmem:[#allocation5 + $0x2a8] sm:$0xff]
        %v300 = vld [vmem:[#allocation5 + $0x2b0] sm:$0xff]
        %v301 = vld [vmem:[#allocation5 + $0x2b8] sm:$0xff]
        %v302 = vld [vmem:[#allocation5 + $0x2c0] sm:$0xff]
        %v303 = vld [vmem:[#allocation5 + $0x2c8] sm:$0xff]
        %v304 = vld [vmem:[#allocation5 + $0x2d0] sm:$0xff]
        %v305 = vld [vmem:[#allocation5 + $0x2d8] sm:$0xff]
        %v306 = vld [vmem:[#allocation5 + $0x2e0] sm:$0xff]
        %v307 = vld [vmem:[#allocation5 + $0x2e8] sm:$0xff]
        %v308 = vld [vmem:[#allocation5 + $0x2f0] sm:$0xff]
        %v309 = vld [vmem:[#allocation5 + $0x2f8] sm:$0xff]
        %v310 = vld [vmem:[#allocation5 + $0x300] sm:$0xff]
        %v311 = vld [vmem:[#allocation5 + $0x308] sm:$0xff]
        %v312 = vld [vmem:[#allocation5 + $0x310] sm:$0xff]
        %v313 = vld [vmem:[#allocation5 + $0x318] sm:$0xff]
        %v314 = vld [vmem:[#allocation5 + $0x320] sm:$0xff]
        %v315 = vld [vmem:[#allocation5 + $0x328] sm:$0xff]
        %v316 = vld [vmem:[#allocation5 + $0x330] sm:$0xff]
        %v317 = vld [vmem:[#allocation5 + $0x338] sm:$0xff]
        %v318 = vld [vmem:[#allocation5 + $0x340] sm:$0xff]
        %v319 = vld [vmem:[#allocation5 + $0x348] sm:$0xff]
        %v320 = vld [vmem:[#allocation5 + $0x350] sm:$0xff]
        %v321 = vld [vmem:[#allocation5 + $0x358] sm:$0xff]
        %v322 = vld [vmem:[#allocation5 + $0x360] sm:$0xff]
        %v323 = vld [vmem:[#allocation5 + $0x368] sm:$0xff]
        %v324 = vld [vmem:[#allocation5 + $0x370] sm:$0xff]
        %v325 = vld [vmem:[#allocation5 + $0x378] sm:$0xff]
        %v326 = vld [vmem:[#allocation5 + $0x380] sm:$0xff]
        %v327 = vld [vmem:[#allocation5 + $0x388] sm:$0xff]
        %v328 = vld [vmem:[#allocation5 + $0x390] sm:$0xff]
        %v329 = vld [vmem:[#allocation5 + $0x398] sm:$0xff]
        %v330 = vld [vmem:[#allocation5 + $0x3a0] sm:$0xff]
        %v331 = vld [vmem:[#allocation5 + $0x3a8] sm:$0xff]
        %v332 = vld [vmem:[#allocation5 + $0x3b0] sm:$0xff]
        %v333 = vld [vmem:[#allocation5 + $0x3b8] sm:$0xff]
        %v334 = vld [vmem:[#allocation5 + $0x3c0] sm:$0xff]
        %v335 = vld [vmem:[#allocation5 + $0x3c8] sm:$0xff]
        %v336 = vld [vmem:[#allocation5 + $0x3d0] sm:$0xff]
        %v337 = vld [vmem:[#allocation5 + $0x3d8] sm:$0xff]
        %v338 = vld [vmem:[#allocation5 + $0x3e0] sm:$0xff]
        %v339 = vld [vmem:[#allocation5 + $0x3e8] sm:$0xff]
        %v340 = vld [vmem:[#allocation5 + $0x3f0] sm:$0xff]
        %v341 = vld [vmem:[#allocation5 + $0x3f8] sm:$0xff]
        %v342 = vld [vmem:[#allocation5 + $0x400] sm:$0xff]
        %v343 = vld [vmem:[#allocation5 + $0x408] sm:$0xff]
        %v344 = vld [vmem:[#allocation5 + $0x410] sm:$0xff]
        %v345 = vld [vmem:[#allocation5 + $0x418] sm:$0xff]
        %v346 = vld [vmem:[#allocation5 + $0x420] sm:$0xff]
        %v347 = vld [vmem:[#allocation5 + $0x428] sm:$0xff]
        %v348 = vld [vmem:[#allocation5 + $0x430] sm:$0xff]
        %v349 = vld [vmem:[#allocation5 + $0x438] sm:$0xff]
        %v350 = vld [vmem:[#allocation5 + $0x440] sm:$0xff]
        %v351 = vld [vmem:[#allocation5 + $0x448] sm:$0xff]
        %v352 = vld [vmem:[#allocation5 + $0x450] sm:$0xff]
        %v353 = vld [vmem:[#allocation5 + $0x458] sm:$0xff]
        %v354 = vld [vmem:[#allocation5 + $0x460] sm:$0xff]
        %v355 = vld [vmem:[#allocation5 + $0x468] sm:$0xff]
        %v356 = vld [vmem:[#allocation5 + $0x470] sm:$0xff]
        %v357 = vld [vmem:[#allocation5 + $0x478] sm:$0xff]
        %v358 = vld [vmem:[#allocation5 + $0x480] sm:$0xff]
        %v359 = vld [vmem:[#allocation5 + $0x488] sm:$0xff]
        %v360 = vld [vmem:[#allocation5 + $0x490] sm:$0xff]
        %v361 = vld [vmem:[#allocation5 + $0x498] sm:$0xff]
        %v362 = vld [vmem:[#allocation5 + $0x4a0] sm:$0xff]
        %v363 = vld [vmem:[#allocation5 + $0x4a8] sm:$0xff]
        %v364 = vld [vmem:[#allocation5 + $0x4b0] sm:$0xff]
        %v365 = vld [vmem:[#allocation5 + $0x4b8] sm:$0xff]
        %v366 = vld [vmem:[#allocation5 + $0x4c0] sm:$0xff]
        %v367 = vld [vmem:[#allocation5 + $0x4c8] sm:$0xff]
        %v368 = vld [vmem:[#allocation5 + $0x4d0] sm:$0xff]
        %v369 = vld [vmem:[#allocation5 + $0x4d8] sm:$0xff]
        %v370 = vld [vmem:[#allocation5 + $0x4e0] sm:$0xff]
        %v371 = vld [vmem:[#allocation5 + $0x4e8] sm:$0xff]
        %v372 = vld [vmem:[#allocation5 + $0x4f0] sm:$0xff]
        %v373 = vld [vmem:[#allocation5 + $0x4f8] sm:$0xff]
        %v374 = vld [vmem:[#allocation5 + $0x500] sm:$0xff]
        %v375 = vld [vmem:[#allocation5 + $0x508] sm:$0xff]
        %v376 = vld [vmem:[#allocation5 + $0x510] sm:$0xff]
        %v377 = vld [vmem:[#allocation5 + $0x518] sm:$0xff]
        %v378 = vld [vmem:[#allocation5 + $0x520] sm:$0xff]
        %v379 = vld [vmem:[#allocation5 + $0x528] sm:$0xff]
        %v380 = vld [vmem:[#allocation5 + $0x530] sm:$0xff]
        %v381 = vld [vmem:[#allocation5 + $0x538] sm:$0xff]
        %v382 = vld [vmem:[#allocation5 + $0x540] sm:$0xff]
        %v383 = vld [vmem:[#allocation5 + $0x548] sm:$0xff]
        %v384 = vld [vmem:[#allocation5 + $0x550] sm:$0xff]
        %v385 = vld [vmem:[#allocation5 + $0x558] sm:$0xff]
        %v386 = vld [vmem:[#allocation5 + $0x560] sm:$0xff]
        %v387 = vld [vmem:[#allocation5 + $0x568] sm:$0xff]
        %v388 = vld [vmem:[#allocation5 + $0x570] sm:$0xff]
        %v389 = vld [vmem:[#allocation5 + $0x578] sm:$0xff]
        %v390 = vld [vmem:[#allocation5 + $0x580] sm:$0xff]
        %v391 = vld [vmem:[#allocation5 + $0x588] sm:$0xff]
        %v392 = vld [vmem:[#allocation5 + $0x590] sm:$0xff]
        %v393 = vld [vmem:[#allocation5 + $0x598] sm:$0xff]
        %v394 = vld [vmem:[#allocation5 + $0x5a0] sm:$0xff]
        %v395 = vld [vmem:[#allocation5 + $0x5a8] sm:$0xff]
        %v396 = vld [vmem:[#allocation5 + $0x5b0] sm:$0xff]
        %v397 = vld [vmem:[#allocation5 + $0x5b8] sm:$0xff]
        %v398 = vld [vmem:[#allocation5 + $0x5c0] sm:$0xff]
        %v399 = vld [vmem:[#allocation5 + $0x5c8] sm:$0xff]
        %v400 = vld [vmem:[#allocation5 + $0x5d0] sm:$0xff]
        %v401 = vld [vmem:[#allocation5 + $0x5d8] sm:$0xff]
        %v402 = vld [vmem:[#allocation5 + $0x5e0] sm:$0xff]
        %v403 = vld [vmem:[#allocation5 + $0x5e8] sm:$0xff]
        %v404 = vld [vmem:[#allocation5 + $0x5f0] sm:$0xff]
        %v405 = vld [vmem:[#allocation5 + $0x5f8] sm:$0xff]
        %v406 = vld [vmem:[#allocation7] sm:$0xff]
        %v407 = vld [vmem:[#allocation7 + $0x8] sm:$0xf]
        %v410 = vlaneseq
        %v411 = vshrl.u32 %v410, 7
        %v412 = vsub.s32 0, %v411
        %v413 = vrot.slane %v406, %v412
        %v414 = vlaneseq
        %v415 = vshrl.u32 %v414, 7
        %v416 = vsub.s32 1, %v415
        %v417 = vrot.slane %v406, %v416
        %v418 = vlaneseq
        %v419 = vshrl.u32 %v418, 7
        %v420 = vsub.s32 2, %v419
        %v421 = vrot.slane %v406, %v420
        %v422 = vlaneseq
        %v423 = vshrl.u32 %v422, 7
        %v424 = vsub.s32 3, %v423
        %v425 = vrot.slane %v406, %v424
        %v426 = vlaneseq
        %v427 = vshrl.u32 %v426, 7
        %v428 = vsub.s32 4, %v427
        %v429 = vrot.slane %v406, %v428
        %v430 = vlaneseq
        %v431 = vshrl.u32 %v430, 7
        %v432 = vsub.s32 5, %v431
        %v433 = vrot.slane %v406, %v432
        %v434 = vlaneseq
        %v435 = vshrl.u32 %v434, 7
        %v436 = vsub.s32 6, %v435
        %v437 = vrot.slane %v406, %v436
        %v438 = vlaneseq
        %v439 = vshrl.u32 %v438, 7
        %v440 = vsub.s32 7, %v439
        %v441 = vrot.slane %v406, %v440
        %v442 = vlaneseq
        %v443 = vshrl.u32 %v442, 7
        %v444 = vsub.s32 0, %v443
        %v445 = vrot.slane %v407, %v444
        %v446 = vlaneseq
        %v447 = vshrl.u32 %v446, 7
        %v448 = vsub.s32 1, %v447
        %v449 = vrot.slane %v407, %v448
        %v450 = vlaneseq
        %v451 = vshrl.u32 %v450, 7
        %v452 = vsub.s32 2, %v451
        %v453 = vrot.slane %v407, %v452
        %v454 = vlaneseq
        %v455 = vshrl.u32 %v454, 7
        %v456 = vsub.s32 3, %v455
        %v457 = vrot.slane %v407, %v456
        %470 = vmatprep.subr.mxu0 %v395
        %471 = vmatpush1.msra.mxu0 %v394
        %472 = vmatprep.subr.mxu0 %v383
        %473 = vmatpush1.msra.mxu0 %v382
        %474 = vmatprep.subr.mxu0 %v371
        %475 = vmatpush1.msra.mxu0 %v370
        %476 = vmatprep.subr.mxu0 %v359
        %477 = vmatpush1.msra.mxu0 %v358
        %478 = vmatprep.subr.mxu0 %v347
        %479 = vmatpush1.msra.mxu0 %v346
        %480 = vmatprep.subr.mxu0 %v335
        %481 = vmatpush1.msra.mxu0 %v334
        %482 = vmatprep.subr.mxu0 %v323
        %483 = vmatpush1.msra.mxu0 %v322
        %484 = vmatprep.subr.mxu0 %v311
        %485 = vmatpush1.msra.mxu0 %v310
        %486 = vmatprep.subr.mxu0 %v299
        %487 = vmatpush1.msra.mxu0 %v298
        %488 = vmatprep.subr.mxu0 %v287
        %489 = vmatpush1.msra.mxu0 %v286
        %490 = vmatprep.subr.mxu0 %v275
        %491 = vmatpush1.msra.mxu0 %v274
        %492 = vmatprep.subr.mxu0 %v263
        %493 = vmatpush1.msra.mxu0 %v262
        %494 = vmatprep.subr.mxu0 %v251
        %495 = vmatpush1.msra.mxu0 %v250
        %496 = vmatprep.subr.mxu0 %v239
        %497 = vmatpush1.msra.mxu0 %v238
        %498 = vmatprep.subr.mxu0 %v227
        %499 = vmatpush1.msra.mxu0 %v226
        %500 = vmatprep.subr.mxu0 %v215
        %501 = vmatpush1.msra.mxu0 %v214
        %502 = vmatprep.subr.mxu0 0.0
        %503 = vmatpush2.msra.mxu0 0.0
        %504 = vmatprep.subr.mxu0 0.0
        %505 = vmatpush2.msra.mxu0 0.0
        %506 = vmatprep.subr.mxu0 0.0
        %507 = vmatpush2.msra.mxu0 0.0
        %508 = vmatprep.subr.mxu0 0.0
        %509 = vmatpush2.msra.mxu0 0.0
        %510 = vmatprep.subr.mxu0 0.0
        %511 = vmatpush2.msra.mxu0 0.0
        %512 = vmatprep.subr.mxu0 0.0
        %513 = vmatpush2.msra.mxu0 0.0
        %514 = vmatprep.subr.mxu0 0.0
        %515 = vmatpush2.msra.mxu0 0.0
        %516 = vmatprep.subr.mxu0 0.0
        %517 = vmatpush2.msra.mxu0 0.0
        %518 = vmatprep.subr.mxu0 0.0
        %519 = vmatpush2.msra.mxu0 0.0
        %520 = vmatprep.subr.mxu0 0.0
        %521 = vmatpush2.msra.mxu0 0.0
        %522 = vmatprep.subr.mxu0 0.0
        %523 = vmatpush2.msra.mxu0 0.0
        %524 = vmatprep.subr.mxu0 0.0
        %525 = vmatpush2.msra.mxu0 0.0
        %526 = vmatprep.subr.mxu0 0.0
        %527 = vmatpush2.msra.mxu0 0.0
        %528 = vmatprep.subr.mxu0 0.0
        %529 = vmatpush2.msra.mxu0 0.0
        %530 = vmatprep.subr.mxu0 0.0
        %531 = vmatpush2.msra.mxu0 0.0
        %532 = vmatprep.subr.mxu0 0.0
        %533 = vmatpush2.msra.mxu0 0.0
        %534 = vmatprep.mubr.f32.mxu0 0.0
        %535 = vmatmul.mubr.f32.gmra.mxu0 %v213
        %v536 = vpop.f32.mrf.mxu0
        %v537 = vadd.f32 %v413, %v536
        %v538 = vpop.f32.mrf.mxu0
        %v539 = vadd.f32 %v417, %v538
        %540 = vdwg.mxu0
        %541 = vmatprep.subr.mxu0 %v397
        %542 = vmatpush1.msra.mxu0 %v396
        %543 = vmatprep.subr.mxu0 %v385
        %544 = vmatpush1.msra.mxu0 %v384
        %545 = vmatprep.subr.mxu0 %v373
        %546 = vmatpush1.msra.mxu0 %v372
        %547 = vmatprep.subr.mxu0 %v361
        %548 = vmatpush1.msra.mxu0 %v360
        %549 = vmatprep.subr.mxu0 %v349
        %550 = vmatpush1.msra.mxu0 %v348
        %551 = vmatprep.subr.mxu0 %v337
        %552 = vmatpush1.msra.mxu0 %v336
        %553 = vmatprep.subr.mxu0 %v325
        %554 = vmatpush1.msra.mxu0 %v324
        %555 = vmatprep.subr.mxu0 %v313
        %556 = vmatpush1.msra.mxu0 %v312
        %557 = vmatprep.subr.mxu0 %v301
        %558 = vmatpush1.msra.mxu0 %v300
        %559 = vmatprep.subr.mxu0 %v289
        %560 = vmatpush1.msra.mxu0 %v288
        %561 = vmatprep.subr.mxu0 %v277
        %562 = vmatpush1.msra.mxu0 %v276
        %563 = vmatprep.subr.mxu0 %v265
        %564 = vmatpush1.msra.mxu0 %v264
        %565 = vmatprep.subr.mxu0 %v253
        %566 = vmatpush1.msra.mxu0 %v252
        %567 = vmatprep.subr.mxu0 %v241
        %568 = vmatpush1.msra.mxu0 %v240
        %569 = vmatprep.subr.mxu0 %v229
        %570 = vmatpush1.msra.mxu0 %v228
        %571 = vmatprep.subr.mxu0 %v217
        %572 = vmatpush1.msra.mxu0 %v216
        %573 = vmatprep.subr.mxu0 0.0
        %574 = vmatpush2.msra.mxu0 0.0
        %575 = vmatprep.subr.mxu0 0.0
        %576 = vmatpush2.msra.mxu0 0.0
        %577 = vmatprep.subr.mxu0 0.0
        %578 = vmatpush2.msra.mxu0 0.0
        %579 = vmatprep.subr.mxu0 0.0
        %580 = vmatpush2.msra.mxu0 0.0
        %581 = vmatprep.subr.mxu0 0.0
        %582 = vmatpush2.msra.mxu0 0.0
        %583 = vmatprep.subr.mxu0 0.0
        %584 = vmatpush2.msra.mxu0 0.0
        %585 = vmatprep.subr.mxu0 0.0
        %586 = vmatpush2.msra.mxu0 0.0
        %587 = vmatprep.subr.mxu0 0.0
        %588 = vmatpush2.msra.mxu0 0.0
        %589 = vmatprep.subr.mxu0 0.0
        %590 = vmatpush2.msra.mxu0 0.0
        %591 = vmatprep.subr.mxu0 0.0
        %592 = vmatpush2.msra.mxu0 0.0
        %593 = vmatprep.subr.mxu0 0.0
        %594 = vmatpush2.msra.mxu0 0.0
        %595 = vmatprep.subr.mxu0 0.0
        %596 = vmatpush2.msra.mxu0 0.0
        %597 = vmatprep.subr.mxu0 0.0
        %598 = vmatpush2.msra.mxu0 0.0
        %599 = vmatprep.subr.mxu0 0.0
        %600 = vmatpush2.msra.mxu0 0.0
        %601 = vmatprep.subr.mxu0 0.0
        %602 = vmatpush2.msra.mxu0 0.0
        %603 = vmatprep.subr.mxu0 0.0
        %604 = vmatpush2.msra.mxu0 0.0
        %605 = vmatprep.mubr.f32.mxu0 0.0
        %606 = vmatmul.mubr.f32.gmra.mxu0 %v213
        %v607 = vpop.f32.mrf.mxu0
        %v608 = vadd.f32 %v421, %v607
        %v609 = vpop.f32.mrf.mxu0
        %v610 = vadd.f32 %v425, %v609
        %611 = vdwg.mxu0
        %612 = vmatprep.subr.mxu0 %v399
        %613 = vmatpush1.msra.mxu0 %v398
        %614 = vmatprep.subr.mxu0 %v387
        %615 = vmatpush1.msra.mxu0 %v386
        %616 = vmatprep.subr.mxu0 %v375
        %617 = vmatpush1.msra.mxu0 %v374
        %618 = vmatprep.subr.mxu0 %v363
        %619 = vmatpush1.msra.mxu0 %v362
        %620 = vmatprep.subr.mxu0 %v351
        %621 = vmatpush1.msra.mxu0 %v350
        %622 = vmatprep.subr.mxu0 %v339
        %623 = vmatpush1.msra.mxu0 %v338
        %624 = vmatprep.subr.mxu0 %v327
        %625 = vmatpush1.msra.mxu0 %v326
        %626 = vmatprep.subr.mxu0 %v315
        %627 = vmatpush1.msra.mxu0 %v314
        %628 = vmatprep.subr.mxu0 %v303
        %629 = vmatpush1.msra.mxu0 %v302
        %630 = vmatprep.subr.mxu0 %v291
        %631 = vmatpush1.msra.mxu0 %v290
        %632 = vmatprep.subr.mxu0 %v279
        %633 = vmatpush1.msra.mxu0 %v278
        %634 = vmatprep.subr.mxu0 %v267
        %635 = vmatpush1.msra.mxu0 %v266
        %636 = vmatprep.subr.mxu0 %v255
        %637 = vmatpush1.msra.mxu0 %v254
        %638 = vmatprep.subr.mxu0 %v243
        %639 = vmatpush1.msra.mxu0 %v242
        %640 = vmatprep.subr.mxu0 %v231
        %641 = vmatpush1.msra.mxu0 %v230
        %642 = vmatprep.subr.mxu0 %v219
        %643 = vmatpush1.msra.mxu0 %v218
        %644 = vmatprep.subr.mxu0 0.0
        %645 = vmatpush2.msra.mxu0 0.0
        %646 = vmatprep.subr.mxu0 0.0
        %647 = vmatpush2.msra.mxu0 0.0
        %648 = vmatprep.subr.mxu0 0.0
        %649 = vmatpush2.msra.mxu0 0.0
        %650 = vmatprep.subr.mxu0 0.0
        %651 = vmatpush2.msra.mxu0 0.0
        %652 = vmatprep.subr.mxu0 0.0
        %653 = vmatpush2.msra.mxu0 0.0
        %654 = vmatprep.subr.mxu0 0.0
        %655 = vmatpush2.msra.mxu0 0.0
        %656 = vmatprep.subr.mxu0 0.0
        %657 = vmatpush2.msra.mxu0 0.0
        %658 = vmatprep.subr.mxu0 0.0
        %659 = vmatpush2.msra.mxu0 0.0
        %660 = vmatprep.subr.mxu0 0.0
        %661 = vmatpush2.msra.mxu0 0.0
        %662 = vmatprep.subr.mxu0 0.0
        %663 = vmatpush2.msra.mxu0 0.0
        %664 = vmatprep.subr.mxu0 0.0
        %665 = vmatpush2.msra.mxu0 0.0
        %666 = vmatprep.subr.mxu0 0.0
        %667 = vmatpush2.msra.mxu0 0.0
        %668 = vmatprep.subr.mxu0 0.0
        %669 = vmatpush2.msra.mxu0 0.0
        %670 = vmatprep.subr.mxu0 0.0
        %671 = vmatpush2.msra.mxu0 0.0
        %672 = vmatprep.subr.mxu0 0.0
        %673 = vmatpush2.msra.mxu0 0.0
        %674 = vmatprep.subr.mxu0 0.0
        %675 = vmatpush2.msra.mxu0 0.0
        %676 = vmatprep.mubr.f32.mxu0 0.0
        %677 = vmatmul.mubr.f32.gmra.mxu0 %v213
        %v678 = vpop.f32.mrf.mxu0
        %v679 = vadd.f32 %v429, %v678
        %v680 = vpop.f32.mrf.mxu0
        %v681 = vadd.f32 %v433, %v680
        %682 = vdwg.mxu0
        %683 = vmatprep.subr.mxu0 %v401
        %684 = vmatpush1.msra.mxu0 %v400
        %685 = vmatprep.subr.mxu0 %v389
        %686 = vmatpush1.msra.mxu0 %v388
        %687 = vmatprep.subr.mxu0 %v377
        %688 = vmatpush1.msra.mxu0 %v376
        %689 = vmatprep.subr.mxu0 %v365
        %690 = vmatpush1.msra.mxu0 %v364
        %691 = vmatprep.subr.mxu0 %v353
        %692 = vmatpush1.msra.mxu0 %v352
        %693 = vmatprep.subr.mxu0 %v341
        %694 = vmatpush1.msra.mxu0 %v340
        %695 = vmatprep.subr.mxu0 %v329
        %696 = vmatpush1.msra.mxu0 %v328
        %697 = vmatprep.subr.mxu0 %v317
        %698 = vmatpush1.msra.mxu0 %v316
        %699 = vmatprep.subr.mxu0 %v305
        %700 = vmatpush1.msra.mxu0 %v304
        %701 = vmatprep.subr.mxu0 %v293
        %702 = vmatpush1.msra.mxu0 %v292
        %703 = vmatprep.subr.mxu0 %v281
        %704 = vmatpush1.msra.mxu0 %v280
        %705 = vmatprep.subr.mxu0 %v269
        %706 = vmatpush1.msra.mxu0 %v268
        %707 = vmatprep.subr.mxu0 %v257
        %708 = vmatpush1.msra.mxu0 %v256
        %709 = vmatprep.subr.mxu0 %v245
        %710 = vmatpush1.msra.mxu0 %v244
        %711 = vmatprep.subr.mxu0 %v233
        %712 = vmatpush1.msra.mxu0 %v232
        %713 = vmatprep.subr.mxu0 %v221
        %714 = vmatpush1.msra.mxu0 %v220
        %715 = vmatprep.subr.mxu0 0.0
        %716 = vmatpush2.msra.mxu0 0.0
        %717 = vmatprep.subr.mxu0 0.0
        %718 = vmatpush2.msra.mxu0 0.0
        %719 = vmatprep.subr.mxu0 0.0
        %720 = vmatpush2.msra.mxu0 0.0
        %721 = vmatprep.subr.mxu0 0.0
        %722 = vmatpush2.msra.mxu0 0.0
        %723 = vmatprep.subr.mxu0 0.0
        %724 = vmatpush2.msra.mxu0 0.0
        %725 = vmatprep.subr.mxu0 0.0
        %726 = vmatpush2.msra.mxu0 0.0
        %727 = vmatprep.subr.mxu0 0.0
        %728 = vmatpush2.msra.mxu0 0.0
        %729 = vmatprep.subr.mxu0 0.0
        %730 = vmatpush2.msra.mxu0 0.0
        %731 = vmatprep.subr.mxu0 0.0
        %732 = vmatpush2.msra.mxu0 0.0
        %733 = vmatprep.subr.mxu0 0.0
        %734 = vmatpush2.msra.mxu0 0.0
        %735 = vmatprep.subr.mxu0 0.0
        %736 = vmatpush2.msra.mxu0 0.0
        %737 = vmatprep.subr.mxu0 0.0
        %738 = vmatpush2.msra.mxu0 0.0
        %739 = vmatprep.subr.mxu0 0.0
        %740 = vmatpush2.msra.mxu0 0.0
        %741 = vmatprep.subr.mxu0 0.0
        %742 = vmatpush2.msra.mxu0 0.0
        %743 = vmatprep.subr.mxu0 0.0
        %744 = vmatpush2.msra.mxu0 0.0
        %745 = vmatprep.subr.mxu0 0.0
        %746 = vmatpush2.msra.mxu0 0.0
        %747 = vmatprep.mubr.f32.mxu0 0.0
        %748 = vmatmul.mubr.f32.gmra.mxu0 %v213
        %v749 = vpop.f32.mrf.mxu0
        %v750 = vadd.f32 %v437, %v749
        %v751 = vpop.f32.mrf.mxu0
        %v752 = vadd.f32 %v441, %v751
        %753 = vdwg.mxu0
        %754 = vmatprep.subr.mxu0 %v403
        %755 = vmatpush1.msra.mxu0 %v402
        %756 = vmatprep.subr.mxu0 %v391
        %757 = vmatpush1.msra.mxu0 %v390
        %758 = vmatprep.subr.mxu0 %v379
        %759 = vmatpush1.msra.mxu0 %v378
        %760 = vmatprep.subr.mxu0 %v367
        %761 = vmatpush1.msra.mxu0 %v366
        %762 = vmatprep.subr.mxu0 %v355
        %763 = vmatpush1.msra.mxu0 %v354
        %764 = vmatprep.subr.mxu0 %v343
        %765 = vmatpush1.msra.mxu0 %v342
        %766 = vmatprep.subr.mxu0 %v331
        %767 = vmatpush1.msra.mxu0 %v330
        %768 = vmatprep.subr.mxu0 %v319
        %769 = vmatpush1.msra.mxu0 %v318
        %770 = vmatprep.subr.mxu0 %v307
        %771 = vmatpush1.msra.mxu0 %v306
        %772 = vmatprep.subr.mxu0 %v295
        %773 = vmatpush1.msra.mxu0 %v294
        %774 = vmatprep.subr.mxu0 %v283
        %775 = vmatpush1.msra.mxu0 %v282
        %776 = vmatprep.subr.mxu0 %v271
        %777 = vmatpush1.msra.mxu0 %v270
        %778 = vmatprep.subr.mxu0 %v259
        %779 = vmatpush1.msra.mxu0 %v258
        %780 = vmatprep.subr.mxu0 %v247
        %781 = vmatpush1.msra.mxu0 %v246
        %782 = vmatprep.subr.mxu0 %v235
        %783 = vmatpush1.msra.mxu0 %v234
        %784 = vmatprep.subr.mxu0 %v223
        %785 = vmatpush1.msra.mxu0 %v222
        %786 = vmatprep.subr.mxu0 0.0
        %787 = vmatpush2.msra.mxu0 0.0
        %788 = vmatprep.subr.mxu0 0.0
        %789 = vmatpush2.msra.mxu0 0.0
        %790 = vmatprep.subr.mxu0 0.0
        %791 = vmatpush2.msra.mxu0 0.0
        %792 = vmatprep.subr.mxu0 0.0
        %793 = vmatpush2.msra.mxu0 0.0
        %794 = vmatprep.subr.mxu0 0.0
        %795 = vmatpush2.msra.mxu0 0.0
        %796 = vmatprep.subr.mxu0 0.0
        %797 = vmatpush2.msra.mxu0 0.0
        %798 = vmatprep.subr.mxu0 0.0
        %799 = vmatpush2.msra.mxu0 0.0
        %800 = vmatprep.subr.mxu0 0.0
        %801 = vmatpush2.msra.mxu0 0.0
        %802 = vmatprep.subr.mxu0 0.0
        %803 = vmatpush2.msra.mxu0 0.0
        %804 = vmatprep.subr.mxu0 0.0
        %805 = vmatpush2.msra.mxu0 0.0
        %806 = vmatprep.subr.mxu0 0.0
        %807 = vmatpush2.msra.mxu0 0.0
        %808 = vmatprep.subr.mxu0 0.0
        %809 = vmatpush2.msra.mxu0 0.0
        %810 = vmatprep.subr.mxu0 0.0
        %811 = vmatpush2.msra.mxu0 0.0
        %812 = vmatprep.subr.mxu0 0.0
        %813 = vmatpush2.msra.mxu0 0.0
        %814 = vmatprep.subr.mxu0 0.0
        %815 = vmatpush2.msra.mxu0 0.0
        %816 = vmatprep.subr.mxu0 0.0
        %817 = vmatpush2.msra.mxu0 0.0
        %818 = vmatprep.mubr.f32.mxu0 0.0
        %819 = vmatmul.mubr.f32.gmra.mxu0 %v213
        %v820 = vpop.f32.mrf.mxu0
        %v821 = vadd.f32 %v445, %v820
        %v822 = vpop.f32.mrf.mxu0
        %v823 = vadd.f32 %v449, %v822
        %824 = vdwg.mxu0
        %825 = vmatprep.subr.mxu0 %v405
        %826 = vmatpush1.msra.mxu0 %v404
        %827 = vmatprep.subr.mxu0 %v393
        %828 = vmatpush1.msra.mxu0 %v392
        %829 = vmatprep.subr.mxu0 %v381
        %830 = vmatpush1.msra.mxu0 %v380
        %831 = vmatprep.subr.mxu0 %v369
        %832 = vmatpush1.msra.mxu0 %v368
        %833 = vmatprep.subr.mxu0 %v357
        %834 = vmatpush1.msra.mxu0 %v356
        %835 = vmatprep.subr.mxu0 %v345
        %836 = vmatpush1.msra.mxu0 %v344
        %837 = vmatprep.subr.mxu0 %v333
        %838 = vmatpush1.msra.mxu0 %v332
        %839 = vmatprep.subr.mxu0 %v321
        %840 = vmatpush1.msra.mxu0 %v320
        %841 = vmatprep.subr.mxu0 %v309
        %842 = vmatpush1.msra.mxu0 %v308
        %843 = vmatprep.subr.mxu0 %v297
        %844 = vmatpush1.msra.mxu0 %v296
        %845 = vmatprep.subr.mxu0 %v285
        %846 = vmatpush1.msra.mxu0 %v284
        %847 = vmatprep.subr.mxu0 %v273
        %848 = vmatpush1.msra.mxu0 %v272
        %849 = vmatprep.subr.mxu0 %v261
        %850 = vmatpush1.msra.mxu0 %v260
        %851 = vmatprep.subr.mxu0 %v249
        %852 = vmatpush1.msra.mxu0 %v248
        %853 = vmatprep.subr.mxu0 %v237
        %854 = vmatpush1.msra.mxu0 %v236
        %855 = vmatprep.subr.mxu0 %v225
        %856 = vmatpush1.msra.mxu0 %v224
        %857 = vmatprep.subr.mxu0 0.0
        %858 = vmatpush2.msra.mxu0 0.0
        %859 = vmatprep.subr.mxu0 0.0
        %860 = vmatpush2.msra.mxu0 0.0
        %861 = vmatprep.subr.mxu0 0.0
        %862 = vmatpush2.msra.mxu0 0.0
        %863 = vmatprep.subr.mxu0 0.0
        %864 = vmatpush2.msra.mxu0 0.0
        %865 = vmatprep.subr.mxu0 0.0
        %866 = vmatpush2.msra.mxu0 0.0
        %867 = vmatprep.subr.mxu0 0.0
        %868 = vmatpush2.msra.mxu0 0.0
        %869 = vmatprep.subr.mxu0 0.0
        %870 = vmatpush2.msra.mxu0 0.0
        %871 = vmatprep.subr.mxu0 0.0
        %872 = vmatpush2.msra.mxu0 0.0
        %873 = vmatprep.subr.mxu0 0.0
        %874 = vmatpush2.msra.mxu0 0.0
        %875 = vmatprep.subr.mxu0 0.0
        %876 = vmatpush2.msra.mxu0 0.0
        %877 = vmatprep.subr.mxu0 0.0
        %878 = vmatpush2.msra.mxu0 0.0
        %879 = vmatprep.subr.mxu0 0.0
        %880 = vmatpush2.msra.mxu0 0.0
        %881 = vmatprep.subr.mxu0 0.0
        %882 = vmatpush2.msra.mxu0 0.0
        %883 = vmatprep.subr.mxu0 0.0
        %884 = vmatpush2.msra.mxu0 0.0
        %885 = vmatprep.subr.mxu0 0.0
        %886 = vmatpush2.msra.mxu0 0.0
        %887 = vmatprep.subr.mxu0 0.0
        %888 = vmatpush2.msra.mxu0 0.0
        %889 = vmatprep.mubr.f32.mxu0 0.0
        %890 = vmatmul.mubr.f32.gmra.mxu0 %v213
        %v891 = vpop.f32.mrf.mxu0
        %v892 = vadd.f32 %v453, %v891
        %v893 = vpop.f32.mrf.mxu0
        %v894 = vadd.f32 %v457, %v893
        %895 = vdwg.mxu0
        %896 = vmatprep.subr.mxu0 0.0
        %897 = vmatpush1.xpose.msra.mxu0 0.0
        %898 = vmatprep.subr.mxu0 0.0
        %899 = vmatpush1.xpose.msra.mxu0 0.0
        %900 = vmatprep.subr.mxu0 0.0
        %901 = vmatpush1.xpose.msra.mxu0 0.0
        %902 = vmatprep.subr.mxu0 0.0
        %903 = vmatpush1.xpose.msra.mxu0 0.0
        %904 = vmatprep.subr.mxu0 0.0
        %905 = vmatpush1.xpose.msra.mxu0 0.0
        %906 = vmatprep.subr.mxu0 0.0
        %907 = vmatpush1.xpose.msra.mxu0 0.0
        %908 = vmatprep.subr.mxu0 0.0
        %909 = vmatpush1.xpose.msra.mxu0 0.0
        %910 = vmatprep.subr.mxu0 0.0
        %911 = vmatpush1.xpose.msra.mxu0 0.0
        %912 = vmatprep.subr.mxu0 0.0
        %913 = vmatpush1.xpose.msra.mxu0 0.0
        %914 = vmatprep.subr.mxu0 0.0
        %915 = vmatpush1.xpose.msra.mxu0 0.0
        %916 = vmatprep.subr.mxu0 0.0
        %917 = vmatpush1.xpose.msra.mxu0 0.0
        %918 = vmatprep.subr.mxu0 0.0
        %919 = vmatpush1.xpose.msra.mxu0 0.0
        %920 = vmatprep.subr.mxu0 0.0
        %921 = vmatpush1.xpose.msra.mxu0 0.0
        %922 = vmatprep.subr.mxu0 0.0
        %923 = vmatpush1.xpose.msra.mxu0 0.0
        %924 = vmatprep.subr.mxu0 0.0
        %925 = vmatpush1.xpose.msra.mxu0 0.0
        %926 = vmatprep.subr.mxu0 0.0
        %927 = vmatpush1.xpose.msra.mxu0 %v679
        %928 = vmatprep.subr.mxu0 0.0
        %929 = vmatpush2.xpose.msra.mxu0 0.0
        %930 = vmatprep.subr.mxu0 0.0
        %931 = vmatpush2.xpose.msra.mxu0 0.0
        %932 = vmatprep.subr.mxu0 0.0
        %933 = vmatpush2.xpose.msra.mxu0 0.0
        %934 = vmatprep.subr.mxu0 0.0
        %935 = vmatpush2.xpose.msra.mxu0 0.0
        %936 = vmatprep.subr.mxu0 0.0
        %937 = vmatpush2.xpose.msra.mxu0 0.0
        %938 = vmatprep.subr.mxu0 0.0
        %939 = vmatpush2.xpose.msra.mxu0 0.0
        %940 = vmatprep.subr.mxu0 0.0
        %941 = vmatpush2.xpose.msra.mxu0 0.0
        %942 = vmatprep.subr.mxu0 0.0
        %943 = vmatpush2.xpose.msra.mxu0 0.0
        %944 = vmatprep.subr.mxu0 0.0
        %945 = vmatpush2.xpose.msra.mxu0 0.0
        %946 = vmatprep.subr.mxu0 0.0
        %947 = vmatpush2.xpose.msra.mxu0 0.0
        %948 = vmatprep.subr.mxu0 0.0
        %949 = vmatpush2.xpose.msra.mxu0 0.0
        %950 = vmatprep.subr.mxu0 0.0
        %951 = vmatpush2.xpose.msra.mxu0 0.0
        %952 = vmatprep.subr.mxu0 0.0
        %953 = vmatpush2.xpose.msra.mxu0 0.0
        %954 = vmatprep.subr.mxu0 0.0
        %955 = vmatpush2.xpose.msra.mxu0 0.0
        %956 = vmatprep.subr.mxu0 0.0
        %957 = vmatpush2.xpose.msra.mxu0 0.0
        %958 = vmatprep.subr.mxu0 0.0
        %959 = vmatpush2.xpose.msra.mxu0 0.0
        %960 = vmatprep.mubr.f32.mxu0 0.0
        %961 = vmatmul.mubr.f32.gmra.mxu0 %v537
        %v962 = vpop.f32.mrf.mxu0
        %v963 = vadd.f32 0.0, %v962
        %v964 = vpop.f32.mrf.mxu0
        %965 = vdwg.mxu0
        %vm966 = vcmask 64512
        %v967 = vsel %vm966, %v963, -inf
        %968 = vmax.xlane.f32.xlu0 %v967
        %v969 = vpop.xlane.xlu0 %968
        %v970 = vsub.f32 %v963, %v969
        %v971 = vmul.f32 %v970, 1.442695
        %v972 = vpow.pop %v971
        %v973 = vsel %vm966, %v972, 0.0
        %974 = vadd.xlane.f32.xlu0 %v973
        %v975 = vpop.xlane.xlu0 %974
        %v976 = vrcp.pop %v975
        %v978 = vsel %vm966, %v972, 0
        %980 = vmatprep.subr.mxu0 0.0
        %981 = vmatpush1.msra.mxu0 0.0
        %982 = vmatprep.subr.mxu0 0.0
        %983 = vmatpush1.msra.mxu0 0.0
        %984 = vmatprep.subr.mxu0 0.0
        %985 = vmatpush1.msra.mxu0 0.0
        %986 = vmatprep.subr.mxu0 0.0
        %987 = vmatpush1.msra.mxu0 0.0
        %988 = vmatprep.subr.mxu0 0.0
        %989 = vmatpush1.msra.mxu0 0.0
        %990 = vmatprep.subr.mxu0 0.0
        %991 = vmatpush1.msra.mxu0 0.0
        %992 = vmatprep.subr.mxu0 0.0
        %993 = vmatpush1.msra.mxu0 0.0
        %994 = vmatprep.subr.mxu0 0.0
        %995 = vmatpush1.msra.mxu0 0.0
        %996 = vmatprep.subr.mxu0 0.0
        %997 = vmatpush1.msra.mxu0 0.0
        %998 = vmatprep.subr.mxu0 0.0
        %999 = vmatpush1.msra.mxu0 0.0
        %1000 = vmatprep.subr.mxu0 0.0
        %1001 = vmatpush1.msra.mxu0 0.0
        %1002 = vmatprep.subr.mxu0 0.0
        %1003 = vmatpush1.msra.mxu0 0.0
        %1004 = vmatprep.subr.mxu0 0.0
        %1005 = vmatpush1.msra.mxu0 0.0
        %1006 = vmatprep.subr.mxu0 0.0
        %1007 = vmatpush1.msra.mxu0 0.0
        %1008 = vmatprep.subr.mxu0 0.0
        %1009 = vmatpush1.msra.mxu0 0.0
        %1010 = vmatprep.subr.mxu0 0.0
        %1011 = vmatpush1.msra.mxu0 %v821
        %1012 = vmatprep.subr.mxu0 0.0
        %1013 = vmatpush2.msra.mxu0 0.0
        %1014 = vmatprep.subr.mxu0 0.0
        %1015 = vmatpush2.msra.mxu0 0.0
        %1016 = vmatprep.subr.mxu0 0.0
        %1017 = vmatpush2.msra.mxu0 0.0
        %1018 = vmatprep.subr.mxu0 0.0
        %1019 = vmatpush2.msra.mxu0 0.0
        %1020 = vmatprep.subr.mxu0 0.0
        %1021 = vmatpush2.msra.mxu0 0.0
        %1022 = vmatprep.subr.mxu0 0.0
        %1023 = vmatpush2.msra.mxu0 0.0
        %1024 = vmatprep.subr.mxu0 0.0
        %1025 = vmatpush2.msra.mxu0 0.0
        %1026 = vmatprep.subr.mxu0 0.0
        %1027 = vmatpush2.msra.mxu0 0.0
        %1028 = vmatprep.subr.mxu0 0.0
        %1029 = vmatpush2.msra.mxu0 0.0
        %1030 = vmatprep.subr.mxu0 0.0
        %1031 = vmatpush2.msra.mxu0 0.0
        %1032 = vmatprep.subr.mxu0 0.0
        %1033 = vmatpush2.msra.mxu0 0.0
        %1034 = vmatprep.subr.mxu0 0.0
        %1035 = vmatpush2.msra.mxu0 0.0
        %1036 = vmatprep.subr.mxu0 0.0
        %1037 = vmatpush2.msra.mxu0 0.0
        %1038 = vmatprep.subr.mxu0 0.0
        %1039 = vmatpush2.msra.mxu0 0.0
        %1040 = vmatprep.subr.mxu0 0.0
        %1041 = vmatpush2.msra.mxu0 0.0
        %1042 = vmatprep.subr.mxu0 0.0
        %1043 = vmatpush2.msra.mxu0 0.0
        %1044 = vmatprep.mubr.f32.mxu0 0.0
        %1045 = vmatmul.mubr.f32.gmra.mxu0 %v978
        %v1046 = vpop.f32.mrf.mxu0
        %v1047 = vadd.f32 0.0, %v1046
        %v1048 = vpop.f32.mrf.mxu0
        %1049 = vdwg.mxu0
        %v1050 = vmul.f32 %v1047, %v976
        %1051 = vst [vmem:[%s212] sm:$0xff] %v1050
        %1052 = vmatprep.subr.mxu0 0.0
        %1053 = vmatpush1.xpose.msra.mxu0 0.0
        %1054 = vmatprep.subr.mxu0 0.0
        %1055 = vmatpush1.xpose.msra.mxu0 0.0
        %1056 = vmatprep.subr.mxu0 0.0
        %1057 = vmatpush1.xpose.msra.mxu0 0.0
        %1058 = vmatprep.subr.mxu0 0.0
        %1059 = vmatpush1.xpose.msra.mxu0 0.0
        %1060 = vmatprep.subr.mxu0 0.0
        %1061 = vmatpush1.xpose.msra.mxu0 0.0
        %1062 = vmatprep.subr.mxu0 0.0
        %1063 = vmatpush1.xpose.msra.mxu0 0.0
        %1064 = vmatprep.subr.mxu0 0.0
        %1065 = vmatpush1.xpose.msra.mxu0 0.0
        %1066 = vmatprep.subr.mxu0 0.0
        %1067 = vmatpush1.xpose.msra.mxu0 0.0
        %1068 = vmatprep.subr.mxu0 0.0
        %1069 = vmatpush1.xpose.msra.mxu0 0.0
        %1070 = vmatprep.subr.mxu0 0.0
        %1071 = vmatpush1.xpose.msra.mxu0 0.0
        %1072 = vmatprep.subr.mxu0 0.0
        %1073 = vmatpush1.xpose.msra.mxu0 0.0
        %1074 = vmatprep.subr.mxu0 0.0
        %1075 = vmatpush1.xpose.msra.mxu0 0.0
        %1076 = vmatprep.subr.mxu0 0.0
        %1077 = vmatpush1.xpose.msra.mxu0 0.0
        %1078 = vmatprep.subr.mxu0 0.0
        %1079 = vmatpush1.xpose.msra.mxu0 0.0
        %1080 = vmatprep.subr.mxu0 0.0
        %1081 = vmatpush1.xpose.msra.mxu0 0.0
        %1082 = vmatprep.subr.mxu0 0.0
        %1083 = vmatpush1.xpose.msra.mxu0 %v681
        %1084 = vmatprep.subr.mxu0 0.0
        %1085 = vmatpush2.xpose.msra.mxu0 0.0
        %1086 = vmatprep.subr.mxu0 0.0
        %1087 = vmatpush2.xpose.msra.mxu0 0.0
        %1088 = vmatprep.subr.mxu0 0.0
        %1089 = vmatpush2.xpose.msra.mxu0 0.0
        %1090 = vmatprep.subr.mxu0 0.0
        %1091 = vmatpush2.xpose.msra.mxu0 0.0
        %1092 = vmatprep.subr.mxu0 0.0
        %1093 = vmatpush2.xpose.msra.mxu0 0.0
        %1094 = vmatprep.subr.mxu0 0.0
        %1095 = vmatpush2.xpose.msra.mxu0 0.0
        %1096 = vmatprep.subr.mxu0 0.0
        %1097 = vmatpush2.xpose.msra.mxu0 0.0
        %1098 = vmatprep.subr.mxu0 0.0
        %1099 = vmatpush2.xpose.msra.mxu0 0.0
        %1100 = vmatprep.subr.mxu0 0.0
        %1101 = vmatpush2.xpose.msra.mxu0 0.0
        %1102 = vmatprep.subr.mxu0 0.0
        %1103 = vmatpush2.xpose.msra.mxu0 0.0
        %1104 = vmatprep.subr.mxu0 0.0
        %1105 = vmatpush2.xpose.msra.mxu0 0.0
        %1106 = vmatprep.subr.mxu0 0.0
        %1107 = vmatpush2.xpose.msra.mxu0 0.0
        %1108 = vmatprep.subr.mxu0 0.0
        %1109 = vmatpush2.xpose.msra.mxu0 0.0
        %1110 = vmatprep.subr.mxu0 0.0
        %1111 = vmatpush2.xpose.msra.mxu0 0.0
        %1112 = vmatprep.subr.mxu0 0.0
        %1113 = vmatpush2.xpose.msra.mxu0 0.0
        %1114 = vmatprep.subr.mxu0 0.0
        %1115 = vmatpush2.xpose.msra.mxu0 0.0
        %1116 = vmatprep.mubr.f32.mxu0 0.0
        %1117 = vmatmul.mubr.f32.gmra.mxu0 %v539
        %v1118 = vpop.f32.mrf.mxu0
        %v1119 = vadd.f32 0.0, %v1118
        %v1120 = vpop.f32.mrf.mxu0
        %1121 = vdwg.mxu0
        %v1122 = vsel %vm966, %v1119, -inf
        %1123 = vmax.xlane.f32.xlu0 %v1122
        %v1124 = vpop.xlane.xlu0 %1123
        %v1125 = vsub.f32 %v1119, %v1124
        %v1126 = vmul.f32 %v1125, 1.442695
        %v1127 = vpow.pop %v1126
        %v1128 = vsel %vm966, %v1127, 0.0
        %1129 = vadd.xlane.f32.xlu0 %v1128
        %v1130 = vpop.xlane.xlu0 %1129
        %v1131 = vrcp.pop %v1130
        %v1133 = vsel %vm966, %v1127, 0
        %1135 = vmatprep.subr.mxu0 0.0
        %1136 = vmatpush1.msra.mxu0 0.0
        %1137 = vmatprep.subr.mxu0 0.0
        %1138 = vmatpush1.msra.mxu0 0.0
        %1139 = vmatprep.subr.mxu0 0.0
        %1140 = vmatpush1.msra.mxu0 0.0
        %1141 = vmatprep.subr.mxu0 0.0
        %1142 = vmatpush1.msra.mxu0 0.0
        %1143 = vmatprep.subr.mxu0 0.0
        %1144 = vmatpush1.msra.mxu0 0.0
        %1145 = vmatprep.subr.mxu0 0.0
        %1146 = vmatpush1.msra.mxu0 0.0
        %1147 = vmatprep.subr.mxu0 0.0
        %1148 = vmatpush1.msra.mxu0 0.0
        %1149 = vmatprep.subr.mxu0 0.0
        %1150 = vmatpush1.msra.mxu0 0.0
        %1151 = vmatprep.subr.mxu0 0.0
        %1152 = vmatpush1.msra.mxu0 0.0
        %1153 = vmatprep.subr.mxu0 0.0
        %1154 = vmatpush1.msra.mxu0 0.0
        %1155 = vmatprep.subr.mxu0 0.0
        %1156 = vmatpush1.msra.mxu0 0.0
        %1157 = vmatprep.subr.mxu0 0.0
        %1158 = vmatpush1.msra.mxu0 0.0
        %1159 = vmatprep.subr.mxu0 0.0
        %1160 = vmatpush1.msra.mxu0 0.0
        %1161 = vmatprep.subr.mxu0 0.0
        %1162 = vmatpush1.msra.mxu0 0.0
        %1163 = vmatprep.subr.mxu0 0.0
        %1164 = vmatpush1.msra.mxu0 0.0
        %1165 = vmatprep.subr.mxu0 0.0
        %1166 = vmatpush1.msra.mxu0 %v823
        %1167 = vmatprep.subr.mxu0 0.0
        %1168 = vmatpush2.msra.mxu0 0.0
        %1169 = vmatprep.subr.mxu0 0.0
        %1170 = vmatpush2.msra.mxu0 0.0
        %1171 = vmatprep.subr.mxu0 0.0
        %1172 = vmatpush2.msra.mxu0 0.0
        %1173 = vmatprep.subr.mxu0 0.0
        %1174 = vmatpush2.msra.mxu0 0.0
        %1175 = vmatprep.subr.mxu0 0.0
        %1176 = vmatpush2.msra.mxu0 0.0
        %1177 = vmatprep.subr.mxu0 0.0
        %1178 = vmatpush2.msra.mxu0 0.0
        %1179 = vmatprep.subr.mxu0 0.0
        %1180 = vmatpush2.msra.mxu0 0.0
        %1181 = vmatprep.subr.mxu0 0.0
        %1182 = vmatpush2.msra.mxu0 0.0
        %1183 = vmatprep.subr.mxu0 0.0
        %1184 = vmatpush2.msra.mxu0 0.0
        %1185 = vmatprep.subr.mxu0 0.0
        %1186 = vmatpush2.msra.mxu0 0.0
        %1187 = vmatprep.subr.mxu0 0.0
        %1188 = vmatpush2.msra.mxu0 0.0
        %1189 = vmatprep.subr.mxu0 0.0
        %1190 = vmatpush2.msra.mxu0 0.0
        %1191 = vmatprep.subr.mxu0 0.0
        %1192 = vmatpush2.msra.mxu0 0.0
        %1193 = vmatprep.subr.mxu0 0.0
        %1194 = vmatpush2.msra.mxu0 0.0
        %1195 = vmatprep.subr.mxu0 0.0
        %1196 = vmatpush2.msra.mxu0 0.0
        %1197 = vmatprep.subr.mxu0 0.0
        %1198 = vmatpush2.msra.mxu0 0.0
        %1199 = vmatprep.mubr.f32.mxu0 0.0
        %1200 = vmatmul.mubr.f32.gmra.mxu0 %v1133
        %v1201 = vpop.f32.mrf.mxu0
        %v1202 = vadd.f32 0.0, %v1201
        %v1203 = vpop.f32.mrf.mxu0
        %1204 = vdwg.mxu0
        %v1205 = vmul.f32 %v1202, %v1131
        %1206 = vst [vmem:[%s212 + $0x8] sm:$0xff] %v1205
        %1207 = vmatprep.subr.mxu0 0.0
        %1208 = vmatpush1.xpose.msra.mxu0 0.0
        %1209 = vmatprep.subr.mxu0 0.0
        %1210 = vmatpush1.xpose.msra.mxu0 0.0
        %1211 = vmatprep.subr.mxu0 0.0
        %1212 = vmatpush1.xpose.msra.mxu0 0.0
        %1213 = vmatprep.subr.mxu0 0.0
        %1214 = vmatpush1.xpose.msra.mxu0 0.0
        %1215 = vmatprep.subr.mxu0 0.0
        %1216 = vmatpush1.xpose.msra.mxu0 0.0
        %1217 = vmatprep.subr.mxu0 0.0
        %1218 = vmatpush1.xpose.msra.mxu0 0.0
        %1219 = vmatprep.subr.mxu0 0.0
        %1220 = vmatpush1.xpose.msra.mxu0 0.0
        %1221 = vmatprep.subr.mxu0 0.0
        %1222 = vmatpush1.xpose.msra.mxu0 0.0
        %1223 = vmatprep.subr.mxu0 0.0
        %1224 = vmatpush1.xpose.msra.mxu0 0.0
        %1225 = vmatprep.subr.mxu0 0.0
        %1226 = vmatpush1.xpose.msra.mxu0 0.0
        %1227 = vmatprep.subr.mxu0 0.0
        %1228 = vmatpush1.xpose.msra.mxu0 0.0
        %1229 = vmatprep.subr.mxu0 0.0
        %1230 = vmatpush1.xpose.msra.mxu0 0.0
        %1231 = vmatprep.subr.mxu0 0.0
        %1232 = vmatpush1.xpose.msra.mxu0 0.0
        %1233 = vmatprep.subr.mxu0 0.0
        %1234 = vmatpush1.xpose.msra.mxu0 0.0
        %1235 = vmatprep.subr.mxu0 0.0
        %1236 = vmatpush1.xpose.msra.mxu0 0.0
        %1237 = vmatprep.subr.mxu0 0.0
        %1238 = vmatpush1.xpose.msra.mxu0 %v750
        %1239 = vmatprep.subr.mxu0 0.0
        %1240 = vmatpush2.xpose.msra.mxu0 0.0
        %1241 = vmatprep.subr.mxu0 0.0
        %1242 = vmatpush2.xpose.msra.mxu0 0.0
        %1243 = vmatprep.subr.mxu0 0.0
        %1244 = vmatpush2.xpose.msra.mxu0 0.0
        %1245 = vmatprep.subr.mxu0 0.0
        %1246 = vmatpush2.xpose.msra.mxu0 0.0
        %1247 = vmatprep.subr.mxu0 0.0
        %1248 = vmatpush2.xpose.msra.mxu0 0.0
        %1249 = vmatprep.subr.mxu0 0.0
        %1250 = vmatpush2.xpose.msra.mxu0 0.0
        %1251 = vmatprep.subr.mxu0 0.0
        %1252 = vmatpush2.xpose.msra.mxu0 0.0
        %1253 = vmatprep.subr.mxu0 0.0
        %1254 = vmatpush2.xpose.msra.mxu0 0.0
        %1255 = vmatprep.subr.mxu0 0.0
        %1256 = vmatpush2.xpose.msra.mxu0 0.0
        %1257 = vmatprep.subr.mxu0 0.0
        %1258 = vmatpush2.xpose.msra.mxu0 0.0
        %1259 = vmatprep.subr.mxu0 0.0
        %1260 = vmatpush2.xpose.msra.mxu0 0.0
        %1261 = vmatprep.subr.mxu0 0.0
        %1262 = vmatpush2.xpose.msra.mxu0 0.0
        %1263 = vmatprep.subr.mxu0 0.0
        %1264 = vmatpush2.xpose.msra.mxu0 0.0
        %1265 = vmatprep.subr.mxu0 0.0
        %1266 = vmatpush2.xpose.msra.mxu0 0.0
        %1267 = vmatprep.subr.mxu0 0.0
        %1268 = vmatpush2.xpose.msra.mxu0 0.0
        %1269 = vmatprep.subr.mxu0 0.0
        %1270 = vmatpush2.xpose.msra.mxu0 0.0
        %1271 = vmatprep.mubr.f32.mxu0 0.0
        %1272 = vmatmul.mubr.f32.gmra.mxu0 %v608
        %v1273 = vpop.f32.mrf.mxu0
        %v1274 = vadd.f32 0.0, %v1273
        %v1275 = vpop.f32.mrf.mxu0
        %1276 = vdwg.mxu0
        %v1277 = vsel %vm966, %v1274, -inf
        %1278 = vmax.xlane.f32.xlu0 %v1277
        %v1279 = vpop.xlane.xlu0 %1278
        %v1280 = vsub.f32 %v1274, %v1279
        %v1281 = vmul.f32 %v1280, 1.442695
        %v1282 = vpow.pop %v1281
        %v1283 = vsel %vm966, %v1282, 0.0
        %1284 = vadd.xlane.f32.xlu0 %v1283
        %v1285 = vpop.xlane.xlu0 %1284
        %v1286 = vrcp.pop %v1285
        %v1288 = vsel %vm966, %v1282, 0
        %1290 = vmatprep.subr.mxu0 0.0
        %1291 = vmatpush1.msra.mxu0 0.0
        %1292 = vmatprep.subr.mxu0 0.0
        %1293 = vmatpush1.msra.mxu0 0.0
        %1294 = vmatprep.subr.mxu0 0.0
        %1295 = vmatpush1.msra.mxu0 0.0
        %1296 = vmatprep.subr.mxu0 0.0
        %1297 = vmatpush1.msra.mxu0 0.0
        %1298 = vmatprep.subr.mxu0 0.0
        %1299 = vmatpush1.msra.mxu0 0.0
        %1300 = vmatprep.subr.mxu0 0.0
        %1301 = vmatpush1.msra.mxu0 0.0
        %1302 = vmatprep.subr.mxu0 0.0
        %1303 = vmatpush1.msra.mxu0 0.0
        %1304 = vmatprep.subr.mxu0 0.0
        %1305 = vmatpush1.msra.mxu0 0.0
        %1306 = vmatprep.subr.mxu0 0.0
        %1307 = vmatpush1.msra.mxu0 0.0
        %1308 = vmatprep.subr.mxu0 0.0
        %1309 = vmatpush1.msra.mxu0 0.0
        %1310 = vmatprep.subr.mxu0 0.0
        %1311 = vmatpush1.msra.mxu0 0.0
        %1312 = vmatprep.subr.mxu0 0.0
        %1313 = vmatpush1.msra.mxu0 0.0
        %1314 = vmatprep.subr.mxu0 0.0
        %1315 = vmatpush1.msra.mxu0 0.0
        %1316 = vmatprep.subr.mxu0 0.0
        %1317 = vmatpush1.msra.mxu0 0.0
        %1318 = vmatprep.subr.mxu0 0.0
        %1319 = vmatpush1.msra.mxu0 0.0
        %1320 = vmatprep.subr.mxu0 0.0
        %1321 = vmatpush1.msra.mxu0 %v892
        %1322 = vmatprep.subr.mxu0 0.0
        %1323 = vmatpush2.msra.mxu0 0.0
        %1324 = vmatprep.subr.mxu0 0.0
        %1325 = vmatpush2.msra.mxu0 0.0
        %1326 = vmatprep.subr.mxu0 0.0
        %1327 = vmatpush2.msra.mxu0 0.0
        %1328 = vmatprep.subr.mxu0 0.0
        %1329 = vmatpush2.msra.mxu0 0.0
        %1330 = vmatprep.subr.mxu0 0.0
        %1331 = vmatpush2.msra.mxu0 0.0
        %1332 = vmatprep.subr.mxu0 0.0
        %1333 = vmatpush2.msra.mxu0 0.0
        %1334 = vmatprep.subr.mxu0 0.0
        %1335 = vmatpush2.msra.mxu0 0.0
        %1336 = vmatprep.subr.mxu0 0.0
        %1337 = vmatpush2.msra.mxu0 0.0
        %1338 = vmatprep.subr.mxu0 0.0
        %1339 = vmatpush2.msra.mxu0 0.0
        %1340 = vmatprep.subr.mxu0 0.0
        %1341 = vmatpush2.msra.mxu0 0.0
        %1342 = vmatprep.subr.mxu0 0.0
        %1343 = vmatpush2.msra.mxu0 0.0
        %1344 = vmatprep.subr.mxu0 0.0
        %1345 = vmatpush2.msra.mxu0 0.0
        %1346 = vmatprep.subr.mxu0 0.0
        %1347 = vmatpush2.msra.mxu0 0.0
        %1348 = vmatprep.subr.mxu0 0.0
        %1349 = vmatpush2.msra.mxu0 0.0
        %1350 = vmatprep.subr.mxu0 0.0
        %1351 = vmatpush2.msra.mxu0 0.0
        %1352 = vmatprep.subr.mxu0 0.0
        %1353 = vmatpush2.msra.mxu0 0.0
        %1354 = vmatprep.mubr.f32.mxu0 0.0
        %1355 = vmatmul.mubr.f32.gmra.mxu0 %v1288
        %v1356 = vpop.f32.mrf.mxu0
        %v1357 = vadd.f32 0.0, %v1356
        %v1358 = vpop.f32.mrf.mxu0
        %1359 = vdwg.mxu0
        %v1360 = vmul.f32 %v1357, %v1286
        %1361 = vst [vmem:[%s212 + $0x10] sm:$0xff] %v1360
        %1362 = vmatprep.subr.mxu0 0.0
        %1363 = vmatpush1.xpose.msra.mxu0 0.0
        %1364 = vmatprep.subr.mxu0 0.0
        %1365 = vmatpush1.xpose.msra.mxu0 0.0
        %1366 = vmatprep.subr.mxu0 0.0
        %1367 = vmatpush1.xpose.msra.mxu0 0.0
        %1368 = vmatprep.subr.mxu0 0.0
        %1369 = vmatpush1.xpose.msra.mxu0 0.0
        %1370 = vmatprep.subr.mxu0 0.0
        %1371 = vmatpush1.xpose.msra.mxu0 0.0
        %1372 = vmatprep.subr.mxu0 0.0
        %1373 = vmatpush1.xpose.msra.mxu0 0.0
        %1374 = vmatprep.subr.mxu0 0.0
        %1375 = vmatpush1.xpose.msra.mxu0 0.0
        %1376 = vmatprep.subr.mxu0 0.0
        %1377 = vmatpush1.xpose.msra.mxu0 0.0
        %1378 = vmatprep.subr.mxu0 0.0
        %1379 = vmatpush1.xpose.msra.mxu0 0.0
        %1380 = vmatprep.subr.mxu0 0.0
        %1381 = vmatpush1.xpose.msra.mxu0 0.0
        %1382 = vmatprep.subr.mxu0 0.0
        %1383 = vmatpush1.xpose.msra.mxu0 0.0
        %1384 = vmatprep.subr.mxu0 0.0
        %1385 = vmatpush1.xpose.msra.mxu0 0.0
        %1386 = vmatprep.subr.mxu0 0.0
        %1387 = vmatpush1.xpose.msra.mxu0 0.0
        %1388 = vmatprep.subr.mxu0 0.0
        %1389 = vmatpush1.xpose.msra.mxu0 0.0
        %1390 = vmatprep.subr.mxu0 0.0
        %1391 = vmatpush1.xpose.msra.mxu0 0.0
        %1392 = vmatprep.subr.mxu0 0.0
        %1393 = vmatpush1.xpose.msra.mxu0 %v752
        %1394 = vmatprep.subr.mxu0 0.0
        %1395 = vmatpush2.xpose.msra.mxu0 0.0
        %1396 = vmatprep.subr.mxu0 0.0
        %1397 = vmatpush2.xpose.msra.mxu0 0.0
        %1398 = vmatprep.subr.mxu0 0.0
        %1399 = vmatpush2.xpose.msra.mxu0 0.0
        %1400 = vmatprep.subr.mxu0 0.0
        %1401 = vmatpush2.xpose.msra.mxu0 0.0
        %1402 = vmatprep.subr.mxu0 0.0
        %1403 = vmatpush2.xpose.msra.mxu0 0.0
        %1404 = vmatprep.subr.mxu0 0.0
        %1405 = vmatpush2.xpose.msra.mxu0 0.0
        %1406 = vmatprep.subr.mxu0 0.0
        %1407 = vmatpush2.xpose.msra.mxu0 0.0
        %1408 = vmatprep.subr.mxu0 0.0
        %1409 = vmatpush2.xpose.msra.mxu0 0.0
        %1410 = vmatprep.subr.mxu0 0.0
        %1411 = vmatpush2.xpose.msra.mxu0 0.0
        %1412 = vmatprep.subr.mxu0 0.0
        %1413 = vmatpush2.xpose.msra.mxu0 0.0
        %1414 = vmatprep.subr.mxu0 0.0
        %1415 = vmatpush2.xpose.msra.mxu0 0.0
        %1416 = vmatprep.subr.mxu0 0.0
        %1417 = vmatpush2.xpose.msra.mxu0 0.0
        %1418 = vmatprep.subr.mxu0 0.0
        %1419 = vmatpush2.xpose.msra.mxu0 0.0
        %1420 = vmatprep.subr.mxu0 0.0
        %1421 = vmatpush2.xpose.msra.mxu0 0.0
        %1422 = vmatprep.subr.mxu0 0.0
        %1423 = vmatpush2.xpose.msra.mxu0 0.0
        %1424 = vmatprep.subr.mxu0 0.0
        %1425 = vmatpush2.xpose.msra.mxu0 0.0
        %1426 = vmatprep.mubr.f32.mxu0 0.0
        %1427 = vmatmul.mubr.f32.gmra.mxu0 %v610
        %v1428 = vpop.f32.mrf.mxu0
        %v1429 = vadd.f32 0.0, %v1428
        %v1430 = vpop.f32.mrf.mxu0
        %1431 = vdwg.mxu0
        %v1432 = vsel %vm966, %v1429, -inf
        %1433 = vmax.xlane.f32.xlu0 %v1432
        %v1434 = vpop.xlane.xlu0 %1433
        %v1435 = vsub.f32 %v1429, %v1434
        %v1436 = vmul.f32 %v1435, 1.442695
        %v1437 = vpow.pop %v1436
        %v1438 = vsel %vm966, %v1437, 0.0
        %1439 = vadd.xlane.f32.xlu0 %v1438
        %v1440 = vpop.xlane.xlu0 %1439
        %v1441 = vrcp.pop %v1440
        %v1443 = vsel %vm966, %v1437, 0
        %1445 = vmatprep.subr.mxu0 0.0
        %1446 = vmatpush1.msra.mxu0 0.0
        %1447 = vmatprep.subr.mxu0 0.0
        %1448 = vmatpush1.msra.mxu0 0.0
        %1449 = vmatprep.subr.mxu0 0.0
        %1450 = vmatpush1.msra.mxu0 0.0
        %1451 = vmatprep.subr.mxu0 0.0
        %1452 = vmatpush1.msra.mxu0 0.0
        %1453 = vmatprep.subr.mxu0 0.0
        %1454 = vmatpush1.msra.mxu0 0.0
        %1455 = vmatprep.subr.mxu0 0.0
        %1456 = vmatpush1.msra.mxu0 0.0
        %1457 = vmatprep.subr.mxu0 0.0
        %1458 = vmatpush1.msra.mxu0 0.0
        %1459 = vmatprep.subr.mxu0 0.0
        %1460 = vmatpush1.msra.mxu0 0.0
        %1461 = vmatprep.subr.mxu0 0.0
        %1462 = vmatpush1.msra.mxu0 0.0
        %1463 = vmatprep.subr.mxu0 0.0
        %1464 = vmatpush1.msra.mxu0 0.0
        %1465 = vmatprep.subr.mxu0 0.0
        %1466 = vmatpush1.msra.mxu0 0.0
        %1467 = vmatprep.subr.mxu0 0.0
        %1468 = vmatpush1.msra.mxu0 0.0
        %1469 = vmatprep.subr.mxu0 0.0
        %1470 = vmatpush1.msra.mxu0 0.0
        %1471 = vmatprep.subr.mxu0 0.0
        %1472 = vmatpush1.msra.mxu0 0.0
        %1473 = vmatprep.subr.mxu0 0.0
        %1474 = vmatpush1.msra.mxu0 0.0
        %1475 = vmatprep.subr.mxu0 0.0
        %1476 = vmatpush1.msra.mxu0 %v894
        %1477 = vmatprep.subr.mxu0 0.0
        %1478 = vmatpush2.msra.mxu0 0.0
        %1479 = vmatprep.subr.mxu0 0.0
        %1480 = vmatpush2.msra.mxu0 0.0
        %1481 = vmatprep.subr.mxu0 0.0
        %1482 = vmatpush2.msra.mxu0 0.0
        %1483 = vmatprep.subr.mxu0 0.0
        %1484 = vmatpush2.msra.mxu0 0.0
        %1485 = vmatprep.subr.mxu0 0.0
        %1486 = vmatpush2.msra.mxu0 0.0
        %1487 = vmatprep.subr.mxu0 0.0
        %1488 = vmatpush2.msra.mxu0 0.0
        %1489 = vmatprep.subr.mxu0 0.0
        %1490 = vmatpush2.msra.mxu0 0.0
        %1491 = vmatprep.subr.mxu0 0.0
        %1492 = vmatpush2.msra.mxu0 0.0
        %1493 = vmatprep.subr.mxu0 0.0
        %1494 = vmatpush2.msra.mxu0 0.0
        %1495 = vmatprep.subr.mxu0 0.0
        %1496 = vmatpush2.msra.mxu0 0.0
        %1497 = vmatprep.subr.mxu0 0.0
        %1498 = vmatpush2.msra.mxu0 0.0
        %1499 = vmatprep.subr.mxu0 0.0
        %1500 = vmatpush2.msra.mxu0 0.0
        %1501 = vmatprep.subr.mxu0 0.0
        %1502 = vmatpush2.msra.mxu0 0.0
        %1503 = vmatprep.subr.mxu0 0.0
        %1504 = vmatpush2.msra.mxu0 0.0
        %1505 = vmatprep.subr.mxu0 0.0
        %1506 = vmatpush2.msra.mxu0 0.0
        %1507 = vmatprep.subr.mxu0 0.0
        %1508 = vmatpush2.msra.mxu0 0.0
        %1509 = vmatprep.mubr.f32.mxu0 0.0
        %1510 = vmatmul.mubr.f32.gmra.mxu0 %v1443
        %v1511 = vpop.f32.mrf.mxu0
        %v1512 = vadd.f32 0.0, %v1511
        %v1513 = vpop.f32.mrf.mxu0
        %1514 = vdwg.mxu0
        %v1515 = vmul.f32 %v1512, %v1441
        %1516 = vst [vmem:[%s212 + $0x18] sm:$0xff] %v1515
        %s1517 = sand.u32 %s97, 1
        %s1518 = scalar_lea.sflag [#allocation4], %s1517
        %s1519 = sand.u32 %s97, 1
        %s1520 = smul.addr %s1519, 32
        %s1521 = scalar_lea.vmem [#allocation8], %s1520
        // Predicated region
        $region45: #{tpu_custom_call.1} parent=31 // pred_check
          %p1522 = pneg %p107
        $region46: #{tpu_custom_call.1} parent=31 // pred_check_branch
          %1524 = sbr.rel (%p1522) target = $region48
        $region47: #{tpu_custom_call.1} parent=31 // pred_region
          %s1526 = ssub.s32 512, 512
          %1527 = vsyncadd %s1518, %s1526
          %s1528 = smul.addr %s21, 4
          %s1529 = smul.addr %s1528, 128
          %s1530 = scalar_lea.hbm %s3, %s1529
          %s1532 = sshll.u32 %s1521, 4
          %s1533 = int_to_ptr.vmem [resolvable:$true] %s1532
          %1535 = dma.vmem_to_hbm [thread:$0]  %s1533, 512, %s1530, %s1518
        $region48: #{tpu_custom_call.1} parent=31 // pred_fallthru
          _
      $region32: #{tpu_custom_call.1} parent=5 // pred_fallthru
        _
      %p1536 = scmp.le.s32.totalorder 2, %s16
      // Predicated region
      $region49: #{tpu_custom_call.1} parent=5 // pred_check
        %p1537 = pneg %p1536
      $region50: #{tpu_custom_call.1} parent=5 // pred_check_branch
        %1539 = sbr.rel (%p1537) target = $region52
      $region51: #{tpu_custom_call.1} parent=5 // pred_region
        %s1540 = ssub.s32 %s16, 2
        // Predicated region
        $region53: #{tpu_custom_call.1} parent=51 // pred_check
          %p1541 = pneg %p113
        $region54: #{tpu_custom_call.1} parent=51 // pred_check_branch
          %1543 = sbr.rel (%p1541) target = $region56
        $region55: #{tpu_custom_call.1} parent=51 // pred_region
          %s1544 = sand.u32 %s98, 1
          %s1545 = scalar_lea.sflag [#allocation4], %s1544
          %s1546 = sand.u32 %s98, 1
          %s1547 = smul.addr %s1546, 32
          %s1548 = scalar_lea.vmem [#allocation8], %s1547
          %1549 = dma.done %s1545, 512
        $region56: #{tpu_custom_call.1} parent=51 // pred_fallthru
          _
      $region52: #{tpu_custom_call.1} parent=5 // pred_fallthru
        _
    $region6: #{tpu_custom_call.1} parent=1 // loop_footer
      %s20 = sadd.s32 1, %s16
    $region7: #{tpu_custom_call.1} parent=1 // loop_footer_branch
      %15 = sbr.rel target = $region3
    $region8: #{tpu_custom_call.1} parent=1 // loop_exit
      _
    %1550 = vsyncpa [#allocation3], 1
    %s1551 = scalar_lea.sflag [#allocation3], 1
    %1552 = vsyncpa %s1551, 1
    %1553 = vsyncpa [#allocation6], 1
    %1554 = vsyncpa [#allocation4], 1
    %s1555 = scalar_lea.sflag [#allocation4], 1
    %1556 = vsyncpa %s1555, 1

// kernel: tpu_custom_call.1
$region0: #{tpu_custom_call.1}
  #allocation0 [shape = 'u32[]', space=smem, size = 0x4, offset = 0x4, fixed_abs, tag = 'smem constant byte address 0x4 - core index']
  #allocation1 [shape = 'u32[144,128]{1,0:T(1,128)}', space=vmem, size = 0x12000, scoped, tag = 'internal scratch']
  %s0 = inlined_call_operand.hbm [shape: f32[2,8,128], index: 0, kind: input, shape index: {}]
  %s1 = inlined_call_operand.hbm [shape: f32[128,1536], index: 1, kind: input, shape index: {}]
  %s2 = inlined_call_operand.hbm [shape: f32[1,1536], index: 2, kind: input, shape index: {}]
  %s3 = inlined_call_operand.hbm [shape: f32[2,8,512], index: 3, kind: output, shape index: {}]
  %s4 = sld [smem:[#allocation0]]
  $region57: #{tpu_custom_call.1} parent=0
    _
  %s6 = ssub.s32 1, %s4
  %s7 = scalar_select 0, %s6, %s4
  $region1: #{tpu_custom_call.1} parent=0
    #allocation2 [shape = 'u8[8192]{0}', space=vmem, size = 0x2000, scoped, tag = 'input window, operand 0']
    #allocation3 [shape = 's32[2]{0}', space=sflag, size = 0x8, scoped, tag = 'scoped memory for tpu_custom_call.1']
    #allocation4 [shape = 's32[2]{0}', space=sflag, size = 0x8, scoped, tag = 'scoped memory for tpu_custom_call.1']
    #allocation5 [shape = 'u8[786432]{0}', space=vmem, size = 0xc0000, scoped, tag = 'input window, operand 1, single buffered']
    #allocation6 [shape = 's32[1]{0}', space=sflag, size = 0x4, scoped, tag = 'scoped memory for tpu_custom_call.1']
    #allocation7 [shape = 'u8[6144]{0}', space=vmem, size = 0x1800, scoped, tag = 'input window, operand 2, single buffered']
    #allocation8 [shape = 'u8[32768]{0}', space=vmem, size = 0x8000, scoped, tag = 'output window, operand 0']
    %8 = vsyncpa [#allocation3], 0
    %s9 = scalar_lea.sflag [#allocation3], 1
    %10 = vsyncpa %s9, 0
    %11 = vsyncpa [#allocation6], 0
    %12 = vsyncpa [#allocation4], 0
    %s13 = scalar_lea.sflag [#allocation4], 1
    %14 = vsyncpa %s13, 0
    loop: start=0, step=1, limit=4
    $region2: #{tpu_custom_call.1} parent=1 // loop_pre_header
      _
    $region3: #{tpu_custom_call.1} parent=1 // loop_header
      %s16 = sphi 0, %s20
      %p17 = scmp.ge.s32.totalorder %s16, 4
      %s26 = sphi 0, %s28
      %s29 = sphi 0, %s26
      %s30 = sphi 0, %s29
      %s46 = sphi 0, %s30
      %s50 = sphi 0, %s50
      %s52 = sphi 0, %s50
      %s53 = sphi 0, %s52
      %s67 = sphi 0, %s53
      %s71 = sphi 0, %s71
      %s73 = sphi 0, %s71
      %s74 = sphi 0, %s73
      %s88 = sphi 0, %s74
      %s94 = sphi 0, %s96
      %s97 = sphi 0, %s94
      %s98 = sphi 0, %s97
      %s114 = sphi 0, %s98
    $region4: #{tpu_custom_call.1} parent=1 // loop_header_branch
      %19 = sbr.rel (%p17) target = $region8
    $region5: #{tpu_custom_call.1} parent=1 // loop_body
      %s21 = ssub.s32 %s16, 1
      %s22 = ssub.s32 %s16, 2
      %s23 = sadd.s32 %s16, 1
      %s24 = ssub.s32 %s16, %s23
      %p25 = scmp.eq.s32.totalorder %s24, 0
      %s27 = sadd.s32 %s26, 1
      %s28 = scalar_select %p25, %s26, %s27
      %p31 = pneg %p25
      %p32 = scmp.eq.s32.totalorder %s16, 1
      %p33 = por %p31, %p32
      %p34 = scmp.ne.s32.totalorder %s26, %s29
      %p35 = scmp.eq.s32.totalorder %s16, 0
      %p36 = por %p34, %p35
      %p37 = scmp.ne.s32.totalorder %s26, %s29
      %p38 = scmp.eq.s32.totalorder %s21, 1
      %p39 = por %p37, %p38
      %p40 = scmp.ne.s32.totalorder %s29, %s30
      %p41 = scmp.eq.s32.totalorder %s21, 0
      %p42 = por %p40, %p41
      %p43 = scmp.ne.s32.totalorder %s29, %s30
      %p44 = scmp.eq.s32.totalorder %s22, 1
      %p45 = por %p43, %p44
      %p47 = scmp.ne.s32.totalorder %s30, %s46
      %p48 = scmp.eq.s32.totalorder %s22, 0
      %p49 = por %p47, %p48
      %s51 = sadd.s32 %s50, 1
      %p54 = scmp.eq.s32.totalorder %s16, 1
      %p55 = scmp.ne.s32.totalorder %s50, %s52
      %p56 = scmp.eq.s32.totalorder %s16, 0
      %p57 = por %p55, %p56
      %p58 = scmp.ne.s32.totalorder %s50, %s52
      %p59 = scmp.eq.s32.totalorder %s21, 1
      %p60 = por %p58, %p59
      %p61 = scmp.ne.s32.totalorder %s52, %s53
      %p62 = scmp.eq.s32.totalorder %s21, 0
      %p63 = por %p61, %p62
      %p64 = scmp.ne.s32.totalorder %s52, %s53
      %p65 = scmp.eq.s32.totalorder %s22, 1
      %p66 = por %p64, %p65
      %p68 = scmp.ne.s32.totalorder %s53, %s67
      %p69 = scmp.eq.s32.totalorder %s22, 0
      %p70 = por %p68, %p69
      %s72 = sadd.s32 %s71, 1
      %p75 = scmp.eq.s32.totalorder %s16, 1
      %p76 = scmp.ne.s32.totalorder %s71, %s73
      %p77 = scmp.eq.s32.totalorder %s16, 0
      %p78 = por %p76, %p77
      %p79 = scmp.ne.s32.totalorder %s71, %s73
      %p80 = scmp.eq.s32.totalorder %s21, 1
      %p81 = por %p79, %p80
      %p82 = scmp.ne.s32.totalorder %s73, %s74
      %p83 = scmp.eq.s32.totalorder %s21, 0
      %p84 = por %p82, %p83
      %p85 = scmp.ne.s32.totalorder %s73, %s74
      %p86 = scmp.eq.s32.totalorder %s22, 1
      %p87 = por %p85, %p86
      %p89 = scmp.ne.s32.totalorder %s74, %s88
      %p90 = scmp.eq.s32.totalorder %s22, 0
      %p91 = por %p89, %p90
      %s92 = ssub.s32 %s16, %s23
      %p93 = scmp.eq.s32.totalorder %s92, 0
      %s95 = sadd.s32 %s94, 1
      %s96 = scalar_select %p93, %s94, %s95
      %p99 = pneg %p93
      %p100 = scmp.eq.s32.totalorder %s16, 1
      %p101 = por %p99, %p100
      %p102 = scmp.ne.s32.totalorder %s94, %s97
      %p103 = scmp.eq.s32.totalorder %s16, 0
      %p104 = por %p102, %p103
      %p105 = scmp.ne.s32.totalorder %s94, %s97
      %p106 = scmp.eq.s32.totalorder %s21, 1
      %p107 = por %p105, %p106
      %p108 = scmp.ne.s32.totalorder %s97, %s98
      %p109 = scmp.eq.s32.totalorder %s21, 0
      %p110 = por %p108, %p109
      %p111 = scmp.ne.s32.totalorder %s97, %s98
      %p112 = scmp.eq.s32.totalorder %s22, 1
      %p113 = por %p111, %p112
      %p115 = scmp.ne.s32.totalorder %s98, %s114
      %p116 = scmp.eq.s32.totalorder %s22, 0
      %p117 = por %p115, %p116
      %p118 = scmp.le.s32.totalorder 1, %s16
      %p119 = scmp.lt.s32.totalorder %s16, 3
      %p120 = pnand %p118, %p119
      %p121 = pneg %p120
      // Predicated region
      $region9: #{tpu_custom_call.1} parent=5 // pred_check
        _
      $region10: #{tpu_custom_call.1} parent=5 // pred_check_branch
        %123 = sbr.rel (%p120) target = $region12
      $region11: #{tpu_custom_call.1} parent=5 // pred_region
        %s124 = ssub.s32 %s16, 1
        // Predicated region
        $region13: #{tpu_custom_call.1} parent=11 // pred_check
          %p125 = pneg %p63
        $region14: #{tpu_custom_call.1} parent=11 // pred_check_branch
          %127 = sbr.rel (%p125) target = $region16
        $region15: #{tpu_custom_call.1} parent=11 // pred_region
          %s129 = ssub.s32 24576, 24576
          %130 = vsyncadd [#allocation6], %s129
          %s131 = sshll.u32 [#allocation5], 4
          %s132 = int_to_ptr.vmem [resolvable:$true] %s131
          %137 = dma.hbm_to_vmem [thread:$0]  %s1, 24576, %s132, [#allocation6], 1536, 1536, 96
        $region16: #{tpu_custom_call.1} parent=11 // pred_fallthru
          _
        // Predicated region
        $region17: #{tpu_custom_call.1} parent=11 // pred_check
          %p138 = pneg %p84
        $region18: #{tpu_custom_call.1} parent=11 // pred_check_branch
          %140 = sbr.rel (%p138) target = $region20
        $region19: #{tpu_custom_call.1} parent=11 // pred_region
          %s142 = ssub.s32 192, 192
          %143 = vsyncadd [#allocation6], %s142
          %s145 = sshll.u32 [#allocation7], 4
          %s146 = int_to_ptr.vmem [resolvable:$true] %s145
          %148 = dma.hbm_to_vmem [thread:$0]  %s2, 192, %s146, [#allocation6]
        $region20: #{tpu_custom_call.1} parent=11 // pred_fallthru
          _
      $region12: #{tpu_custom_call.1} parent=5 // pred_fallthru
        _
      %p149 = scmp.lt.s32.totalorder %s16, 2
      // Predicated region
      $region21: #{tpu_custom_call.1} parent=5 // pred_check
        %p150 = pneg %p149
      $region22: #{tpu_custom_call.1} parent=5 // pred_check_branch
        %152 = sbr.rel (%p150) target = $region24
      $region23: #{tpu_custom_call.1} parent=5 // pred_region
        // Predicated region
        $region25: #{tpu_custom_call.1} parent=23 // pred_check
          %p153 = pneg %p36
        $region26: #{tpu_custom_call.1} parent=23 // pred_check_branch
          %155 = sbr.rel (%p153) target = $region28
        $region27: #{tpu_custom_call.1} parent=23 // pred_region
          %s156 = sand.u32 %s26, 1
          %s157 = scalar_lea.sflag [#allocation3], %s156
          %s158 = sand.u32 %s26, 1
          %s159 = smul.addr %s158, 8
          %s160 = scalar_lea.vmem [#allocation2], %s159
          %s162 = ssub.s32 128, 128
          %163 = vsyncadd %s157, %s162
          %s164 = smul.addr %s16, 128
          %s165 = scalar_lea.hbm %s0, %s164
          %s167 = sshll.u32 %s160, 4
          %s168 = int_to_ptr.vmem [resolvable:$true] %s167
          %170 = dma.hbm_to_vmem [thread:$0]  %s165, 128, %s168, %s157
        $region28: #{tpu_custom_call.1} parent=23 // pred_fallthru
          _
      $region24: #{tpu_custom_call.1} parent=5 // pred_fallthru
        _
      %p171 = scmp.le.s32.totalorder 1, %s16
      %p172 = scmp.lt.s32.totalorder %s16, 3
      %p173 = pnand %p171, %p172
      %p174 = pneg %p173
      // Predicated region
      $region29: #{tpu_custom_call.1} parent=5 // pred_check
        _
      $region30: #{tpu_custom_call.1} parent=5 // pred_check_branch
        %176 = sbr.rel (%p173) target = $region32
      $region31: #{tpu_custom_call.1} parent=5 // pred_region
        %s177 = ssub.s32 %s16, 1
        %s178 = sand.u32 %s29, 1
        %s179 = scalar_lea.sflag [#allocation3], %s178
        %s180 = sand.u32 %s29, 1
        %s181 = smul.addr %s180, 8
        %s182 = scalar_lea.vmem [#allocation2], %s181
        // Predicated region
        $region33: #{tpu_custom_call.1} parent=31 // pred_check
          %p183 = pneg %p42
        $region34: #{tpu_custom_call.1} parent=31 // pred_check_branch
          %185 = sbr.rel (%p183) target = $region36
        $region35: #{tpu_custom_call.1} parent=31 // pred_region
          %186 = dma.done %s179, 128
        $region36: #{tpu_custom_call.1} parent=31 // pred_fallthru
          _
        // Predicated region
        $region37: #{tpu_custom_call.1} parent=31 // pred_check
          %p187 = pneg %p63
        $region38: #{tpu_custom_call.1} parent=31 // pred_check_branch
          %189 = sbr.rel (%p187) target = $region40
        $region39: #{tpu_custom_call.1} parent=31 // pred_region
          %190 = dma.done [#allocation6], 24576
        $region40: #{tpu_custom_call.1} parent=31 // pred_fallthru
          _
        // Predicated region
        $region41: #{tpu_custom_call.1} parent=31 // pred_check
          %p191 = pneg %p84
        $region42: #{tpu_custom_call.1} parent=31 // pred_check_branch
          %193 = sbr.rel (%p191) target = $region44
        $region43: #{tpu_custom_call.1} parent=31 // pred_region
          %194 = dma.done [#allocation6], 192
        $region44: #{tpu_custom_call.1} parent=31 // pred_fallthru
          _
        %s195 = sand.u32 %s29, 1
        %s196 = scalar_lea.sflag [#allocation3], %s195
        %s197 = sand.u32 %s29, 1
        %s198 = smul.addr %s197, 8
        %s199 = scalar_lea.vmem [#allocation2], %s198
        %p200 = pneg %p42
        %p201 = pneg %p39
        %p202 = pneg %p63
        %p203 = pneg %p60
        %p204 = pneg %p84
        %p205 = pneg %p81
        %p206 = pneg %p110
        %p207 = pneg %p107
        %s208 = sand.u32 %s97, 1
        %s209 = scalar_lea.sflag [#allocation4], %s208
        %s210 = sand.u32 %s97, 1
        %s211 = smul.addr %s210, 32
        %s212 = scalar_lea.vmem [#allocation8], %s211
        %v213 = vld [vmem:[%s182] sm:$0xff]
        %v214 = vld [vmem:[#allocation5] sm:$0xff]
        %v215 = vld [vmem:[#allocation5 + $0x8] sm:$0xff]
        %v216 = vld [vmem:[#allocation5 + $0x10] sm:$0xff]
        %v217 = vld [vmem:[#allocation5 + $0x18] sm:$0xff]
        %v218 = vld [vmem:[#allocation5 + $0x20] sm:$0xff]
        %v219 = vld [vmem:[#allocation5 + $0x28] sm:$0xff]
        %v220 = vld [vmem:[#allocation5 + $0x30] sm:$0xff]
        %v221 = vld [vmem:[#allocation5 + $0x38] sm:$0xff]
        %v222 = vld [vmem:[#allocation5 + $0x40] sm:$0xff]
        %v223 = vld [vmem:[#allocation5 + $0x48] sm:$0xff]
        %v224 = vld [vmem:[#allocation5 + $0x50] sm:$0xff]
        %v225 = vld [vmem:[#allocation5 + $0x58] sm:$0xff]
        %v226 = vld [vmem:[#allocation5 + $0x60] sm:$0xff]
        %v227 = vld [vmem:[#allocation5 + $0x68] sm:$0xff]
        %v228 = vld [vmem:[#allocation5 + $0x70] sm:$0xff]
        %v229 = vld [vmem:[#allocation5 + $0x78] sm:$0xff]
        %v230 = vld [vmem:[#allocation5 + $0x80] sm:$0xff]
        %v231 = vld [vmem:[#allocation5 + $0x88] sm:$0xff]
        %v232 = vld [vmem:[#allocation5 + $0x90] sm:$0xff]
        %v233 = vld [vmem:[#allocation5 + $0x98] sm:$0xff]
        %v234 = vld [vmem:[#allocation5 + $0xa0] sm:$0xff]
        %v235 = vld [vmem:[#allocation5 + $0xa8] sm:$0xff]
        %v236 = vld [vmem:[#allocation5 + $0xb0] sm:$0xff]
        %v237 = vld [vmem:[#allocation5 + $0xb8] sm:$0xff]
        %v238 = vld [vmem:[#allocation5 + $0xc0] sm:$0xff]
        %v239 = vld [vmem:[#allocation5 + $0xc8] sm:$0xff]
        %v240 = vld [vmem:[#allocation5 + $0xd0] sm:$0xff]
        %v241 = vld [vmem:[#allocation5 + $0xd8] sm:$0xff]
        %v242 = vld [vmem:[#allocation5 + $0xe0] sm:$0xff]
        %v243 = vld [vmem:[#allocation5 + $0xe8] sm:$0xff]
        %v244 = vld [vmem:[#allocation5 + $0xf0] sm:$0xff]
        %v245 = vld [vmem:[#allocation5 + $0xf8] sm:$0xff]
        %v246 = vld [vmem:[#allocation5 + $0x100] sm:$0xff]
        %v247 = vld [vmem:[#allocation5 + $0x108] sm:$0xff]
        %v248 = vld [vmem:[#allocation5 + $0x110] sm:$0xff]
        %v249 = vld [vmem:[#allocation5 + $0x118] sm:$0xff]
        %v250 = vld [vmem:[#allocation5 + $0x120] sm:$0xff]
        %v251 = vld [vmem:[#allocation5 + $0x128] sm:$0xff]
        %v252 = vld [vmem:[#allocation5 + $0x130] sm:$0xff]
        %v253 = vld [vmem:[#allocation5 + $0x138] sm:$0xff]
        %v254 = vld [vmem:[#allocation5 + $0x140] sm:$0xff]
        %v255 = vld [vmem:[#allocation5 + $0x148] sm:$0xff]
        %v256 = vld [vmem:[#allocation5 + $0x150] sm:$0xff]
        %v257 = vld [vmem:[#allocation5 + $0x158] sm:$0xff]
        %v258 = vld [vmem:[#allocation5 + $0x160] sm:$0xff]
        %v259 = vld [vmem:[#allocation5 + $0x168] sm:$0xff]
        %v260 = vld [vmem:[#allocation5 + $0x170] sm:$0xff]
        %v261 = vld [vmem:[#allocation5 + $0x178] sm:$0xff]
        %v262 = vld [vmem:[#allocation5 + $0x180] sm:$0xff]
        %v263 = vld [vmem:[#allocation5 + $0x188] sm:$0xff]
        %v264 = vld [vmem:[#allocation5 + $0x190] sm:$0xff]
        %v265 = vld [vmem:[#allocation5 + $0x198] sm:$0xff]
        %v266 = vld [vmem:[#allocation5 + $0x1a0] sm:$0xff]
        %v267 = vld [vmem:[#allocation5 + $0x1a8] sm:$0xff]
        %v268 = vld [vmem:[#allocation5 + $0x1b0] sm:$0xff]
        %v269 = vld [vmem:[#allocation5 + $0x1b8] sm:$0xff]
        %v270 = vld [vmem:[#allocation5 + $0x1c0] sm:$0xff]
        %v271 = vld [vmem:[#allocation5 + $0x1c8] sm:$0xff]
        %v272 = vld [vmem:[#allocation5 + $0x1d0] sm:$0xff]
        %v273 = vld [vmem:[#allocation5 + $0x1d8] sm:$0xff]
        %v274 = vld [vmem:[#allocation5 + $0x1e0] sm:$0xff]
        %v275 = vld [vmem:[#allocation5 + $0x1e8] sm:$0xff]
        %v276 = vld [vmem:[#allocation5 + $0x1f0] sm:$0xff]
        %v277 = vld [vmem:[#allocation5 + $0x1f8] sm:$0xff]
        %v278 = vld [vmem:[#allocation5 + $0x200] sm:$0xff]
        %v279 = vld [vmem:[#allocation5 + $0x208] sm:$0xff]
        %v280 = vld [vmem:[#allocation5 + $0x210] sm:$0xff]
        %v281 = vld [vmem:[#allocation5 + $0x218] sm:$0xff]
        %v282 = vld [vmem:[#allocation5 + $0x220] sm:$0xff]
        %v283 = vld [vmem:[#allocation5 + $0x228] sm:$0xff]
        %v284 = vld [vmem:[#allocation5 + $0x230] sm:$0xff]
        %v285 = vld [vmem:[#allocation5 + $0x238] sm:$0xff]
        %v286 = vld [vmem:[#allocation5 + $0x240] sm:$0xff]
        %v287 = vld [vmem:[#allocation5 + $0x248] sm:$0xff]
        %v288 = vld [vmem:[#allocation5 + $0x250] sm:$0xff]
        %v289 = vld [vmem:[#allocation5 + $0x258] sm:$0xff]
        %v290 = vld [vmem:[#allocation5 + $0x260] sm:$0xff]
        %v291 = vld [vmem:[#allocation5 + $0x268] sm:$0xff]
        %v292 = vld [vmem:[#allocation5 + $0x270] sm:$0xff]
        %v293 = vld [vmem:[#allocation5 + $0x278] sm:$0xff]
        %v294 = vld [vmem:[#allocation5 + $0x280] sm:$0xff]
        %v295 = vld [vmem:[#allocation5 + $0x288] sm:$0xff]
        %v296 = vld [vmem:[#allocation5 + $0x290] sm:$0xff]
        %v297 = vld [vmem:[#allocation5 + $0x298] sm:$0xff]
        %v298 = vld [vmem:[#allocation5 + $0x2a0] sm:$0xff]
        %v299 = vld [vmem:[#allocation5 + $0x2a8] sm:$0xff]
        %v300 = vld [vmem:[#allocation5 + $0x2b0] sm:$0xff]
        %v301 = vld [vmem:[#allocation5 + $0x2b8] sm:$0xff]
        %v302 = vld [vmem:[#allocation5 + $0x2c0] sm:$0xff]
        %v303 = vld [vmem:[#allocation5 + $0x2c8] sm:$0xff]
        %v304 = vld [vmem:[#allocation5 + $0x2d0] sm:$0xff]
        %v305 = vld [vmem:[#allocation5 + $0x2d8] sm:$0xff]
        %v306 = vld [vmem:[#allocation5 + $0x2e0] sm:$0xff]
        %v307 = vld [vmem:[#allocation5 + $0x2e8] sm:$0xff]
        %v308 = vld [vmem:[#allocation5 + $0x2f0] sm:$0xff]
        %v309 = vld [vmem:[#allocation5 + $0x2f8] sm:$0xff]
        %v310 = vld [vmem:[#allocation5 + $0x300] sm:$0xff]
        %v311 = vld [vmem:[#allocation5 + $0x308] sm:$0xff]
        %v312 = vld [vmem:[#allocation5 + $0x310] sm:$0xff]
        %v313 = vld [vmem:[#allocation5 + $0x318] sm:$0xff]
        %v314 = vld [vmem:[#allocation5 + $0x320] sm:$0xff]
        %v315 = vld [vmem:[#allocation5 + $0x328] sm:$0xff]
        %v316 = vld [vmem:[#allocation5 + $0x330] sm:$0xff]
        %v317 = vld [vmem:[#allocation5 + $0x338] sm:$0xff]
        %v318 = vld [vmem:[#allocation5 + $0x340] sm:$0xff]
        %v319 = vld [vmem:[#allocation5 + $0x348] sm:$0xff]
        %v320 = vld [vmem:[#allocation5 + $0x350] sm:$0xff]
        %v321 = vld [vmem:[#allocation5 + $0x358] sm:$0xff]
        %v322 = vld [vmem:[#allocation5 + $0x360] sm:$0xff]
        %v323 = vld [vmem:[#allocation5 + $0x368] sm:$0xff]
        %v324 = vld [vmem:[#allocation5 + $0x370] sm:$0xff]
        %v325 = vld [vmem:[#allocation5 + $0x378] sm:$0xff]
        %v326 = vld [vmem:[#allocation5 + $0x380] sm:$0xff]
        %v327 = vld [vmem:[#allocation5 + $0x388] sm:$0xff]
        %v328 = vld [vmem:[#allocation5 + $0x390] sm:$0xff]
        %v329 = vld [vmem:[#allocation5 + $0x398] sm:$0xff]
        %v330 = vld [vmem:[#allocation5 + $0x3a0] sm:$0xff]
        %v331 = vld [vmem:[#allocation5 + $0x3a8] sm:$0xff]
        %v332 = vld [vmem:[#allocation5 + $0x3b0] sm:$0xff]
        %v333 = vld [vmem:[#allocation5 + $0x3b8] sm:$0xff]
        %v334 = vld [vmem:[#allocation5 + $0x3c0] sm:$0xff]
        %v335 = vld [vmem:[#allocation5 + $0x3c8] sm:$0xff]
        %v336 = vld [vmem:[#allocation5 + $0x3d0] sm:$0xff]
        %v337 = vld [vmem:[#allocation5 + $0x3d8] sm:$0xff]
        %v338 = vld [vmem:[#allocation5 + $0x3e0] sm:$0xff]
        %v339 = vld [vmem:[#allocation5 + $0x3e8] sm:$0xff]
        %v340 = vld [vmem:[#allocation5 + $0x3f0] sm:$0xff]
        %v341 = vld [vmem:[#allocation5 + $0x3f8] sm:$0xff]
        %v342 = vld [vmem:[#allocation5 + $0x400] sm:$0xff]
        %v343 = vld [vmem:[#allocation5 + $0x408] sm:$0xff]
        %v344 = vld [vmem:[#allocation5 + $0x410] sm:$0xff]
        %v345 = vld [vmem:[#allocation5 + $0x418] sm:$0xff]
        %v346 = vld [vmem:[#allocation5 + $0x420] sm:$0xff]
        %v347 = vld [vmem:[#allocation5 + $0x428] sm:$0xff]
        %v348 = vld [vmem:[#allocation5 + $0x430] sm:$0xff]
        %v349 = vld [vmem:[#allocation5 + $0x438] sm:$0xff]
        %v350 = vld [vmem:[#allocation5 + $0x440] sm:$0xff]
        %v351 = vld [vmem:[#allocation5 + $0x448] sm:$0xff]
        %v352 = vld [vmem:[#allocation5 + $0x450] sm:$0xff]
        %v353 = vld [vmem:[#allocation5 + $0x458] sm:$0xff]
        %v354 = vld [vmem:[#allocation5 + $0x460] sm:$0xff]
        %v355 = vld [vmem:[#allocation5 + $0x468] sm:$0xff]
        %v356 = vld [vmem:[#allocation5 + $0x470] sm:$0xff]
        %v357 = vld [vmem:[#allocation5 + $0x478] sm:$0xff]
        %v358 = vld [vmem:[#allocation5 + $0x480] sm:$0xff]
        %v359 = vld [vmem:[#allocation5 + $0x488] sm:$0xff]
        %v360 = vld [vmem:[#allocation5 + $0x490] sm:$0xff]
        %v361 = vld [vmem:[#allocation5 + $0x498] sm:$0xff]
        %v362 = vld [vmem:[#allocation5 + $0x4a0] sm:$0xff]
        %v363 = vld [vmem:[#allocation5 + $0x4a8] sm:$0xff]
        %v364 = vld [vmem:[#allocation5 + $0x4b0] sm:$0xff]
        %v365 = vld [vmem:[#allocation5 + $0x4b8] sm:$0xff]
        %v366 = vld [vmem:[#allocation5 + $0x4c0] sm:$0xff]
        %v367 = vld [vmem:[#allocation5 + $0x4c8] sm:$0xff]
        %v368 = vld [vmem:[#allocation5 + $0x4d0] sm:$0xff]
        %v369 = vld [vmem:[#allocation5 + $0x4d8] sm:$0xff]
        %v370 = vld [vmem:[#allocation5 + $0x4e0] sm:$0xff]
        %v371 = vld [vmem:[#allocation5 + $0x4e8] sm:$0xff]
        %v372 = vld [vmem:[#allocation5 + $0x4f0] sm:$0xff]
        %v373 = vld [vmem:[#allocation5 + $0x4f8] sm:$0xff]
        %v374 = vld [vmem:[#allocation5 + $0x500] sm:$0xff]
        %v375 = vld [vmem:[#allocation5 + $0x508] sm:$0xff]
        %v376 = vld [vmem:[#allocation5 + $0x510] sm:$0xff]
        %v377 = vld [vmem:[#allocation5 + $0x518] sm:$0xff]
        %v378 = vld [vmem:[#allocation5 + $0x520] sm:$0xff]
        %v379 = vld [vmem:[#allocation5 + $0x528] sm:$0xff]
        %v380 = vld [vmem:[#allocation5 + $0x530] sm:$0xff]
        %v381 = vld [vmem:[#allocation5 + $0x538] sm:$0xff]
        %v382 = vld [vmem:[#allocation5 + $0x540] sm:$0xff]
        %v383 = vld [vmem:[#allocation5 + $0x548] sm:$0xff]
        %v384 = vld [vmem:[#allocation5 + $0x550] sm:$0xff]
        %v385 = vld [vmem:[#allocation5 + $0x558] sm:$0xff]
        %v386 = vld [vmem:[#allocation5 + $0x560] sm:$0xff]
        %v387 = vld [vmem:[#allocation5 + $0x568] sm:$0xff]
        %v388 = vld [vmem:[#allocation5 + $0x570] sm:$0xff]
        %v389 = vld [vmem:[#allocation5 + $0x578] sm:$0xff]
        %v390 = vld [vmem:[#allocation5 + $0x580] sm:$0xff]
        %v391 = vld [vmem:[#allocation5 + $0x588] sm:$0xff]
        %v392 = vld [vmem:[#allocation5 + $0x590] sm:$0xff]
        %v393 = vld [vmem:[#allocation5 + $0x598] sm:$0xff]
        %v394 = vld [vmem:[#allocation5 + $0x5a0] sm:$0xff]
        %v395 = vld [vmem:[#allocation5 + $0x5a8] sm:$0xff]
        %v396 = vld [vmem:[#allocation5 + $0x5b0] sm:$0xff]
        %v397 = vld [vmem:[#allocation5 + $0x5b8] sm:$0xff]
        %v398 = vld [vmem:[#allocation5 + $0x5c0] sm:$0xff]
        %v399 = vld [vmem:[#allocation5 + $0x5c8] sm:$0xff]
        %v400 = vld [vmem:[#allocation5 + $0x5d0] sm:$0xff]
        %v401 = vld [vmem:[#allocation5 + $0x5d8] sm:$0xff]
        %v402 = vld [vmem:[#allocation5 + $0x5e0] sm:$0xff]
        %v403 = vld [vmem:[#allocation5 + $0x5e8] sm:$0xff]
        %v404 = vld [vmem:[#allocation5 + $0x5f0] sm:$0xff]
        %v405 = vld [vmem:[#allocation5 + $0x5f8] sm:$0xff]
        %v406 = vld [vmem:[#allocation7] sm:$0xff]
        %v407 = vld [vmem:[#allocation7 + $0x8] sm:$0xf]
        %v410 = vlaneseq
        %v411 = vshrl.u32 %v410, 7
        %v412 = vsub.s32 0, %v411
        %v413 = vrot.slane %v406, %v412
        %v414 = vlaneseq
        %v415 = vshrl.u32 %v414, 7
        %v416 = vsub.s32 1, %v415
        %v417 = vrot.slane %v406, %v416
        %v418 = vlaneseq
        %v419 = vshrl.u32 %v418, 7
        %v420 = vsub.s32 2, %v419
        %v421 = vrot.slane %v406, %v420
        %v422 = vlaneseq
        %v423 = vshrl.u32 %v422, 7
        %v424 = vsub.s32 3, %v423
        %v425 = vrot.slane %v406, %v424
        %v426 = vlaneseq
        %v427 = vshrl.u32 %v426, 7
        %v428 = vsub.s32 4, %v427
        %v429 = vrot.slane %v406, %v428
        %v430 = vlaneseq
        %v431 = vshrl.u32 %v430, 7
        %v432 = vsub.s32 5, %v431
        %v433 = vrot.slane %v406, %v432
        %v434 = vlaneseq
        %v435 = vshrl.u32 %v434, 7
        %v436 = vsub.s32 6, %v435
        %v437 = vrot.slane %v406, %v436
        %v438 = vlaneseq
        %v439 = vshrl.u32 %v438, 7
        %v440 = vsub.s32 7, %v439
        %v441 = vrot.slane %v406, %v440
        %v442 = vlaneseq
        %v443 = vshrl.u32 %v442, 7
        %v444 = vsub.s32 0, %v443
        %v445 = vrot.slane %v407, %v444
        %v446 = vlaneseq
        %v447 = vshrl.u32 %v446, 7
        %v448 = vsub.s32 1, %v447
        %v449 = vrot.slane %v407, %v448
        %v450 = vlaneseq
        %v451 = vshrl.u32 %v450, 7
        %v452 = vsub.s32 2, %v451
        %v453 = vrot.slane %v407, %v452
        %v454 = vlaneseq
        %v455 = vshrl.u32 %v454, 7
        %v456 = vsub.s32 3, %v455
        %v457 = vrot.slane %v407, %v456
        %470 = vmatprep.subr.mxu0 %v395
        %471 = vmatpush1.msra.mxu0 %v394
        %472 = vmatprep.subr.mxu0 %v383
        %473 = vmatpush1.msra.mxu0 %v382
        %474 = vmatprep.subr.mxu0 %v371
        %475 = vmatpush1.msra.mxu0 %v370
        %476 = vmatprep.subr.mxu0 %v359
        %477 = vmatpush1.msra.mxu0 %v358
        %478 = vmatprep.subr.mxu0 %v347
        %479 = vmatpush1.msra.mxu0 %v346
        %480 = vmatprep.subr.mxu0 %v335
        %481 = vmatpush1.msra.mxu0 %v334
        %482 = vmatprep.subr.mxu0 %v323
        %483 = vmatpush1.msra.mxu0 %v322
        %484 = vmatprep.subr.mxu0 %v311
        %485 = vmatpush1.msra.mxu0 %v310
        %486 = vmatprep.subr.mxu0 %v299
        %487 = vmatpush1.msra.mxu0 %v298
        %488 = vmatprep.subr.mxu0 %v287
        %489 = vmatpush1.msra.mxu0 %v286
        %490 = vmatprep.subr.mxu0 %v275
        %491 = vmatpush1.msra.mxu0 %v274
        %492 = vmatprep.subr.mxu0 %v263
        %493 = vmatpush1.msra.mxu0 %v262
        %494 = vmatprep.subr.mxu0 %v251
        %495 = vmatpush1.msra.mxu0 %v250
        %496 = vmatprep.subr.mxu0 %v239
        %497 = vmatpush1.msra.mxu0 %v238
        %498 = vmatprep.subr.mxu0 %v227
        %499 = vmatpush1.msra.mxu0 %v226
        %500 = vmatprep.subr.mxu0 %v215
        %501 = vmatpush1.msra.mxu0 %v214
        %502 = vmatprep.subr.mxu0 0.0
        %503 = vmatpush2.msra.mxu0 0.0
        %504 = vmatprep.subr.mxu0 0.0
        %505 = vmatpush2.msra.mxu0 0.0
        %506 = vmatprep.subr.mxu0 0.0
        %507 = vmatpush2.msra.mxu0 0.0
        %508 = vmatprep.subr.mxu0 0.0
        %509 = vmatpush2.msra.mxu0 0.0
        %510 = vmatprep.subr.mxu0 0.0
        %511 = vmatpush2.msra.mxu0 0.0
        %512 = vmatprep.subr.mxu0 0.0
        %513 = vmatpush2.msra.mxu0 0.0
        %514 = vmatprep.subr.mxu0 0.0
        %515 = vmatpush2.msra.mxu0 0.0
        %516 = vmatprep.subr.mxu0 0.0
        %517 = vmatpush2.msra.mxu0 0.0
        %518 = vmatprep.subr.mxu0 0.0
        %519 = vmatpush2.msra.mxu0 0.0
        %520 = vmatprep.subr.mxu0 0.0
        %521 = vmatpush2.msra.mxu0 0.0
        %522 = vmatprep.subr.mxu0 0.0
        %523 = vmatpush2.msra.mxu0 0.0
        %524 = vmatprep.subr.mxu0 0.0
        %525 = vmatpush2.msra.mxu0 0.0
        %526 = vmatprep.subr.mxu0 0.0
        %527 = vmatpush2.msra.mxu0 0.0
        %528 = vmatprep.subr.mxu0 0.0
        %529 = vmatpush2.msra.mxu0 0.0
        %530 = vmatprep.subr.mxu0 0.0
        %531 = vmatpush2.msra.mxu0 0.0
        %532 = vmatprep.subr.mxu0 0.0
        %533 = vmatpush2.msra.mxu0 0.0
        %534 = vmatprep.mubr.f32.mxu0 0.0
        %535 = vmatmul.mubr.f32.gmra.mxu0 %v213
        %v536 = vpop.f32.mrf.mxu0
        %v537 = vadd.f32 %v413, %v536
        %v538 = vpop.f32.mrf.mxu0
        %v539 = vadd.f32 %v417, %v538
        %540 = vdwg.mxu0
        %541 = vmatprep.subr.mxu0 %v397
        %542 = vmatpush1.msra.mxu0 %v396
        %543 = vmatprep.subr.mxu0 %v385
        %544 = vmatpush1.msra.mxu0 %v384
        %545 = vmatprep.subr.mxu0 %v373
        %546 = vmatpush1.msra.mxu0 %v372
        %547 = vmatprep.subr.mxu0 %v361
        %548 = vmatpush1.msra.mxu0 %v360
        %549 = vmatprep.subr.mxu0 %v349
        %550 = vmatpush1.msra.mxu0 %v348
        %551 = vmatprep.subr.mxu0 %v337
        %552 = vmatpush1.msra.mxu0 %v336
        %553 = vmatprep.subr.mxu0 %v325
        %554 = vmatpush1.msra.mxu0 %v324
        %555 = vmatprep.subr.mxu0 %v313
        %556 = vmatpush1.msra.mxu0 %v312
        %557 = vmatprep.subr.mxu0 %v301
        %558 = vmatpush1.msra.mxu0 %v300
        %559 = vmatprep.subr.mxu0 %v289
        %560 = vmatpush1.msra.mxu0 %v288
        %561 = vmatprep.subr.mxu0 %v277
        %562 = vmatpush1.msra.mxu0 %v276
        %563 = vmatprep.subr.mxu0 %v265
        %564 = vmatpush1.msra.mxu0 %v264
        %565 = vmatprep.subr.mxu0 %v253
        %566 = vmatpush1.msra.mxu0 %v252
        %567 = vmatprep.subr.mxu0 %v241
        %568 = vmatpush1.msra.mxu0 %v240
        %569 = vmatprep.subr.mxu0 %v229
        %570 = vmatpush1.msra.mxu0 %v228
        %571 = vmatprep.subr.mxu0 %v217
        %572 = vmatpush1.msra.mxu0 %v216
        %573 = vmatprep.subr.mxu0 0.0
        %574 = vmatpush2.msra.mxu0 0.0
        %575 = vmatprep.subr.mxu0 0.0
        %576 = vmatpush2.msra.mxu0 0.0
        %577 = vmatprep.subr.mxu0 0.0
        %578 = vmatpush2.msra.mxu0 0.0
        %579 = vmatprep.subr.mxu0 0.0
        %580 = vmatpush2.msra.mxu0 0.0
        %581 = vmatprep.subr.mxu0 0.0
        %582 = vmatpush2.msra.mxu0 0.0
        %583 = vmatprep.subr.mxu0 0.0
        %584 = vmatpush2.msra.mxu0 0.0
        %585 = vmatprep.subr.mxu0 0.0
        %586 = vmatpush2.msra.mxu0 0.0
        %587 = vmatprep.subr.mxu0 0.0
        %588 = vmatpush2.msra.mxu0 0.0
        %589 = vmatprep.subr.mxu0 0.0
        %590 = vmatpush2.msra.mxu0 0.0
        %591 = vmatprep.subr.mxu0 0.0
        %592 = vmatpush2.msra.mxu0 0.0
        %593 = vmatprep.subr.mxu0 0.0
        %594 = vmatpush2.msra.mxu0 0.0
        %595 = vmatprep.subr.mxu0 0.0
        %596 = vmatpush2.msra.mxu0 0.0
        %597 = vmatprep.subr.mxu0 0.0
        %598 = vmatpush2.msra.mxu0 0.0
        %599 = vmatprep.subr.mxu0 0.0
        %600 = vmatpush2.msra.mxu0 0.0
        %601 = vmatprep.subr.mxu0 0.0
        %602 = vmatpush2.msra.mxu0 0.0
        %603 = vmatprep.subr.mxu0 0.0
        %604 = vmatpush2.msra.mxu0 0.0
        %605 = vmatprep.mubr.f32.mxu0 0.0
        %606 = vmatmul.mubr.f32.gmra.mxu0 %v213
        %v607 = vpop.f32.mrf.mxu0
        %v608 = vadd.f32 %v421, %v607
        %v609 = vpop.f32.mrf.mxu0
        %v610 = vadd.f32 %v425, %v609
        %611 = vdwg.mxu0
        %612 = vmatprep.subr.mxu0 %v399
        %613 = vmatpush1.msra.mxu0 %v398
        %614 = vmatprep.subr.mxu0 %v387
        %615 = vmatpush1.msra.mxu0 %v386
        %616 = vmatprep.subr.mxu0 %v375
        %617 = vmatpush1.msra.mxu0 %v374
        %618 = vmatprep.subr.mxu0 %v363
        %619 = vmatpush1.msra.mxu0 %v362
        %620 = vmatprep.subr.mxu0 %v351
        %621 = vmatpush1.msra.mxu0 %v350
        %622 = vmatprep.subr.mxu0 %v339
        %623 = vmatpush1.msra.mxu0 %v338
        %624 = vmatprep.subr.mxu0 %v327
        %625 = vmatpush1.msra.mxu0 %v326
        %626 = vmatprep.subr.mxu0 %v315
        %627 = vmatpush1.msra.mxu0 %v314
        %628 = vmatprep.subr.mxu0 %v303
        %629 = vmatpush1.msra.mxu0 %v302
        %630 = vmatprep.subr.mxu0 %v291
        %631 = vmatpush1.msra.mxu0 %v290
        %632 = vmatprep.subr.mxu0 %v279
        %633 = vmatpush1.msra.mxu0 %v278
        %634 = vmatprep.subr.mxu0 %v267
        %635 = vmatpush1.msra.mxu0 %v266
        %636 = vmatprep.subr.mxu0 %v255
        %637 = vmatpush1.msra.mxu0 %v254
        %638 = vmatprep.subr.mxu0 %v243
        %639 = vmatpush1.msra.mxu0 %v242
        %640 = vmatprep.subr.mxu0 %v231
        %641 = vmatpush1.msra.mxu0 %v230
        %642 = vmatprep.subr.mxu0 %v219
        %643 = vmatpush1.msra.mxu0 %v218
        %644 = vmatprep.subr.mxu0 0.0
        %645 = vmatpush2.msra.mxu0 0.0
        %646 = vmatprep.subr.mxu0 0.0
        %647 = vmatpush2.msra.mxu0 0.0
        %648 = vmatprep.subr.mxu0 0.0
        %649 = vmatpush2.msra.mxu0 0.0
        %650 = vmatprep.subr.mxu0 0.0
        %651 = vmatpush2.msra.mxu0 0.0
        %652 = vmatprep.subr.mxu0 0.0
        %653 = vmatpush2.msra.mxu0 0.0
        %654 = vmatprep.subr.mxu0 0.0
        %655 = vmatpush2.msra.mxu0 0.0
        %656 = vmatprep.subr.mxu0 0.0
        %657 = vmatpush2.msra.mxu0 0.0
        %658 = vmatprep.subr.mxu0 0.0
        %659 = vmatpush2.msra.mxu0 0.0
        %660 = vmatprep.subr.mxu0 0.0
        %661 = vmatpush2.msra.mxu0 0.0
        %662 = vmatprep.subr.mxu0 0.0
        %663 = vmatpush2.msra.mxu0 0.0
        %664 = vmatprep.subr.mxu0 0.0
        %665 = vmatpush2.msra.mxu0 0.0
        %666 = vmatprep.subr.mxu0 0.0
        %667 = vmatpush2.msra.mxu0 0.0
        %668 = vmatprep.subr.mxu0 0.0
        %669 = vmatpush2.msra.mxu0 0.0
        %670 = vmatprep.subr.mxu0 0.0
        %671 = vmatpush2.msra.mxu0 0.0
        %672 = vmatprep.subr.mxu0 0.0
        %673 = vmatpush2.msra.mxu0 0.0
        %674 = vmatprep.subr.mxu0 0.0
        %675 = vmatpush2.msra.mxu0 0.0
        %676 = vmatprep.mubr.f32.mxu0 0.0
        %677 = vmatmul.mubr.f32.gmra.mxu0 %v213
        %v678 = vpop.f32.mrf.mxu0
        %v679 = vadd.f32 %v429, %v678
        %v680 = vpop.f32.mrf.mxu0
        %v681 = vadd.f32 %v433, %v680
        %682 = vdwg.mxu0
        %683 = vmatprep.subr.mxu0 %v401
        %684 = vmatpush1.msra.mxu0 %v400
        %685 = vmatprep.subr.mxu0 %v389
        %686 = vmatpush1.msra.mxu0 %v388
        %687 = vmatprep.subr.mxu0 %v377
        %688 = vmatpush1.msra.mxu0 %v376
        %689 = vmatprep.subr.mxu0 %v365
        %690 = vmatpush1.msra.mxu0 %v364
        %691 = vmatprep.subr.mxu0 %v353
        %692 = vmatpush1.msra.mxu0 %v352
        %693 = vmatprep.subr.mxu0 %v341
        %694 = vmatpush1.msra.mxu0 %v340
        %695 = vmatprep.subr.mxu0 %v329
        %696 = vmatpush1.msra.mxu0 %v328
        %697 = vmatprep.subr.mxu0 %v317
        %698 = vmatpush1.msra.mxu0 %v316
        %699 = vmatprep.subr.mxu0 %v305
        %700 = vmatpush1.msra.mxu0 %v304
        %701 = vmatprep.subr.mxu0 %v293
        %702 = vmatpush1.msra.mxu0 %v292
        %703 = vmatprep.subr.mxu0 %v281
        %704 = vmatpush1.msra.mxu0 %v280
        %705 = vmatprep.subr.mxu0 %v269
        %706 = vmatpush1.msra.mxu0 %v268
        %707 = vmatprep.subr.mxu0 %v257
        %708 = vmatpush1.msra.mxu0 %v256
        %709 = vmatprep.subr.mxu0 %v245
        %710 = vmatpush1.msra.mxu0 %v244
        %711 = vmatprep.subr.mxu0 %v233
        %712 = vmatpush1.msra.mxu0 %v232
        %713 = vmatprep.subr.mxu0 %v221
        %714 = vmatpush1.msra.mxu0 %v220
        %715 = vmatprep.subr.mxu0 0.0
        %716 = vmatpush2.msra.mxu0 0.0
        %717 = vmatprep.subr.mxu0 0.0
        %718 = vmatpush2.msra.mxu0 0.0
        %719 = vmatprep.subr.mxu0 0.0
        %720 = vmatpush2.msra.mxu0 0.0
        %721 = vmatprep.subr.mxu0 0.0
        %722 = vmatpush2.msra.mxu0 0.0
        %723 = vmatprep.subr.mxu0 0.0
        %724 = vmatpush2.msra.mxu0 0.0
        %725 = vmatprep.subr.mxu0 0.0
        %726 = vmatpush2.msra.mxu0 0.0
        %727 = vmatprep.subr.mxu0 0.0
        %728 = vmatpush2.msra.mxu0 0.0
        %729 = vmatprep.subr.mxu0 0.0
        %730 = vmatpush2.msra.mxu0 0.0
        %731 = vmatprep.subr.mxu0 0.0
        %732 = vmatpush2.msra.mxu0 0.0
        %733 = vmatprep.subr.mxu0 0.0
        %734 = vmatpush2.msra.mxu0 0.0
        %735 = vmatprep.subr.mxu0 0.0
        %736 = vmatpush2.msra.mxu0 0.0
        %737 = vmatprep.subr.mxu0 0.0
        %738 = vmatpush2.msra.mxu0 0.0
        %739 = vmatprep.subr.mxu0 0.0
        %740 = vmatpush2.msra.mxu0 0.0
        %741 = vmatprep.subr.mxu0 0.0
        %742 = vmatpush2.msra.mxu0 0.0
        %743 = vmatprep.subr.mxu0 0.0
        %744 = vmatpush2.msra.mxu0 0.0
        %745 = vmatprep.subr.mxu0 0.0
        %746 = vmatpush2.msra.mxu0 0.0
        %747 = vmatprep.mubr.f32.mxu0 0.0
        %748 = vmatmul.mubr.f32.gmra.mxu0 %v213
        %v749 = vpop.f32.mrf.mxu0
        %v750 = vadd.f32 %v437, %v749
        %v751 = vpop.f32.mrf.mxu0
        %v752 = vadd.f32 %v441, %v751
        %753 = vdwg.mxu0
        %754 = vmatprep.subr.mxu0 %v403
        %755 = vmatpush1.msra.mxu0 %v402
        %756 = vmatprep.subr.mxu0 %v391
        %757 = vmatpush1.msra.mxu0 %v390
        %758 = vmatprep.subr.mxu0 %v379
        %759 = vmatpush1.msra.mxu0 %v378
        %760 = vmatprep.subr.mxu0 %v367
        %761 = vmatpush1.msra.mxu0 %v366
        %762 = vmatprep.subr.mxu0 %v355
        %763 = vmatpush1.msra.mxu0 %v354
        %764 = vmatprep.subr.mxu0 %v343
        %765 = vmatpush1.msra.mxu0 %v342
        %766 = vmatprep.subr.mxu0 %v331
        %767 = vmatpush1.msra.mxu0 %v330
        %768 = vmatprep.subr.mxu0 %v319
        %769 = vmatpush1.msra.mxu0 %v318
        %770 = vmatprep.subr.mxu0 %v307
        %771 = vmatpush1.msra.mxu0 %v306
        %772 = vmatprep.subr.mxu0 %v295
        %773 = vmatpush1.msra.mxu0 %v294
        %774 = vmatprep.subr.mxu0 %v283
        %775 = vmatpush1.msra.mxu0 %v282
        %776 = vmatprep.subr.mxu0 %v271
        %777 = vmatpush1.msra.mxu0 %v270
        %778 = vmatprep.subr.mxu0 %v259
        %779 = vmatpush1.msra.mxu0 %v258
        %780 = vmatprep.subr.mxu0 %v247
        %781 = vmatpush1.msra.mxu0 %v246
        %782 = vmatprep.subr.mxu0 %v235
        %783 = vmatpush1.msra.mxu0 %v234
        %784 = vmatprep.subr.mxu0 %v223
        %785 = vmatpush1.msra.mxu0 %v222
        %786 = vmatprep.subr.mxu0 0.0
        %787 = vmatpush2.msra.mxu0 0.0
        %788 = vmatprep.subr.mxu0 0.0
        %789 = vmatpush2.msra.mxu0 0.0
        %790 = vmatprep.subr.mxu0 0.0
        %791 = vmatpush2.msra.mxu0 0.0
        %792 = vmatprep.subr.mxu0 0.0
        %793 = vmatpush2.msra.mxu0 0.0
        %794 = vmatprep.subr.mxu0 0.0
        %795 = vmatpush2.msra.mxu0 0.0
        %796 = vmatprep.subr.mxu0 0.0
        %797 = vmatpush2.msra.mxu0 0.0
        %798 = vmatprep.subr.mxu0 0.0
        %799 = vmatpush2.msra.mxu0 0.0
        %800 = vmatprep.subr.mxu0 0.0
        %801 = vmatpush2.msra.mxu0 0.0
        %802 = vmatprep.subr.mxu0 0.0
        %803 = vmatpush2.msra.mxu0 0.0
        %804 = vmatprep.subr.mxu0 0.0
        %805 = vmatpush2.msra.mxu0 0.0
        %806 = vmatprep.subr.mxu0 0.0
        %807 = vmatpush2.msra.mxu0 0.0
        %808 = vmatprep.subr.mxu0 0.0
        %809 = vmatpush2.msra.mxu0 0.0
        %810 = vmatprep.subr.mxu0 0.0
        %811 = vmatpush2.msra.mxu0 0.0
        %812 = vmatprep.subr.mxu0 0.0
        %813 = vmatpush2.msra.mxu0 0.0
        %814 = vmatprep.subr.mxu0 0.0
        %815 = vmatpush2.msra.mxu0 0.0
        %816 = vmatprep.subr.mxu0 0.0
        %817 = vmatpush2.msra.mxu0 0.0
        %818 = vmatprep.mubr.f32.mxu0 0.0
        %819 = vmatmul.mubr.f32.gmra.mxu0 %v213
        %v820 = vpop.f32.mrf.mxu0
        %v821 = vadd.f32 %v445, %v820
        %v822 = vpop.f32.mrf.mxu0
        %v823 = vadd.f32 %v449, %v822
        %824 = vdwg.mxu0
        %825 = vmatprep.subr.mxu0 %v405
        %826 = vmatpush1.msra.mxu0 %v404
        %827 = vmatprep.subr.mxu0 %v393
        %828 = vmatpush1.msra.mxu0 %v392
        %829 = vmatprep.subr.mxu0 %v381
        %830 = vmatpush1.msra.mxu0 %v380
        %831 = vmatprep.subr.mxu0 %v369
        %832 = vmatpush1.msra.mxu0 %v368
        %833 = vmatprep.subr.mxu0 %v357
        %834 = vmatpush1.msra.mxu0 %v356
        %835 = vmatprep.subr.mxu0 %v345
        %836 = vmatpush1.msra.mxu0 %v344
        %837 = vmatprep.subr.mxu0 %v333
        %838 = vmatpush1.msra.mxu0 %v332
        %839 = vmatprep.subr.mxu0 %v321
        %840 = vmatpush1.msra.mxu0 %v320
        %841 = vmatprep.subr.mxu0 %v309
        %842 = vmatpush1.msra.mxu0 %v308
        %843 = vmatprep.subr.mxu0 %v297
        %844 = vmatpush1.msra.mxu0 %v296
        %845 = vmatprep.subr.mxu0 %v285
        %846 = vmatpush1.msra.mxu0 %v284
        %847 = vmatprep.subr.mxu0 %v273
        %848 = vmatpush1.msra.mxu0 %v272
        %849 = vmatprep.subr.mxu0 %v261
        %850 = vmatpush1.msra.mxu0 %v260
        %851 = vmatprep.subr.mxu0 %v249
        %852 = vmatpush1.msra.mxu0 %v248
        %853 = vmatprep.subr.mxu0 %v237
        %854 = vmatpush1.msra.mxu0 %v236
        %855 = vmatprep.subr.mxu0 %v225
        %856 = vmatpush1.msra.mxu0 %v224
        %857 = vmatprep.subr.mxu0 0.0
        %858 = vmatpush2.msra.mxu0 0.0
        %859 = vmatprep.subr.mxu0 0.0
        %860 = vmatpush2.msra.mxu0 0.0
        %861 = vmatprep.subr.mxu0 0.0
        %862 = vmatpush2.msra.mxu0 0.0
        %863 = vmatprep.subr.mxu0 0.0
        %864 = vmatpush2.msra.mxu0 0.0
        %865 = vmatprep.subr.mxu0 0.0
        %866 = vmatpush2.msra.mxu0 0.0
        %867 = vmatprep.subr.mxu0 0.0
        %868 = vmatpush2.msra.mxu0 0.0
        %869 = vmatprep.subr.mxu0 0.0
        %870 = vmatpush2.msra.mxu0 0.0
        %871 = vmatprep.subr.mxu0 0.0
        %872 = vmatpush2.msra.mxu0 0.0
        %873 = vmatprep.subr.mxu0 0.0
        %874 = vmatpush2.msra.mxu0 0.0
        %875 = vmatprep.subr.mxu0 0.0
        %876 = vmatpush2.msra.mxu0 0.0
        %877 = vmatprep.subr.mxu0 0.0
        %878 = vmatpush2.msra.mxu0 0.0
        %879 = vmatprep.subr.mxu0 0.0
        %880 = vmatpush2.msra.mxu0 0.0
        %881 = vmatprep.subr.mxu0 0.0
        %882 = vmatpush2.msra.mxu0 0.0
        %883 = vmatprep.subr.mxu0 0.0
        %884 = vmatpush2.msra.mxu0 0.0
        %885 = vmatprep.subr.mxu0 0.0
        %886 = vmatpush2.msra.mxu0 0.0
        %887 = vmatprep.subr.mxu0 0.0
        %888 = vmatpush2.msra.mxu0 0.0
        %889 = vmatprep.mubr.f32.mxu0 0.0
        %890 = vmatmul.mubr.f32.gmra.mxu0 %v213
        %v891 = vpop.f32.mrf.mxu0
        %v892 = vadd.f32 %v453, %v891
        %v893 = vpop.f32.mrf.mxu0
        %v894 = vadd.f32 %v457, %v893
        %895 = vdwg.mxu0
        %896 = vmatprep.subr.mxu0 0.0
        %897 = vmatpush1.xpose.msra.mxu0 0.0
        %898 = vmatprep.subr.mxu0 0.0
        %899 = vmatpush1.xpose.msra.mxu0 0.0
        %900 = vmatprep.subr.mxu0 0.0
        %901 = vmatpush1.xpose.msra.mxu0 0.0
        %902 = vmatprep.subr.mxu0 0.0
        %903 = vmatpush1.xpose.msra.mxu0 0.0
        %904 = vmatprep.subr.mxu0 0.0
        %905 = vmatpush1.xpose.msra.mxu0 0.0
        %906 = vmatprep.subr.mxu0 0.0
        %907 = vmatpush1.xpose.msra.mxu0 0.0
        %908 = vmatprep.subr.mxu0 0.0
        %909 = vmatpush1.xpose.msra.mxu0 0.0
        %910 = vmatprep.subr.mxu0 0.0
        %911 = vmatpush1.xpose.msra.mxu0 0.0
        %912 = vmatprep.subr.mxu0 0.0
        %913 = vmatpush1.xpose.msra.mxu0 0.0
        %914 = vmatprep.subr.mxu0 0.0
        %915 = vmatpush1.xpose.msra.mxu0 0.0
        %916 = vmatprep.subr.mxu0 0.0
        %917 = vmatpush1.xpose.msra.mxu0 0.0
        %918 = vmatprep.subr.mxu0 0.0
        %919 = vmatpush1.xpose.msra.mxu0 0.0
        %920 = vmatprep.subr.mxu0 0.0
        %921 = vmatpush1.xpose.msra.mxu0 0.0
        %922 = vmatprep.subr.mxu0 0.0
        %923 = vmatpush1.xpose.msra.mxu0 0.0
        %924 = vmatprep.subr.mxu0 0.0
        %925 = vmatpush1.xpose.msra.mxu0 0.0
        %926 = vmatprep.subr.mxu0 0.0
        %927 = vmatpush1.xpose.msra.mxu0 %v679
        %928 = vmatprep.subr.mxu0 0.0
        %929 = vmatpush2.xpose.msra.mxu0 0.0
        %930 = vmatprep.subr.mxu0 0.0
        %931 = vmatpush2.xpose.msra.mxu0 0.0
        %932 = vmatprep.subr.mxu0 0.0
        %933 = vmatpush2.xpose.msra.mxu0 0.0
        %934 = vmatprep.subr.mxu0 0.0
        %935 = vmatpush2.xpose.msra.mxu0 0.0
        %936 = vmatprep.subr.mxu0 0.0
        %937 = vmatpush2.xpose.msra.mxu0 0.0
        %938 = vmatprep.subr.mxu0 0.0
        %939 = vmatpush2.xpose.msra.mxu0 0.0
        %940 = vmatprep.subr.mxu0 0.0
        %941 = vmatpush2.xpose.msra.mxu0 0.0
        %942 = vmatprep.subr.mxu0 0.0
        %943 = vmatpush2.xpose.msra.mxu0 0.0
        %944 = vmatprep.subr.mxu0 0.0
        %945 = vmatpush2.xpose.msra.mxu0 0.0
        %946 = vmatprep.subr.mxu0 0.0
        %947 = vmatpush2.xpose.msra.mxu0 0.0
        %948 = vmatprep.subr.mxu0 0.0
        %949 = vmatpush2.xpose.msra.mxu0 0.0
        %950 = vmatprep.subr.mxu0 0.0
        %951 = vmatpush2.xpose.msra.mxu0 0.0
        %952 = vmatprep.subr.mxu0 0.0
        %953 = vmatpush2.xpose.msra.mxu0 0.0
        %954 = vmatprep.subr.mxu0 0.0
        %955 = vmatpush2.xpose.msra.mxu0 0.0
        %956 = vmatprep.subr.mxu0 0.0
        %957 = vmatpush2.xpose.msra.mxu0 0.0
        %958 = vmatprep.subr.mxu0 0.0
        %959 = vmatpush2.xpose.msra.mxu0 0.0
        %960 = vmatprep.mubr.f32.mxu0 0.0
        %961 = vmatmul.mubr.f32.gmra.mxu0 %v537
        %v962 = vpop.f32.mrf.mxu0
        %v963 = vadd.f32 0.0, %v962
        %v964 = vpop.f32.mrf.mxu0
        %965 = vdwg.mxu0
        %vm966 = vcmask 64512
        %v967 = vsel %vm966, %v963, -inf
        %968 = vmax.xlane.f32.xlu0 %v967
        %v969 = vpop.xlane.xlu0 %968
        %v970 = vsub.f32 %v963, %v969
        %v971 = vmul.f32 %v970, 1.442695
        %v972 = vpow.pop %v971
        %v973 = vsel %vm966, %v972, 0.0
        %974 = vadd.xlane.f32.xlu0 %v973
        %v975 = vpop.xlane.xlu0 %974
        %v976 = vrcp.pop %v975
        %v978 = vsel %vm966, %v972, 0
        %980 = vmatprep.subr.mxu0 0.0
        %981 = vmatpush1.msra.mxu0 0.0
        %982 = vmatprep.subr.mxu0 0.0
        %983 = vmatpush1.msra.mxu0 0.0
        %984 = vmatprep.subr.mxu0 0.0
        %985 = vmatpush1.msra.mxu0 0.0
        %986 = vmatprep.subr.mxu0 0.0
        %987 = vmatpush1.msra.mxu0 0.0
        %988 = vmatprep.subr.mxu0 0.0
        %989 = vmatpush1.msra.mxu0 0.0
        %990 = vmatprep.subr.mxu0 0.0
        %991 = vmatpush1.msra.mxu0 0.0
        %992 = vmatprep.subr.mxu0 0.0
        %993 = vmatpush1.msra.mxu0 0.0
        %994 = vmatprep.subr.mxu0 0.0
        %995 = vmatpush1.msra.mxu0 0.0
        %996 = vmatprep.subr.mxu0 0.0
        %997 = vmatpush1.msra.mxu0 0.0
        %998 = vmatprep.subr.mxu0 0.0
        %999 = vmatpush1.msra.mxu0 0.0
        %1000 = vmatprep.subr.mxu0 0.0
        %1001 = vmatpush1.msra.mxu0 0.0
        %1002 = vmatprep.subr.mxu0 0.0
        %1003 = vmatpush1.msra.mxu0 0.0
        %1004 = vmatprep.subr.mxu0 0.0
        %1005 = vmatpush1.msra.mxu0 0.0
        %1006 = vmatprep.subr.mxu0 0.0
        %1007 = vmatpush1.msra.mxu0 0.0
        %1008 = vmatprep.subr.mxu0 0.0
        %1009 = vmatpush1.msra.mxu0 0.0
        %1010 = vmatprep.subr.mxu0 0.0
        %1011 = vmatpush1.msra.mxu0 %v821
        %1012 = vmatprep.subr.mxu0 0.0
        %1013 = vmatpush2.msra.mxu0 0.0
        %1014 = vmatprep.subr.mxu0 0.0
        %1015 = vmatpush2.msra.mxu0 0.0
        %1016 = vmatprep.subr.mxu0 0.0
        %1017 = vmatpush2.msra.mxu0 0.0
        %1018 = vmatprep.subr.mxu0 0.0
        %1019 = vmatpush2.msra.mxu0 0.0
        %1020 = vmatprep.subr.mxu0 0.0
        %1021 = vmatpush2.msra.mxu0 0.0
        %1022 = vmatprep.subr.mxu0 0.0
        %1023 = vmatpush2.msra.mxu0 0.0
        %1024 = vmatprep.subr.mxu0 0.0
        %1025 = vmatpush2.msra.mxu0 0.0
        %1026 = vmatprep.subr.mxu0 0.0
        %1027 = vmatpush2.msra.mxu0 0.0
        %1028 = vmatprep.subr.mxu0 0.0
        %1029 = vmatpush2.msra.mxu0 0.0
        %1030 = vmatprep.subr.mxu0 0.0
        %1031 = vmatpush2.msra.mxu0 0.0
        %1032 = vmatprep.subr.mxu0 0.0
        %1033 = vmatpush2.msra.mxu0 0.0
        %1034 = vmatprep.subr.mxu0 0.0
        %1035 = vmatpush2.msra.mxu0 0.0
        %1036 = vmatprep.subr.mxu0 0.0
        %1037 = vmatpush2.msra.mxu0 0.0
        %1038 = vmatprep.subr.mxu0 0.0
        %1039 = vmatpush2.msra.mxu0 0.0
        %1040 = vmatprep.subr.mxu0 0.0
        %1041 = vmatpush2.msra.mxu0 0.0
        %1042 = vmatprep.subr.mxu0 0.0
        %1043 = vmatpush2.msra.mxu0 0.0
        %1044 = vmatprep.mubr.f32.mxu0 0.0
        %1045 = vmatmul.mubr.f32.gmra.mxu0 %v978
        %v1046 = vpop.f32.mrf.mxu0
        %v1047 = vadd.f32 0.0, %v1046
        %v1048 = vpop.f32.mrf.mxu0
        %1049 = vdwg.mxu0
        %v1050 = vmul.f32 %v1047, %v976
        %1051 = vst [vmem:[%s212] sm:$0xff] %v1050
        %1052 = vmatprep.subr.mxu0 0.0
        %1053 = vmatpush1.xpose.msra.mxu0 0.0
        %1054 = vmatprep.subr.mxu0 0.0
        %1055 = vmatpush1.xpose.msra.mxu0 0.0
        %1056 = vmatprep.subr.mxu0 0.0
        %1057 = vmatpush1.xpose.msra.mxu0 0.0
        %1058 = vmatprep.subr.mxu0 0.0
        %1059 = vmatpush1.xpose.msra.mxu0 0.0
        %1060 = vmatprep.subr.mxu0 0.0
        %1061 = vmatpush1.xpose.msra.mxu0 0.0
        %1062 = vmatprep.subr.mxu0 0.0
        %1063 = vmatpush1.xpose.msra.mxu0 0.0
        %1064 = vmatprep.subr.mxu0 0.0
        %1065 = vmatpush1.xpose.msra.mxu0 0.0
        %1066 = vmatprep.subr.mxu0 0.0
        %1067 = vmatpush1.xpose.msra.mxu0 0.0
        %1068 = vmatprep.subr.mxu0 0.0
        %1069 = vmatpush1.xpose.msra.mxu0 0.0
        %1070 = vmatprep.subr.mxu0 0.0
        %1071 = vmatpush1.xpose.msra.mxu0 0.0
        %1072 = vmatprep.subr.mxu0 0.0
        %1073 = vmatpush1.xpose.msra.mxu0 0.0
        %1074 = vmatprep.subr.mxu0 0.0
        %1075 = vmatpush1.xpose.msra.mxu0 0.0
        %1076 = vmatprep.subr.mxu0 0.0
        %1077 = vmatpush1.xpose.msra.mxu0 0.0
        %1078 = vmatprep.subr.mxu0 0.0
        %1079 = vmatpush1.xpose.msra.mxu0 0.0
        %1080 = vmatprep.subr.mxu0 0.0
        %1081 = vmatpush1.xpose.msra.mxu0 0.0
        %1082 = vmatprep.subr.mxu0 0.0
        %1083 = vmatpush1.xpose.msra.mxu0 %v681
        %1084 = vmatprep.subr.mxu0 0.0
        %1085 = vmatpush2.xpose.msra.mxu0 0.0
        %1086 = vmatprep.subr.mxu0 0.0
        %1087 = vmatpush2.xpose.msra.mxu0 0.0
        %1088 = vmatprep.subr.mxu0 0.0
        %1089 = vmatpush2.xpose.msra.mxu0 0.0
        %1090 = vmatprep.subr.mxu0 0.0
        %1091 = vmatpush2.xpose.msra.mxu0 0.0
        %1092 = vmatprep.subr.mxu0 0.0
        %1093 = vmatpush2.xpose.msra.mxu0 0.0
        %1094 = vmatprep.subr.mxu0 0.0
        %1095 = vmatpush2.xpose.msra.mxu0 0.0
        %1096 = vmatprep.subr.mxu0 0.0
        %1097 = vmatpush2.xpose.msra.mxu0 0.0
        %1098 = vmatprep.subr.mxu0 0.0
        %1099 = vmatpush2.xpose.msra.mxu0 0.0
        %1100 = vmatprep.subr.mxu0 0.0
        %1101 = vmatpush2.xpose.msra.mxu0 0.0
        %1102 = vmatprep.subr.mxu0 0.0
        %1103 = vmatpush2.xpose.msra.mxu0 0.0
        %1104 = vmatprep.subr.mxu0 0.0
        %1105 = vmatpush2.xpose.msra.mxu0 0.0
        %1106 = vmatprep.subr.mxu0 0.0
        %1107 = vmatpush2.xpose.msra.mxu0 0.0
        %1108 = vmatprep.subr.mxu0 0.0
        %1109 = vmatpush2.xpose.msra.mxu0 0.0
        %1110 = vmatprep.subr.mxu0 0.0
        %1111 = vmatpush2.xpose.msra.mxu0 0.0
        %1112 = vmatprep.subr.mxu0 0.0
        %1113 = vmatpush2.xpose.msra.mxu0 0.0
        %1114 = vmatprep.subr.mxu0 0.0
        %1115 = vmatpush2.xpose.msra.mxu0 0.0
        %1116 = vmatprep.mubr.f32.mxu0 0.0
        %1117 = vmatmul.mubr.f32.gmra.mxu0 %v539
        %v1118 = vpop.f32.mrf.mxu0
        %v1119 = vadd.f32 0.0, %v1118
        %v1120 = vpop.f32.mrf.mxu0
        %1121 = vdwg.mxu0
        %v1122 = vsel %vm966, %v1119, -inf
        %1123 = vmax.xlane.f32.xlu0 %v1122
        %v1124 = vpop.xlane.xlu0 %1123
        %v1125 = vsub.f32 %v1119, %v1124
        %v1126 = vmul.f32 %v1125, 1.442695
        %v1127 = vpow.pop %v1126
        %v1128 = vsel %vm966, %v1127, 0.0
        %1129 = vadd.xlane.f32.xlu0 %v1128
        %v1130 = vpop.xlane.xlu0 %1129
        %v1131 = vrcp.pop %v1130
        %v1133 = vsel %vm966, %v1127, 0
        %1135 = vmatprep.subr.mxu0 0.0
        %1136 = vmatpush1.msra.mxu0 0.0
        %1137 = vmatprep.subr.mxu0 0.0
        %1138 = vmatpush1.msra.mxu0 0.0
        %1139 = vmatprep.subr.mxu0 0.0
        %1140 = vmatpush1.msra.mxu0 0.0
        %1141 = vmatprep.subr.mxu0 0.0
        %1142 = vmatpush1.msra.mxu0 0.0
        %1143 = vmatprep.subr.mxu0 0.0
        %1144 = vmatpush1.msra.mxu0 0.0
        %1145 = vmatprep.subr.mxu0 0.0
        %1146 = vmatpush1.msra.mxu0 0.0
        %1147 = vmatprep.subr.mxu0 0.0
        %1148 = vmatpush1.msra.mxu0 0.0
        %1149 = vmatprep.subr.mxu0 0.0
        %1150 = vmatpush1.msra.mxu0 0.0
        %1151 = vmatprep.subr.mxu0 0.0
        %1152 = vmatpush1.msra.mxu0 0.0
        %1153 = vmatprep.subr.mxu0 0.0
        %1154 = vmatpush1.msra.mxu0 0.0
        %1155 = vmatprep.subr.mxu0 0.0
        %1156 = vmatpush1.msra.mxu0 0.0
        %1157 = vmatprep.subr.mxu0 0.0
        %1158 = vmatpush1.msra.mxu0 0.0
        %1159 = vmatprep.subr.mxu0 0.0
        %1160 = vmatpush1.msra.mxu0 0.0
        %1161 = vmatprep.subr.mxu0 0.0
        %1162 = vmatpush1.msra.mxu0 0.0
        %1163 = vmatprep.subr.mxu0 0.0
        %1164 = vmatpush1.msra.mxu0 0.0
        %1165 = vmatprep.subr.mxu0 0.0
        %1166 = vmatpush1.msra.mxu0 %v823
        %1167 = vmatprep.subr.mxu0 0.0
        %1168 = vmatpush2.msra.mxu0 0.0
        %1169 = vmatprep.subr.mxu0 0.0
        %1170 = vmatpush2.msra.mxu0 0.0
        %1171 = vmatprep.subr.mxu0 0.0
        %1172 = vmatpush2.msra.mxu0 0.0
        %1173 = vmatprep.subr.mxu0 0.0
        %1174 = vmatpush2.msra.mxu0 0.0
        %1175 = vmatprep.subr.mxu0 0.0
        %1176 = vmatpush2.msra.mxu0 0.0
        %1177 = vmatprep.subr.mxu0 0.0
        %1178 = vmatpush2.msra.mxu0 0.0
        %1179 = vmatprep.subr.mxu0 0.0
        %1180 = vmatpush2.msra.mxu0 0.0
        %1181 = vmatprep.subr.mxu0 0.0
        %1182 = vmatpush2.msra.mxu0 0.0
        %1183 = vmatprep.subr.mxu0 0.0
        %1184 = vmatpush2.msra.mxu0 0.0
        %1185 = vmatprep.subr.mxu0 0.0
        %1186 = vmatpush2.msra.mxu0 0.0
        %1187 = vmatprep.subr.mxu0 0.0
        %1188 = vmatpush2.msra.mxu0 0.0
        %1189 = vmatprep.subr.mxu0 0.0
        %1190 = vmatpush2.msra.mxu0 0.0
        %1191 = vmatprep.subr.mxu0 0.0
        %1192 = vmatpush2.msra.mxu0 0.0
        %1193 = vmatprep.subr.mxu0 0.0
        %1194 = vmatpush2.msra.mxu0 0.0
        %1195 = vmatprep.subr.mxu0 0.0
        %1196 = vmatpush2.msra.mxu0 0.0
        %1197 = vmatprep.subr.mxu0 0.0
        %1198 = vmatpush2.msra.mxu0 0.0
        %1199 = vmatprep.mubr.f32.mxu0 0.0
        %1200 = vmatmul.mubr.f32.gmra.mxu0 %v1133
        %v1201 = vpop.f32.mrf.mxu0
        %v1202 = vadd.f32 0.0, %v1201
        %v1203 = vpop.f32.mrf.mxu0
        %1204 = vdwg.mxu0
        %v1205 = vmul.f32 %v1202, %v1131
        %1206 = vst [vmem:[%s212 + $0x8] sm:$0xff] %v1205
        %1207 = vmatprep.subr.mxu0 0.0
        %1208 = vmatpush1.xpose.msra.mxu0 0.0
        %1209 = vmatprep.subr.mxu0 0.0
        %1210 = vmatpush1.xpose.msra.mxu0 0.0
        %1211 = vmatprep.subr.mxu0 0.0
        %1212 = vmatpush1.xpose.msra.mxu0 0.0
        %1213 = vmatprep.subr.mxu0 0.0
        %1214 = vmatpush1.xpose.msra.mxu0 0.0
        %1215 = vmatprep.subr.mxu0 0.0
        %1216 = vmatpush1.xpose.msra.mxu0 0.0
        %1217 = vmatprep.subr.mxu0 0.0
        %1218 = vmatpush1.xpose.msra.mxu0 0.0
        %1219 = vmatprep.subr.mxu0 0.0
        %1220 = vmatpush1.xpose.msra.mxu0 0.0
        %1221 = vmatprep.subr.mxu0 0.0
        %1222 = vmatpush1.xpose.msra.mxu0 0.0
        %1223 = vmatprep.subr.mxu0 0.0
        %1224 = vmatpush1.xpose.msra.mxu0 0.0
        %1225 = vmatprep.subr.mxu0 0.0
        %1226 = vmatpush1.xpose.msra.mxu0 0.0
        %1227 = vmatprep.subr.mxu0 0.0
        %1228 = vmatpush1.xpose.msra.mxu0 0.0
        %1229 = vmatprep.subr.mxu0 0.0
        %1230 = vmatpush1.xpose.msra.mxu0 0.0
        %1231 = vmatprep.subr.mxu0 0.0
        %1232 = vmatpush1.xpose.msra.mxu0 0.0
        %1233 = vmatprep.subr.mxu0 0.0
        %1234 = vmatpush1.xpose.msra.mxu0 0.0
        %1235 = vmatprep.subr.mxu0 0.0
        %1236 = vmatpush1.xpose.msra.mxu0 0.0
        %1237 = vmatprep.subr.mxu0 0.0
        %1238 = vmatpush1.xpose.msra.mxu0 %v750
        %1239 = vmatprep.subr.mxu0 0.0
        %1240 = vmatpush2.xpose.msra.mxu0 0.0
        %1241 = vmatprep.subr.mxu0 0.0
        %1242 = vmatpush2.xpose.msra.mxu0 0.0
        %1243 = vmatprep.subr.mxu0 0.0
        %1244 = vmatpush2.xpose.msra.mxu0 0.0
        %1245 = vmatprep.subr.mxu0 0.0
        %1246 = vmatpush2.xpose.msra.mxu0 0.0
        %1247 = vmatprep.subr.mxu0 0.0
        %1248 = vmatpush2.xpose.msra.mxu0 0.0
        %1249 = vmatprep.subr.mxu0 0.0
        %1250 = vmatpush2.xpose.msra.mxu0 0.0
        %1251 = vmatprep.subr.mxu0 0.0
        %1252 = vmatpush2.xpose.msra.mxu0 0.0
        %1253 = vmatprep.subr.mxu0 0.0
        %1254 = vmatpush2.xpose.msra.mxu0 0.0
        %1255 = vmatprep.subr.mxu0 0.0
        %1256 = vmatpush2.xpose.msra.mxu0 0.0
        %1257 = vmatprep.subr.mxu0 0.0
        %1258 = vmatpush2.xpose.msra.mxu0 0.0
        %1259 = vmatprep.subr.mxu0 0.0
        %1260 = vmatpush2.xpose.msra.mxu0 0.0
        %1261 = vmatprep.subr.mxu0 0.0
        %1262 = vmatpush2.xpose.msra.mxu0 0.0
        %1263 = vmatprep.subr.mxu0 0.0
        %1264 = vmatpush2.xpose.msra.mxu0 0.0
        %1265 = vmatprep.subr.mxu0 0.0
        %1266 = vmatpush2.xpose.msra.mxu0 0.0
        %1267 = vmatprep.subr.mxu0 0.0
        %1268 = vmatpush2.xpose.msra.mxu0 0.0
        %1269 = vmatprep.subr.mxu0 0.0
        %1270 = vmatpush2.xpose.msra.mxu0 0.0
        %1271 = vmatprep.mubr.f32.mxu0 0.0
        %1272 = vmatmul.mubr.f32.gmra.mxu0 %v608
        %v1273 = vpop.f32.mrf.mxu0
        %v1274 = vadd.f32 0.0, %v1273
        %v1275 = vpop.f32.mrf.mxu0
        %1276 = vdwg.mxu0
        %v1277 = vsel %vm966, %v1274, -inf
        %1278 = vmax.xlane.f32.xlu0 %v1277
        %v1279 = vpop.xlane.xlu0 %1278
        %v1280 = vsub.f32 %v1274, %v1279
        %v1281 = vmul.f32 %v1280, 1.442695
        %v1282 = vpow.pop %v1281
        %v1283 = vsel %vm966, %v1282, 0.0
        %1284 = vadd.xlane.f32.xlu0 %v1283
        %v1285 = vpop.xlane.xlu0 %1284
        %v1286 = vrcp.pop %v1285
        %v1288 = vsel %vm966, %v1282, 0
        %1290 = vmatprep.subr.mxu0 0.0
        %1291 = vmatpush1.msra.mxu0 0.0
        %1292 = vmatprep.subr.mxu0 0.0
        %1293 = vmatpush1.msra.mxu0 0.0
        %1294 = vmatprep.subr.mxu0 0.0
        %1295 = vmatpush1.msra.mxu0 0.0
        %1296 = vmatprep.subr.mxu0 0.0
        %1297 = vmatpush1.msra.mxu0 0.0
        %1298 = vmatprep.subr.mxu0 0.0
        %1299 = vmatpush1.msra.mxu0 0.0
        %1300 = vmatprep.subr.mxu0 0.0
        %1301 = vmatpush1.msra.mxu0 0.0
        %1302 = vmatprep.subr.mxu0 0.0
        %1303 = vmatpush1.msra.mxu0 0.0
        %1304 = vmatprep.subr.mxu0 0.0
        %1305 = vmatpush1.msra.mxu0 0.0
        %1306 = vmatprep.subr.mxu0 0.0
        %1307 = vmatpush1.msra.mxu0 0.0
        %1308 = vmatprep.subr.mxu0 0.0
        %1309 = vmatpush1.msra.mxu0 0.0
        %1310 = vmatprep.subr.mxu0 0.0
        %1311 = vmatpush1.msra.mxu0 0.0
        %1312 = vmatprep.subr.mxu0 0.0
        %1313 = vmatpush1.msra.mxu0 0.0
        %1314 = vmatprep.subr.mxu0 0.0
        %1315 = vmatpush1.msra.mxu0 0.0
        %1316 = vmatprep.subr.mxu0 0.0
        %1317 = vmatpush1.msra.mxu0 0.0
        %1318 = vmatprep.subr.mxu0 0.0
        %1319 = vmatpush1.msra.mxu0 0.0
        %1320 = vmatprep.subr.mxu0 0.0
        %1321 = vmatpush1.msra.mxu0 %v892
        %1322 = vmatprep.subr.mxu0 0.0
        %1323 = vmatpush2.msra.mxu0 0.0
        %1324 = vmatprep.subr.mxu0 0.0
        %1325 = vmatpush2.msra.mxu0 0.0
        %1326 = vmatprep.subr.mxu0 0.0
        %1327 = vmatpush2.msra.mxu0 0.0
        %1328 = vmatprep.subr.mxu0 0.0
        %1329 = vmatpush2.msra.mxu0 0.0
        %1330 = vmatprep.subr.mxu0 0.0
        %1331 = vmatpush2.msra.mxu0 0.0
        %1332 = vmatprep.subr.mxu0 0.0
        %1333 = vmatpush2.msra.mxu0 0.0
        %1334 = vmatprep.subr.mxu0 0.0
        %1335 = vmatpush2.msra.mxu0 0.0
        %1336 = vmatprep.subr.mxu0 0.0
        %1337 = vmatpush2.msra.mxu0 0.0
        %1338 = vmatprep.subr.mxu0 0.0
        %1339 = vmatpush2.msra.mxu0 0.0
        %1340 = vmatprep.subr.mxu0 0.0
        %1341 = vmatpush2.msra.mxu0 0.0
        %1342 = vmatprep.subr.mxu0 0.0
        %1343 = vmatpush2.msra.mxu0 0.0
        %1344 = vmatprep.subr.mxu0 0.0
        %1345 = vmatpush2.msra.mxu0 0.0
        %1346 = vmatprep.subr.mxu0 0.0
        %1347 = vmatpush2.msra.mxu0 0.0
        %1348 = vmatprep.subr.mxu0 0.0
        %1349 = vmatpush2.msra.mxu0 0.0
        %1350 = vmatprep.subr.mxu0 0.0
        %1351 = vmatpush2.msra.mxu0 0.0
        %1352 = vmatprep.subr.mxu0 0.0
        %1353 = vmatpush2.msra.mxu0 0.0
        %1354 = vmatprep.mubr.f32.mxu0 0.0
        %1355 = vmatmul.mubr.f32.gmra.mxu0 %v1288
        %v1356 = vpop.f32.mrf.mxu0
        %v1357 = vadd.f32 0.0, %v1356
        %v1358 = vpop.f32.mrf.mxu0
        %1359 = vdwg.mxu0
        %v1360 = vmul.f32 %v1357, %v1286
        %1361 = vst [vmem:[%s212 + $0x10] sm:$0xff] %v1360
        %1362 = vmatprep.subr.mxu0 0.0
        %1363 = vmatpush1.xpose.msra.mxu0 0.0
        %1364 = vmatprep.subr.mxu0 0.0
        %1365 = vmatpush1.xpose.msra.mxu0 0.0
        %1366 = vmatprep.subr.mxu0 0.0
        %1367 = vmatpush1.xpose.msra.mxu0 0.0
        %1368 = vmatprep.subr.mxu0 0.0
        %1369 = vmatpush1.xpose.msra.mxu0 0.0
        %1370 = vmatprep.subr.mxu0 0.0
        %1371 = vmatpush1.xpose.msra.mxu0 0.0
        %1372 = vmatprep.subr.mxu0 0.0
        %1373 = vmatpush1.xpose.msra.mxu0 0.0
        %1374 = vmatprep.subr.mxu0 0.0
        %1375 = vmatpush1.xpose.msra.mxu0 0.0
        %1376 = vmatprep.subr.mxu0 0.0
        %1377 = vmatpush1.xpose.msra.mxu0 0.0
        %1378 = vmatprep.subr.mxu0 0.0
        %1379 = vmatpush1.xpose.msra.mxu0 0.0
        %1380 = vmatprep.subr.mxu0 0.0
        %1381 = vmatpush1.xpose.msra.mxu0 0.0
        %1382 = vmatprep.subr.mxu0 0.0
        %1383 = vmatpush1.xpose.msra.mxu0 0.0
        %1384 = vmatprep.subr.mxu0 0.0
        %1385 = vmatpush1.xpose.msra.mxu0 0.0
        %1386 = vmatprep.subr.mxu0 0.0
        %1387 = vmatpush1.xpose.msra.mxu0 0.0
        %1388 = vmatprep.subr.mxu0 0.0
        %1389 = vmatpush1.xpose.msra.mxu0 0.0
        %1390 = vmatprep.subr.mxu0 0.0
        %1391 = vmatpush1.xpose.msra.mxu0 0.0
        %1392 = vmatprep.subr.mxu0 0.0
        %1393 = vmatpush1.xpose.msra.mxu0 %v752
        %1394 = vmatprep.subr.mxu0 0.0
        %1395 = vmatpush2.xpose.msra.mxu0 0.0
        %1396 = vmatprep.subr.mxu0 0.0
        %1397 = vmatpush2.xpose.msra.mxu0 0.0
        %1398 = vmatprep.subr.mxu0 0.0
        %1399 = vmatpush2.xpose.msra.mxu0 0.0
        %1400 = vmatprep.subr.mxu0 0.0
        %1401 = vmatpush2.xpose.msra.mxu0 0.0
        %1402 = vmatprep.subr.mxu0 0.0
        %1403 = vmatpush2.xpose.msra.mxu0 0.0
        %1404 = vmatprep.subr.mxu0 0.0
        %1405 = vmatpush2.xpose.msra.mxu0 0.0
        %1406 = vmatprep.subr.mxu0 0.0
        %1407 = vmatpush2.xpose.msra.mxu0 0.0
        %1408 = vmatprep.subr.mxu0 0.0
        %1409 = vmatpush2.xpose.msra.mxu0 0.0
        %1410 = vmatprep.subr.mxu0 0.0
        %1411 = vmatpush2.xpose.msra.mxu0 0.0
        %1412 = vmatprep.subr.mxu0 0.0
        %1413 = vmatpush2.xpose.msra.mxu0 0.0
        %1414 = vmatprep.subr.mxu0 0.0
        %1415 = vmatpush2.xpose.msra.mxu0 0.0
        %1416 = vmatprep.subr.mxu0 0.0
        %1417 = vmatpush2.xpose.msra.mxu0 0.0
        %1418 = vmatprep.subr.mxu0 0.0
        %1419 = vmatpush2.xpose.msra.mxu0 0.0
        %1420 = vmatprep.subr.mxu0 0.0
        %1421 = vmatpush2.xpose.msra.mxu0 0.0
        %1422 = vmatprep.subr.mxu0 0.0
        %1423 = vmatpush2.xpose.msra.mxu0 0.0
        %1424 = vmatprep.subr.mxu0 0.0
        %1425 = vmatpush2.xpose.msra.mxu0 0.0
        %1426 = vmatprep.mubr.f32.mxu0 0.0
        %1427 = vmatmul.mubr.f32.gmra.mxu0 %v610
        %v1428 = vpop.f32.mrf.mxu0
        %v1429 = vadd.f32 0.0, %v1428
        %v1430 = vpop.f32.mrf.mxu0
        %1431 = vdwg.mxu0
        %v1432 = vsel %vm966, %v1429, -inf
        %1433 = vmax.xlane.f32.xlu0 %v1432
        %v1434 = vpop.xlane.xlu0 %1433
        %v1435 = vsub.f32 %v1429, %v1434
        %v1436 = vmul.f32 %v1435, 1.442695
        %v1437 = vpow.pop %v1436
        %v1438 = vsel %vm966, %v1437, 0.0
        %1439 = vadd.xlane.f32.xlu0 %v1438
        %v1440 = vpop.xlane.xlu0 %1439
        %v1441 = vrcp.pop %v1440
        %v1443 = vsel %vm966, %v1437, 0
        %1445 = vmatprep.subr.mxu0 0.0
        %1446 = vmatpush1.msra.mxu0 0.0
        %1447 = vmatprep.subr.mxu0 0.0
        %1448 = vmatpush1.msra.mxu0 0.0
        %1449 = vmatprep.subr.mxu0 0.0
        %1450 = vmatpush1.msra.mxu0 0.0
        %1451 = vmatprep.subr.mxu0 0.0
        %1452 = vmatpush1.msra.mxu0 0.0
        %1453 = vmatprep.subr.mxu0 0.0
        %1454 = vmatpush1.msra.mxu0 0.0
        %1455 = vmatprep.subr.mxu0 0.0
        %1456 = vmatpush1.msra.mxu0 0.0
        %1457 = vmatprep.subr.mxu0 0.0
        %1458 = vmatpush1.msra.mxu0 0.0
        %1459 = vmatprep.subr.mxu0 0.0
        %1460 = vmatpush1.msra.mxu0 0.0
        %1461 = vmatprep.subr.mxu0 0.0
        %1462 = vmatpush1.msra.mxu0 0.0
        %1463 = vmatprep.subr.mxu0 0.0
        %1464 = vmatpush1.msra.mxu0 0.0
        %1465 = vmatprep.subr.mxu0 0.0
        %1466 = vmatpush1.msra.mxu0 0.0
        %1467 = vmatprep.subr.mxu0 0.0
        %1468 = vmatpush1.msra.mxu0 0.0
        %1469 = vmatprep.subr.mxu0 0.0
        %1470 = vmatpush1.msra.mxu0 0.0
        %1471 = vmatprep.subr.mxu0 0.0
        %1472 = vmatpush1.msra.mxu0 0.0
        %1473 = vmatprep.subr.mxu0 0.0
        %1474 = vmatpush1.msra.mxu0 0.0
        %1475 = vmatprep.subr.mxu0 0.0
        %1476 = vmatpush1.msra.mxu0 %v894
        %1477 = vmatprep.subr.mxu0 0.0
        %1478 = vmatpush2.msra.mxu0 0.0
        %1479 = vmatprep.subr.mxu0 0.0
        %1480 = vmatpush2.msra.mxu0 0.0
        %1481 = vmatprep.subr.mxu0 0.0
        %1482 = vmatpush2.msra.mxu0 0.0
        %1483 = vmatprep.subr.mxu0 0.0
        %1484 = vmatpush2.msra.mxu0 0.0
        %1485 = vmatprep.subr.mxu0 0.0
        %1486 = vmatpush2.msra.mxu0 0.0
        %1487 = vmatprep.subr.mxu0 0.0
        %1488 = vmatpush2.msra.mxu0 0.0
        %1489 = vmatprep.subr.mxu0 0.0
        %1490 = vmatpush2.msra.mxu0 0.0
        %1491 = vmatprep.subr.mxu0 0.0
        %1492 = vmatpush2.msra.mxu0 0.0
        %1493 = vmatprep.subr.mxu0 0.0
        %1494 = vmatpush2.msra.mxu0 0.0
        %1495 = vmatprep.subr.mxu0 0.0
        %1496 = vmatpush2.msra.mxu0 0.0
        %1497 = vmatprep.subr.mxu0 0.0
        %1498 = vmatpush2.msra.mxu0 0.0
        %1499 = vmatprep.subr.mxu0 0.0
        %1500 = vmatpush2.msra.mxu0 0.0
        %1501 = vmatprep.subr.mxu0 0.0
        %1502 = vmatpush2.msra.mxu0 0.0
        %1503 = vmatprep.subr.mxu0 0.0
        %1504 = vmatpush2.msra.mxu0 0.0
        %1505 = vmatprep.subr.mxu0 0.0
        %1506 = vmatpush2.msra.mxu0 0.0
        %1507 = vmatprep.subr.mxu0 0.0
        %1508 = vmatpush2.msra.mxu0 0.0
        %1509 = vmatprep.mubr.f32.mxu0 0.0
        %1510 = vmatmul.mubr.f32.gmra.mxu0 %v1443
        %v1511 = vpop.f32.mrf.mxu0
        %v1512 = vadd.f32 0.0, %v1511
        %v1513 = vpop.f32.mrf.mxu0
        %1514 = vdwg.mxu0
        %v1515 = vmul.f32 %v1512, %v1441
        %1516 = vst [vmem:[%s212 + $0x18] sm:$0xff] %v1515
        %s1517 = sand.u32 %s97, 1
        %s1518 = scalar_lea.sflag [#allocation4], %s1517
        %s1519 = sand.u32 %s97, 1
        %s1520 = smul.addr %s1519, 32
        %s1521 = scalar_lea.vmem [#allocation8], %s1520
        // Predicated region
        $region45: #{tpu_custom_call.1} parent=31 // pred_check
          %p1522 = pneg %p107
        $region46: #{tpu_custom_call.1} parent=31 // pred_check_branch
          %1524 = sbr.rel (%p1522) target = $region48
        $region47: #{tpu_custom_call.1} parent=31 // pred_region
          %s1526 = ssub.s32 512, 512
          %1527 = vsyncadd %s1518, %s1526
          %s1528 = smul.addr %s21, 4
          %s1529 = smul.addr %s1528, 128
          %s1530 = scalar_lea.hbm %s3, %s1529
          %s1532 = sshll.u32 %s1521, 4
          %s1533 = int_to_ptr.vmem [resolvable:$true] %s1532
          %1535 = dma.vmem_to_hbm [thread:$0]  %s1533, 512, %s1530, %s1518
        $region48: #{tpu_custom_call.1} parent=31 // pred_fallthru
          _
      $region32: #{tpu_custom_call.1} parent=5 // pred_fallthru
        _
      %p1536 = scmp.le.s32.totalorder 2, %s16
      // Predicated region
      $region49: #{tpu_custom_call.1} parent=5 // pred_check
        %p1537 = pneg %p1536
      $region50: #{tpu_custom_call.1} parent=5 // pred_check_branch
        %1539 = sbr.rel (%p1537) target = $region52
      $region51: #{tpu_custom_call.1} parent=5 // pred_region
        %s1540 = ssub.s32 %s16, 2
        // Predicated region
        $region53: #{tpu_custom_call.1} parent=51 // pred_check
          %p1541 = pneg %p113
        $region54: #{tpu_custom_call.1} parent=51 // pred_check_branch
          %1543 = sbr.rel (%p1541) target = $region56
        $region55: #{tpu_custom_call.1} parent=51 // pred_region
          %s1544 = sand.u32 %s98, 1
          %s1545 = scalar_lea.sflag [#allocation4], %s1544
          %s1546 = sand.u32 %s98, 1
          %s1547 = smul.addr %s1546, 32
          %s1548 = scalar_lea.vmem [#allocation8], %s1547
          %1549 = dma.done %s1545, 512
        $region56: #{tpu_custom_call.1} parent=51 // pred_fallthru
          _
      $region52: #{tpu_custom_call.1} parent=5 // pred_fallthru
        _
    $region6: #{tpu_custom_call.1} parent=1 // loop_footer
      %s20 = sadd.s32 1, %s16
    $region7: #{tpu_custom_call.1} parent=1 // loop_footer_branch
      %15 = sbr.rel target = $region3
    $region8: #{tpu_custom_call.1} parent=1 // loop_exit
      _
    %1550 = vsyncpa [#allocation3], 1
    %s1551 = scalar_lea.sflag [#allocation3], 1
    %1552 = vsyncpa %s1551, 1
    %1553 = vsyncpa [#allocation6], 1
    %1554 = vsyncpa [#allocation4], 1
    %s1555 = scalar_lea.sflag [#allocation4], 1
    %1556 = vsyncpa %s1555, 1

</llo_original>
